<compile_context>
chip_gen: v6e
topology: v6e:2x2x1
jax: 0.10.0
libtpu: 0.0.40
codegen_flags: <defaults>
</compile_context>

<pallas_src>
import functools
import math

import jax
import jax.numpy as jnp
from jax import lax
from jax.experimental import pallas as pl
from jax.experimental.pallas import tpu as pltpu

EPS = 1e-5  # PyTorch InstanceNorm1d default eps


def _vmem_limit_bytes():
    cap = 64 * 1024 * 1024
    try:
        cap = int(getattr(pltpu.get_tpu_info(), "vmem_capacity_bytes", cap))
    except Exception:
        pass
    # ~3/4 of physical VMEM: 96 MiB on v5e/v6e (128 MiB), 48 MiB on v7x (64 MiB).
    return int(min(cap * 3 // 4, 100 * 1024 * 1024))


def _softmax_last(x):
    m = jnp.max(x, axis=-1, keepdims=True)
    e = jnp.exp(x - m)
    return e / jnp.sum(e, axis=-1, keepdims=True)


# ---------------------------------------------------------------------------
# Fused encoder kernel: embedding + all encoder layers, b_block problems/step
# ---------------------------------------------------------------------------
def _encoder_kernel(x_ref, embw_ref, embb_ref,
                    wqkv_ref, wc_ref, bc_ref, g1_ref, be1_ref,
                    w1_ref, b1_ref, w2_ref, b2_ref, g2_ref, be2_ref,
                    o_ref, tmp_ref,
                    *, n_layers, head_num, qkv_dim, n_nodes, b_block, n_pad):
    HD = head_num * qkv_dim
    N = n_nodes
    Bb = b_block
    E = embw_ref.shape[1]
    R = Bb * N
    inv_sqrt_d = 1.0 / math.sqrt(qkv_dim)
    flat_ok = (N % 8) == 0  # flattening (Bb,N,*)->(Bb*N,*) is layout-preserving

    def proj(x3, w):
        # (Bb, N, Kin) @ (Kin, Kout) -> (Bb, N, Kout); one big MXU matmul when the
        # batch/node dims can be merged without a sublane relayout.
        kin, kout = w.shape
        if flat_ok:
            y = jnp.dot(x3.reshape(R, kin), w, preferred_element_type=jnp.float32)
            return y.reshape(Bb, N, kout)
        # TODO(synk): N % 8 != 0 keeps per-element matmuls to avoid a merging reshape.
        return jnp.stack(
            [jnp.dot(x3[i], w, preferred_element_type=jnp.float32) for i in range(Bb)],
            axis=0)

    def inorm(added, gamma, beta, axis):
        # Add & InstanceNorm1d(affine): normalize over the node axis per channel,
        # single pass (mean and E[x^2] together).
        mean = jnp.mean(added, axis=axis, keepdims=True)
        meansq = jnp.mean(added * added, axis=axis, keepdims=True)
        var = meansq - mean * mean
        return (added - mean) * lax.rsqrt(var + EPS) * gamma + beta

    x = x_ref[...]                                            # (Bb, N, 2)
    embw = embw_ref[...]                                      # (2, E)
    # K=2 embedding projection on the VPU (two FMAs) instead of an MXU dot.
    out = (x[..., 0:1] * embw[0:1, :] + x[..., 1:2] * embw[1:2, :]
           + embb_ref[...])                                   # (Bb, N, E)

    for l in range(n_layers):
        qkv = proj(out, wqkv_ref[l])                          # (Bb, N, 3*HD), fused
        wc_l = wc_ref[l]
        bc_l = bc_ref[l]
        g1_l, be1_l = g1_ref[l], be1_ref[l]
        for b in range(Bb):
            q = qkv[b, :, 0 * HD:1 * HD]
            k = qkv[b, :, 1 * HD:2 * HD]
            v = qkv[b, :, 2 * HD:3 * HD]
            acc = jnp.zeros((N, E), jnp.float32)
            for h in range(head_num):
                sl = slice(h * qkv_dim, (h + 1) * qkv_dim)
                s = lax.dot_general(q[:, sl], k[:, sl], (((1,), (1,)), ((), ())),
                                    preferred_element_type=jnp.float32) * inv_sqrt_d
                a = _softmax_last(s)
                oh = jnp.dot(a, v[:, sl], preferred_element_type=jnp.float32)
                # per-head accumulation into the combine output: no lane concat
                acc = acc + jnp.dot(oh, wc_l[sl, :], preferred_element_type=jnp.float32)
            mh = acc + bc_l
            tmp_ref[b] = inorm(out[b] + mh, g1_l, be1_l, axis=0)
        out1 = tmp_ref[...]                                   # (Bb, N, E)
        hid = jnp.maximum(proj(out1, w1_ref[l]) + b1_ref[l], 0.0)
        ff = proj(hid, w2_ref[l]) + b2_ref[l]
        out = inorm(out1 + ff, g2_ref[l], be2_ref[l], axis=1)

    # emit node-padded encoding directly; pad rows are zero (finite for decoder)
    if n_pad > N:
        o_ref[...] = jnp.zeros_like(o_ref)
    o_ref[:, :N, :] = out


def pallas_encoder(problems, params, *, head_num, qkv_dim, n_pad):
    B, N, _ = problems.shape
    layers = params["enc_layers"]
    L = len(layers)
    E = params["emb_W"].shape[1]
    HD = head_num * qkv_dim
    FF = layers[0]["W1"].shape[1]

    # enough rows to feed the MXU, bounded to keep unrolling/compile time modest
    b_block = max(1, min(B, 8, -(-256 // N)))
    grid_b = pl.cdiv(B, b_block)

    # stack per-layer weights so the whole encoder is one pallas_call
    wqkv = jnp.stack([jnp.concatenate([p["Wq"], p["Wk"], p["Wv"]], axis=1)
                      for p in layers])                              # (L, E, 3*HD)
    wc = jnp.stack([p["Wc"] for p in layers])                        # (L, HD, E)
    bc = jnp.stack([p["bc"].reshape(1, E) for p in layers])          # (L, 1, E)
    g1 = jnp.stack([p["g1"].reshape(1, E) for p in layers])
    be1 = jnp.stack([p["be1"].reshape(1, E) for p in layers])
    w1 = jnp.stack([p["W1"] for p in layers])                        # (L, E, FF)
    b1 = jnp.stack([p["b1"].reshape(1, FF) for p in layers])
    w2 = jnp.stack([p["W2"] for p in layers])                        # (L, FF, E)
    b2 = jnp.stack([p["b2"].reshape(1, E) for p in layers])
    g2 = jnp.stack([p["g2"].reshape(1, E) for p in layers])
    be2 = jnp.stack([p["be2"].reshape(1, E) for p in layers])

    kern = functools.partial(_encoder_kernel, n_layers=L, head_num=head_num,
                             qkv_dim=qkv_dim, n_nodes=N, b_block=b_block,
                             n_pad=n_pad)

    def w_spec(shape):
        return pl.BlockSpec(shape, lambda i: tuple(0 for _ in shape))

    return pl.pallas_call(
        kern,
        out_shape=jax.ShapeDtypeStruct((B, n_pad, E), jnp.float32),
        grid=(grid_b,),
        in_specs=[
            pl.BlockSpec((b_block, N, 2), lambda i: (i, 0, 0)),
            w_spec((2, E)), w_spec((1, E)),
            w_spec((L, E, 3 * HD)), w_spec((L, HD, E)), w_spec((L, 1, E)),
            w_spec((L, 1, E)), w_spec((L, 1, E)),
            w_spec((L, E, FF)), w_spec((L, 1, FF)),
            w_spec((L, FF, E)), w_spec((L, 1, E)),
            w_spec((L, 1, E)), w_spec((L, 1, E)),
        ],
        out_specs=pl.BlockSpec((b_block, n_pad, E), lambda i: (i, 0, 0)),
        scratch_shapes=[pltpu.VMEM((b_block, N, E), jnp.float32)],
        compiler_params=pltpu.CompilerParams(
            dimension_semantics=("parallel",),
            vmem_limit_bytes=_vmem_limit_bytes()),
    )(problems, params["emb_W"], params["emb_b"].reshape(1, E),
      wqkv, wc, bc, g1, be1, w1, b1, w2, b2, g2, be2)


# ---------------------------------------------------------------------------
# Fused autoregressive greedy decoder, gridded over (batch, step-chunks).
# Carried state (k/v, q_first, mask, current one-hot) lives in VMEM scratch and
# persists across chunks; each chunk writes its probs/selection blocks once.
# ---------------------------------------------------------------------------
def _ar_decoder_kernel(enc_ref, wqf_ref, wql_ref, wkv_ref, wc_ref, bc_ref,
                       probs_ref, sel_ref,
                       kf_ref, vf_ref, qf_ref, mask_ref, oh_ref,
                       *, head_num, qkv_dim, n_nodes, n_pomo, n_pad, chunk,
                       inv_sqrt_d, inv_sqrt_e, logit_clipping, inv_temp):
    HD = head_num * qkv_dim
    P, N, Npad = n_pomo, n_nodes, n_pad
    c = pl.program_id(1)

    lane = lax.broadcasted_iota(jnp.int32, (P, Npad), 1)
    row = lax.broadcasted_iota(jnp.int32, (P, Npad), 0)
    node_row = lax.broadcasted_iota(jnp.float32, (1, Npad), 1)
    neg_inf = jnp.float32(-jnp.inf)
    eye_pn = jnp.where(lane == row, 1.0, 0.0).astype(jnp.float32)

    @pl.when(c == 0)
    def _init():
        enc0 = enc_ref[...]                                   # (Npad, E)
        kv = jnp.dot(enc0, wkv_ref[...], preferred_element_type=jnp.float32)
        kf_ref[...] = kv[:, :HD]
        vf_ref[...] = kv[:, HD:]
        # q_first: POMO trajectory p starts at node p (pomo_size == problem_size)
        qf_ref[...] = jnp.dot(enc0[:P, :], wqf_ref[...],
                              preferred_element_type=jnp.float32)
        mask_ref[...] = jnp.where((lane >= N) | (lane == row), neg_inf,
                                  jnp.float32(0.0))
        oh_ref[...] = eye_pn
        # step 0: probs = eye(P), selected = arange(P)
        probs_ref[0] = eye_pn[:, :N]
        sel_ref[0:1, :] = lax.broadcasted_iota(jnp.int32, (1, P), 1)

    enc = enc_ref[...]
    kf = kf_ref[...]
    vf = vf_ref[...]
    qf = qf_ref[...]
    wql = wql_ref[...]
    wc = wc_ref[...]
    bc = bc_ref[...]

    def do_step(t_local):
        mask = mask_ref[...]
        oh = oh_ref[...]

        # encoded_last_node via one-hot gather on the MXU: (P, Npad) @ (Npad, E)
        enc_last = jnp.dot(oh, enc, preferred_element_type=jnp.float32)
        q_flat = qf + jnp.dot(enc_last, wql, preferred_element_type=jnp.float32)

        mh = jnp.zeros((P, wc.shape[1]), jnp.float32)
        for h in range(head_num):
            sl = slice(h * qkv_dim, (h + 1) * qkv_dim)
            s = lax.dot_general(q_flat[:, sl], kf[:, sl], (((1,), (1,)), ((), ())),
                                preferred_element_type=jnp.float32) * inv_sqrt_d + mask
            a = _softmax_last(s)
            o_h = jnp.dot(a, vf[:, sl], preferred_element_type=jnp.float32)
            # per-head accumulation into the combine output (no lane concat)
            mh = mh + jnp.dot(o_h, wc[sl, :], preferred_element_type=jnp.float32)
        mh = mh + bc

        # single-head score: mh @ enc^T, contraction on E (no explicit transpose)
        score = lax.dot_general(mh, enc, (((1,), (1,)), ((), ())),
                                preferred_element_type=jnp.float32)       # (P, Npad)
        score = logit_clipping * jnp.tanh(score * inv_sqrt_e) + mask
        probs = _softmax_last(score * inv_temp)
        probs_ref[t_local] = probs[:, :N]

        # greedy selection (argmax = first occurrence of the max)
        pmax = jnp.max(probs, axis=-1, keepdims=True)
        idx = jnp.min(jnp.where(probs == pmax, lane, Npad), axis=-1, keepdims=True)
        oh_next = jnp.where(lane == idx, 1.0, 0.0).astype(jnp.float32)
        # selected index as a lane-row via a tiny MXU dot (avoids a value transpose)
        sel_row = lax.dot_general(node_row, oh_next, (((1,), (1,)), ((), ())),
                                  preferred_element_type=jnp.float32)      # (1, P)
        sel_ref[t_local:t_local + 1, :] = sel_row.astype(jnp.int32)
        oh_ref[...] = oh_next
        mask_ref[...] = jnp.where(lane == idx, neg_inf, mask)

    for t_local in range(chunk):
        if t_local == 0:
            # global step 0 (chunk 0, local 0) was emitted by _init
            @pl.when(c != 0)
            def _():
                do_step(0)
        else:
            do_step(t_local)


def pallas_ar_decode(enc_pad, dec, *, head_num, qkv_dim, n_nodes,
                     sqrt_embedding_dim, logit_clipping):
    B, Npad, E = enc_pad.shape
    N = n_nodes
    P = n_nodes                      # pomo_size == problem_size
    S = n_nodes                      # number of decode steps
    HD = head_num * qkv_dim
    chunk = S if S <= 8 else 8       # step-chunk: == S or a multiple of 8
    n_chunks = pl.cdiv(S, chunk)

    wkv = jnp.concatenate([dec["Wk"], dec["Wv"]], axis=1)     # (E, 2*HD)

    kern = functools.partial(
        _ar_decoder_kernel, head_num=head_num, qkv_dim=qkv_dim,
        n_nodes=N, n_pomo=P, n_pad=Npad, chunk=chunk,
        inv_sqrt_d=1.0 / math.sqrt(qkv_dim),
        inv_sqrt_e=1.0 / sqrt_embedding_dim,
        logit_clipping=logit_clipping, inv_temp=10.0)

    def w_spec(shape):
        return pl.BlockSpec(shape, lambda b, c: tuple(0 for _ in shape))

    return pl.pallas_call(
        kern,
        out_shape=(jax.ShapeDtypeStruct((B, S, P, N), jnp.float32),
                   jax.ShapeDtypeStruct((B, S, P), jnp.int32)),
        grid=(B, n_chunks),
        in_specs=[
            pl.BlockSpec((None, Npad, E), lambda b, c: (b, 0, 0)),
            w_spec((E, HD)),            # Wq_first
            w_spec((E, HD)),            # Wq_last
            w_spec((E, 2 * HD)),        # [Wk | Wv]
            w_spec((HD, E)),            # multi_head_combine weight
            w_spec((1, E)),             # multi_head_combine bias
        ],
        out_specs=(pl.BlockSpec((None, chunk, P, N), lambda b, c: (b, c, 0, 0)),
                   pl.BlockSpec((None, chunk, P), lambda b, c: (b, c, 0))),
        scratch_shapes=[
            pltpu.VMEM((Npad, HD), jnp.float32),   # k (flat heads)
            pltpu.VMEM((Npad, HD), jnp.float32),   # v (flat heads)
            pltpu.VMEM((P, HD), jnp.float32),      # q_first
            pltpu.VMEM((P, Npad), jnp.float32),    # -inf mask
            pltpu.VMEM((P, Npad), jnp.float32),    # one-hot of current node
        ],
        compiler_params=pltpu.CompilerParams(
            dimension_semantics=("parallel", "arbitrary"),
            vmem_limit_bytes=_vmem_limit_bytes()),
    )(enc_pad, dec["Wq_first"], dec["Wq_last"], wkv, dec["Wc"],
      dec["bc"].reshape(1, E))


# ---------------------------------------------------------------------------
# Parameter init (deterministic, synthetic) and full model forward
# ---------------------------------------------------------------------------
def init_params(key, E, H, D, FF, n_layers):
    HD = H * D
    keys = iter(jax.random.split(key, 16 + 16 * n_layers))

    def w(shape, scale=0.1):
        return (scale * jax.random.normal(next(keys), shape)).astype(jnp.float32)

    params = {"emb_W": w((2, E)), "emb_b": w((E,)), "enc_layers": []}
    for _ in range(n_layers):
        params["enc_layers"].append(
            dict(
                Wq=w((E, HD)), Wk=w((E, HD)), Wv=w((E, HD)),
                Wc=w((HD, E)), bc=w((E,)),
                g1=jnp.ones((E,), jnp.float32), be1=jnp.zeros((E,), jnp.float32),
                W1=w((E, FF)), b1=w((FF,)),
                W2=w((FF, E)), b2=w((E,)),
                g2=jnp.ones((E,), jnp.float32), be2=jnp.zeros((E,), jnp.float32),
            )
        )
    params["dec"] = dict(
        Wq_first=w((E, HD)), Wq_last=w((E, HD)),
        Wk=w((E, HD)), Wv=w((E, HD)),
        Wc=w((HD, E)), bc=w((E,)),
    )
    return params


def tsp_model_forward(problems, params, *, head_num, qkv_dim, logit_clipping):
    B, N, _ = problems.shape
    E = params["emb_W"].shape[1]
    Npad = ((N + 127) // 128) * 128   # lane-dense node axis inside the decoder

    # ---- encoder (pre_forward): one fused, batch-blocked kernel; padded output ----
    enc_pad = pallas_encoder(problems, params, head_num=head_num, qkv_dim=qkv_dim,
                             n_pad=Npad)                                  # (B,Npad,E)

    # ---- fused autoregressive greedy decode: probs + selections from the kernel ----
    probs_sm, sel_sm = pallas_ar_decode(
        enc_pad, params["dec"], head_num=head_num, qkv_dim=qkv_dim,
        n_nodes=N, sqrt_embedding_dim=math.sqrt(E), logit_clipping=logit_clipping,
    )   # probs_sm: (B, steps, P, N) step-major; sel_sm: (B, steps, P)

    prob_next_node_all = jnp.transpose(probs_sm, (0, 2, 1, 3))  # (B, P, steps, N)
    selected_node_list = jnp.swapaxes(sel_sm, 1, 2)             # (B, P, steps)
    return selected_node_list, prob_next_node_all


if __name__ == "__main__":
    key = jax.random.PRNGKey(0)
    kp, kx = jax.random.split(key)

    # small shapes consistent with the module
    batch_size = 2
    problem_size = 8          # == pomo_size
    embedding_dim = 32
    head_num = 4
    qkv_dim = 8               # head_num * qkv_dim == embedding_dim
    ff_hidden_dim = 64
    encoder_layer_num = 2
    logit_clipping = 10.0

    params = init_params(kp, embedding_dim, head_num, qkv_dim,
                         ff_hidden_dim, encoder_layer_num)
    problems = jax.random.uniform(
        kx, (batch_size, problem_size, 2), dtype=jnp.float32
    )

    selected_node_list, prob_next_node_all = tsp_model_forward(
        problems, params,
        head_num=head_num, qkv_dim=qkv_dim, logit_clipping=logit_clipping,
    )
    jax.block_until_ready((selected_node_list, prob_next_node_all))

    assert selected_node_list.shape == (batch_size, problem_size, problem_size)
    assert prob_next_node_all.shape == (
        batch_size, problem_size, problem_size, problem_size
    )
    # sanity: each POMO rollout visits every node exactly once (valid TSP tour)
    perm_ok = jnp.all(
        jnp.sort(selected_node_list, axis=-1)
        == jnp.arange(problem_size, dtype=jnp.int32)[None, None, :]
    )
    assert bool(perm_ok)
    # sanity: in-kernel greedy selection agrees with argmax over returned probs
    agree = jnp.all(
        jnp.argmax(prob_next_node_all, axis=-1).astype(jnp.int32)
        == selected_node_list
    )
    assert bool(agree)
    # sanity: probability rows are normalized
    assert bool(jnp.all(
        jnp.abs(jnp.sum(prob_next_node_all, axis=-1) - 1.0) < 1e-3))
    print("KERNEL_OK")
</pallas_src>

<mosaic_0001>
module attributes {stable_mosaic.version = 11 : i64} {
  func.func @_encoder_kernel(%arg0: i32, %arg1: memref<2x8x2xf32, #tpu.memory_space<vmem>>, %arg2: memref<2x32xf32, #tpu.memory_space<vmem>>, %arg3: memref<1x32xf32, #tpu.memory_space<vmem>>, %arg4: memref<2x32x96xf32, #tpu.memory_space<vmem>>, %arg5: memref<2x32x32xf32, #tpu.memory_space<vmem>>, %arg6: memref<2x1x32xf32, #tpu.memory_space<vmem>>, %arg7: memref<2x1x32xf32, #tpu.memory_space<vmem>>, %arg8: memref<2x1x32xf32, #tpu.memory_space<vmem>>, %arg9: memref<2x32x64xf32, #tpu.memory_space<vmem>>, %arg10: memref<2x1x64xf32, #tpu.memory_space<vmem>>, %arg11: memref<2x64x32xf32, #tpu.memory_space<vmem>>, %arg12: memref<2x1x32xf32, #tpu.memory_space<vmem>>, %arg13: memref<2x1x32xf32, #tpu.memory_space<vmem>>, %arg14: memref<2x1x32xf32, #tpu.memory_space<vmem>>, %arg15: memref<2x128x32xf32, #tpu.memory_space<vmem>>, %arg16: memref<2x8x32xf32, #tpu.memory_space<vmem>>) attributes {dimension_semantics = [#tpu.dimension_semantics<parallel>], iteration_bounds = array<i64: 1>, scalar_prefetch = 0 : i64, scratch_operands = 1 : i64, tpu.core_type = #tpu.core_type<tc>, window_params = [{transform_indices = @transform_0, window_bounds = array<i64: 2, 8, 2>}, {pipeline_mode = #tpu.pipeline_mode<synchronous>, transform_indices = @transform_1, window_bounds = array<i64: 2, 32>}, {pipeline_mode = #tpu.pipeline_mode<synchronous>, transform_indices = @transform_2, window_bounds = array<i64: 1, 32>}, {pipeline_mode = #tpu.pipeline_mode<synchronous>, transform_indices = @transform_3, window_bounds = array<i64: 2, 32, 96>}, {pipeline_mode = #tpu.pipeline_mode<synchronous>, transform_indices = @transform_4, window_bounds = array<i64: 2, 32, 32>}, {pipeline_mode = #tpu.pipeline_mode<synchronous>, transform_indices = @transform_5, window_bounds = array<i64: 2, 1, 32>}, {pipeline_mode = #tpu.pipeline_mode<synchronous>, transform_indices = @transform_6, window_bounds = array<i64: 2, 1, 32>}, {pipeline_mode = #tpu.pipeline_mode<synchronous>, transform_indices = @transform_7, window_bounds = array<i64: 2, 1, 32>}, {pipeline_mode = #tpu.pipeline_mode<synchronous>, transform_indices = @transform_8, window_bounds = array<i64: 2, 32, 64>}, {pipeline_mode = #tpu.pipeline_mode<synchronous>, transform_indices = @transform_9, window_bounds = array<i64: 2, 1, 64>}, {pipeline_mode = #tpu.pipeline_mode<synchronous>, transform_indices = @transform_10, window_bounds = array<i64: 2, 64, 32>}, {pipeline_mode = #tpu.pipeline_mode<synchronous>, transform_indices = @transform_11, window_bounds = array<i64: 2, 1, 32>}, {pipeline_mode = #tpu.pipeline_mode<synchronous>, transform_indices = @transform_12, window_bounds = array<i64: 2, 1, 32>}, {pipeline_mode = #tpu.pipeline_mode<synchronous>, transform_indices = @transform_13, window_bounds = array<i64: 2, 1, 32>}, {transform_indices = @transform_14, window_bounds = array<i64: 2, 128, 32>}]} {
    %c0 = arith.constant 0 : index
    %c0_0 = arith.constant 0 : index
    %c0_1 = arith.constant 0 : index
    %0 = vector.load %arg1[%c0, %c0_0, %c0_1] : memref<2x8x2xf32, #tpu.memory_space<vmem>>, vector<2x8x2xf32>
    %c0_2 = arith.constant 0 : index
    %c0_3 = arith.constant 0 : index
    %1 = vector.load %arg2[%c0_2, %c0_3] : memref<2x32xf32, #tpu.memory_space<vmem>>, vector<2x32xf32>
    %2 = vector.extract_strided_slice %0 {offsets = [0, 0, 0], sizes = [2, 8, 1], strides = [1, 1, 1]} : vector<2x8x2xf32> to vector<2x8x1xf32>
    %3 = vector.extract_strided_slice %1 {offsets = [0, 0], sizes = [1, 32], strides = [1, 1]} : vector<2x32xf32> to vector<1x32xf32>
    %4 = vector.shape_cast %3 : vector<1x32xf32> to vector<1x1x32xf32>
    %5 = vector.broadcast %2 : vector<2x8x1xf32> to vector<2x8x32xf32>
    %6 = vector.broadcast %4 : vector<1x1x32xf32> to vector<2x8x32xf32>
    %7 = arith.mulf %5, %6 : vector<2x8x32xf32>
    %8 = vector.extract_strided_slice %0 {offsets = [0, 0, 1], sizes = [2, 8, 1], strides = [1, 1, 1]} : vector<2x8x2xf32> to vector<2x8x1xf32>
    %9 = vector.extract_strided_slice %1 {offsets = [1, 0], sizes = [1, 32], strides = [1, 1]} : vector<2x32xf32> to vector<1x32xf32>
    %10 = vector.shape_cast %9 : vector<1x32xf32> to vector<1x1x32xf32>
    %11 = vector.broadcast %8 : vector<2x8x1xf32> to vector<2x8x32xf32>
    %12 = vector.broadcast %10 : vector<1x1x32xf32> to vector<2x8x32xf32>
    %13 = arith.mulf %11, %12 : vector<2x8x32xf32>
    %14 = arith.addf %7, %13 : vector<2x8x32xf32>
    %c0_4 = arith.constant 0 : index
    %c0_5 = arith.constant 0 : index
    %15 = vector.load %arg3[%c0_4, %c0_5] : memref<1x32xf32, #tpu.memory_space<vmem>>, vector<1x32xf32>
    %16 = vector.shape_cast %15 : vector<1x32xf32> to vector<1x1x32xf32>
    %17 = vector.broadcast %16 : vector<1x1x32xf32> to vector<2x8x32xf32>
    %18 = arith.addf %14, %17 : vector<2x8x32xf32>
    %c0_6 = arith.constant 0 : index
    %c0_7 = arith.constant 0 : index
    %c0_8 = arith.constant 0 : index
    %19 = vector.load %arg4[%c0_6, %c0_7, %c0_8] : memref<2x32x96xf32, #tpu.memory_space<vmem>>, vector<1x32x96xf32>
    %20 = vector.shape_cast %19 : vector<1x32x96xf32> to vector<32x96xf32>
    %21 = vector.shape_cast %18 : vector<2x8x32xf32> to vector<16x32xf32>
    %cst = arith.constant dense<0.000000e+00> : vector<16x96xf32>
    %22 = tpu.matmul %21, %20, %cst {dimension_numbers = #tpu.dot_dimension_numbers<[1], [0], [0], [1], [0, 0, 1, 1], [], []>} : vector<16x32xf32>, vector<32x96xf32>, vector<16x96xf32> -> vector<16x96xf32>
    %23 = vector.shape_cast %22 : vector<16x96xf32> to vector<2x8x96xf32>
    %c0_9 = arith.constant 0 : index
    %c0_10 = arith.constant 0 : index
    %c0_11 = arith.constant 0 : index
    %24 = vector.load %arg5[%c0_9, %c0_10, %c0_11] : memref<2x32x32xf32, #tpu.memory_space<vmem>>, vector<1x32x32xf32>
    %25 = vector.shape_cast %24 : vector<1x32x32xf32> to vector<32x32xf32>
    %c0_12 = arith.constant 0 : index
    %c0_13 = arith.constant 0 : index
    %c0_14 = arith.constant 0 : index
    %26 = vector.load %arg6[%c0_12, %c0_13, %c0_14] : memref<2x1x32xf32, #tpu.memory_space<vmem>>, vector<1x1x32xf32>
    %27 = vector.shape_cast %26 : vector<1x1x32xf32> to vector<1x32xf32>
    %c0_15 = arith.constant 0 : index
    %c0_16 = arith.constant 0 : index
    %c0_17 = arith.constant 0 : index
    %28 = vector.load %arg7[%c0_15, %c0_16, %c0_17] : memref<2x1x32xf32, #tpu.memory_space<vmem>>, vector<1x1x32xf32>
    %29 = vector.shape_cast %28 : vector<1x1x32xf32> to vector<1x32xf32>
    %c0_18 = arith.constant 0 : index
    %c0_19 = arith.constant 0 : index
    %c0_20 = arith.constant 0 : index
    %30 = vector.load %arg8[%c0_18, %c0_19, %c0_20] : memref<2x1x32xf32, #tpu.memory_space<vmem>>, vector<1x1x32xf32>
    %31 = vector.shape_cast %30 : vector<1x1x32xf32> to vector<1x32xf32>
    %32 = vector.extract_strided_slice %23 {offsets = [0, 0, 0], sizes = [1, 8, 32], strides = [1, 1, 1]} : vector<2x8x96xf32> to vector<1x8x32xf32>
    %33 = vector.shape_cast %32 : vector<1x8x32xf32> to vector<8x32xf32>
    %34 = vector.extract_strided_slice %23 {offsets = [0, 0, 32], sizes = [1, 8, 32], strides = [1, 1, 1]} : vector<2x8x96xf32> to vector<1x8x32xf32>
    %35 = vector.shape_cast %34 : vector<1x8x32xf32> to vector<8x32xf32>
    %36 = vector.extract_strided_slice %23 {offsets = [0, 0, 64], sizes = [1, 8, 32], strides = [1, 1, 1]} : vector<2x8x96xf32> to vector<1x8x32xf32>
    %37 = vector.shape_cast %36 : vector<1x8x32xf32> to vector<8x32xf32>
    %cst_21 = arith.constant 0.000000e+00 : f32
    %38 = vector.broadcast %cst_21 : f32 to vector<8x32xf32>
    %39 = vector.extract_strided_slice %33 {offsets = [0, 0], sizes = [8, 8], strides = [1, 1]} : vector<8x32xf32> to vector<8x8xf32>
    %40 = vector.extract_strided_slice %35 {offsets = [0, 0], sizes = [8, 8], strides = [1, 1]} : vector<8x32xf32> to vector<8x8xf32>
    %cst_22 = arith.constant dense<0.000000e+00> : vector<8x8xf32>
    %41 = tpu.matmul %39, %40, %cst_22 {dimension_numbers = #tpu.dot_dimension_numbers<[1], [1], [0], [0], [0, 0, 1, 0], [], []>} : vector<8x8xf32>, vector<8x8xf32>, vector<8x8xf32> -> vector<8x8xf32>
    %cst_23 = arith.constant 0.353553385 : f32
    %42 = vector.broadcast %cst_23 : f32 to vector<8x8xf32>
    %43 = arith.mulf %41, %42 : vector<8x8xf32>
    %cst_24 = arith.constant dense<0xFF800000> : vector<8xf32>
    %44 = vector.multi_reduction <maximumf>, %43, %cst_24 [1] : vector<8x8xf32> to vector<8xf32>
    %45 = vector.shape_cast %44 : vector<8xf32> to vector<8x1xf32>
    %46 = vector.broadcast %45 : vector<8x1xf32> to vector<8x8xf32>
    %47 = arith.subf %43, %46 : vector<8x8xf32>
    %48 = math.exp %47 : vector<8x8xf32>
    %cst_25 = arith.constant dense<0.000000e+00> : vector<8xf32>
    %49 = vector.multi_reduction <add>, %48, %cst_25 [1] : vector<8x8xf32> to vector<8xf32>
    %50 = vector.shape_cast %49 : vector<8xf32> to vector<8x1xf32>
    %51 = vector.broadcast %50 : vector<8x1xf32> to vector<8x8xf32>
    %52 = arith.divf %48, %51 : vector<8x8xf32>
    %53 = vector.extract_strided_slice %37 {offsets = [0, 0], sizes = [8, 8], strides = [1, 1]} : vector<8x32xf32> to vector<8x8xf32>
    %cst_26 = arith.constant dense<0.000000e+00> : vector<8x8xf32>
    %54 = tpu.matmul %52, %53, %cst_26 {dimension_numbers = #tpu.dot_dimension_numbers<[1], [0], [0], [1], [0, 0, 1, 1], [], []>} : vector<8x8xf32>, vector<8x8xf32>, vector<8x8xf32> -> vector<8x8xf32>
    %55 = vector.extract_strided_slice %25 {offsets = [0, 0], sizes = [8, 32], strides = [1, 1]} : vector<32x32xf32> to vector<8x32xf32>
    %cst_27 = arith.constant dense<0.000000e+00> : vector<8x32xf32>
    %56 = tpu.matmul %54, %55, %cst_27 {dimension_numbers = #tpu.dot_dimension_numbers<[1], [0], [0], [1], [0, 0, 1, 1], [], []>} : vector<8x8xf32>, vector<8x32xf32>, vector<8x32xf32> -> vector<8x32xf32>
    %57 = arith.addf %38, %56 : vector<8x32xf32>
    %58 = vector.extract_strided_slice %33 {offsets = [0, 8], sizes = [8, 8], strides = [1, 1]} : vector<8x32xf32> to vector<8x8xf32>
    %59 = vector.extract_strided_slice %35 {offsets = [0, 8], sizes = [8, 8], strides = [1, 1]} : vector<8x32xf32> to vector<8x8xf32>
    %cst_28 = arith.constant dense<0.000000e+00> : vector<8x8xf32>
    %60 = tpu.matmul %58, %59, %cst_28 {dimension_numbers = #tpu.dot_dimension_numbers<[1], [1], [0], [0], [0, 0, 1, 0], [], []>} : vector<8x8xf32>, vector<8x8xf32>, vector<8x8xf32> -> vector<8x8xf32>
    %cst_29 = arith.constant 0.353553385 : f32
    %61 = vector.broadcast %cst_29 : f32 to vector<8x8xf32>
    %62 = arith.mulf %60, %61 : vector<8x8xf32>
    %cst_30 = arith.constant dense<0xFF800000> : vector<8xf32>
    %63 = vector.multi_reduction <maximumf>, %62, %cst_30 [1] : vector<8x8xf32> to vector<8xf32>
    %64 = vector.shape_cast %63 : vector<8xf32> to vector<8x1xf32>
    %65 = vector.broadcast %64 : vector<8x1xf32> to vector<8x8xf32>
    %66 = arith.subf %62, %65 : vector<8x8xf32>
    %67 = math.exp %66 : vector<8x8xf32>
    %cst_31 = arith.constant dense<0.000000e+00> : vector<8xf32>
    %68 = vector.multi_reduction <add>, %67, %cst_31 [1] : vector<8x8xf32> to vector<8xf32>
    %69 = vector.shape_cast %68 : vector<8xf32> to vector<8x1xf32>
    %70 = vector.broadcast %69 : vector<8x1xf32> to vector<8x8xf32>
    %71 = arith.divf %67, %70 : vector<8x8xf32>
    %72 = vector.extract_strided_slice %37 {offsets = [0, 8], sizes = [8, 8], strides = [1, 1]} : vector<8x32xf32> to vector<8x8xf32>
    %cst_32 = arith.constant dense<0.000000e+00> : vector<8x8xf32>
    %73 = tpu.matmul %71, %72, %cst_32 {dimension_numbers = #tpu.dot_dimension_numbers<[1], [0], [0], [1], [0, 0, 1, 1], [], []>} : vector<8x8xf32>, vector<8x8xf32>, vector<8x8xf32> -> vector<8x8xf32>
    %74 = vector.extract_strided_slice %25 {offsets = [8, 0], sizes = [8, 32], strides = [1, 1]} : vector<32x32xf32> to vector<8x32xf32>
    %cst_33 = arith.constant dense<0.000000e+00> : vector<8x32xf32>
    %75 = tpu.matmul %73, %74, %cst_33 {dimension_numbers = #tpu.dot_dimension_numbers<[1], [0], [0], [1], [0, 0, 1, 1], [], []>} : vector<8x8xf32>, vector<8x32xf32>, vector<8x32xf32> -> vector<8x32xf32>
    %76 = arith.addf %57, %75 : vector<8x32xf32>
    %77 = vector.extract_strided_slice %33 {offsets = [0, 16], sizes = [8, 8], strides = [1, 1]} : vector<8x32xf32> to vector<8x8xf32>
    %78 = vector.extract_strided_slice %35 {offsets = [0, 16], sizes = [8, 8], strides = [1, 1]} : vector<8x32xf32> to vector<8x8xf32>
    %cst_34 = arith.constant dense<0.000000e+00> : vector<8x8xf32>
    %79 = tpu.matmul %77, %78, %cst_34 {dimension_numbers = #tpu.dot_dimension_numbers<[1], [1], [0], [0], [0, 0, 1, 0], [], []>} : vector<8x8xf32>, vector<8x8xf32>, vector<8x8xf32> -> vector<8x8xf32>
    %cst_35 = arith.constant 0.353553385 : f32
    %80 = vector.broadcast %cst_35 : f32 to vector<8x8xf32>
    %81 = arith.mulf %79, %80 : vector<8x8xf32>
    %cst_36 = arith.constant dense<0xFF800000> : vector<8xf32>
    %82 = vector.multi_reduction <maximumf>, %81, %cst_36 [1] : vector<8x8xf32> to vector<8xf32>
    %83 = vector.shape_cast %82 : vector<8xf32> to vector<8x1xf32>
    %84 = vector.broadcast %83 : vector<8x1xf32> to vector<8x8xf32>
    %85 = arith.subf %81, %84 : vector<8x8xf32>
    %86 = math.exp %85 : vector<8x8xf32>
    %cst_37 = arith.constant dense<0.000000e+00> : vector<8xf32>
    %87 = vector.multi_reduction <add>, %86, %cst_37 [1] : vector<8x8xf32> to vector<8xf32>
    %88 = vector.shape_cast %87 : vector<8xf32> to vector<8x1xf32>
    %89 = vector.broadcast %88 : vector<8x1xf32> to vector<8x8xf32>
    %90 = arith.divf %86, %89 : vector<8x8xf32>
    %91 = vector.extract_strided_slice %37 {offsets = [0, 16], sizes = [8, 8], strides = [1, 1]} : vector<8x32xf32> to vector<8x8xf32>
    %cst_38 = arith.constant dense<0.000000e+00> : vector<8x8xf32>
    %92 = tpu.matmul %90, %91, %cst_38 {dimension_numbers = #tpu.dot_dimension_numbers<[1], [0], [0], [1], [0, 0, 1, 1], [], []>} : vector<8x8xf32>, vector<8x8xf32>, vector<8x8xf32> -> vector<8x8xf32>
    %93 = vector.extract_strided_slice %25 {offsets = [16, 0], sizes = [8, 32], strides = [1, 1]} : vector<32x32xf32> to vector<8x32xf32>
    %cst_39 = arith.constant dense<0.000000e+00> : vector<8x32xf32>
    %94 = tpu.matmul %92, %93, %cst_39 {dimension_numbers = #tpu.dot_dimension_numbers<[1], [0], [0], [1], [0, 0, 1, 1], [], []>} : vector<8x8xf32>, vector<8x32xf32>, vector<8x32xf32> -> vector<8x32xf32>
    %95 = arith.addf %76, %94 : vector<8x32xf32>
    %96 = vector.extract_strided_slice %33 {offsets = [0, 24], sizes = [8, 8], strides = [1, 1]} : vector<8x32xf32> to vector<8x8xf32>
    %97 = vector.extract_strided_slice %35 {offsets = [0, 24], sizes = [8, 8], strides = [1, 1]} : vector<8x32xf32> to vector<8x8xf32>
    %cst_40 = arith.constant dense<0.000000e+00> : vector<8x8xf32>
    %98 = tpu.matmul %96, %97, %cst_40 {dimension_numbers = #tpu.dot_dimension_numbers<[1], [1], [0], [0], [0, 0, 1, 0], [], []>} : vector<8x8xf32>, vector<8x8xf32>, vector<8x8xf32> -> vector<8x8xf32>
    %cst_41 = arith.constant 0.353553385 : f32
    %99 = vector.broadcast %cst_41 : f32 to vector<8x8xf32>
    %100 = arith.mulf %98, %99 : vector<8x8xf32>
    %cst_42 = arith.constant dense<0xFF800000> : vector<8xf32>
    %101 = vector.multi_reduction <maximumf>, %100, %cst_42 [1] : vector<8x8xf32> to vector<8xf32>
    %102 = vector.shape_cast %101 : vector<8xf32> to vector<8x1xf32>
    %103 = vector.broadcast %102 : vector<8x1xf32> to vector<8x8xf32>
    %104 = arith.subf %100, %103 : vector<8x8xf32>
    %105 = math.exp %104 : vector<8x8xf32>
    %cst_43 = arith.constant dense<0.000000e+00> : vector<8xf32>
    %106 = vector.multi_reduction <add>, %105, %cst_43 [1] : vector<8x8xf32> to vector<8xf32>
    %107 = vector.shape_cast %106 : vector<8xf32> to vector<8x1xf32>
    %108 = vector.broadcast %107 : vector<8x1xf32> to vector<8x8xf32>
    %109 = arith.divf %105, %108 : vector<8x8xf32>
    %110 = vector.extract_strided_slice %37 {offsets = [0, 24], sizes = [8, 8], strides = [1, 1]} : vector<8x32xf32> to vector<8x8xf32>
    %cst_44 = arith.constant dense<0.000000e+00> : vector<8x8xf32>
    %111 = tpu.matmul %109, %110, %cst_44 {dimension_numbers = #tpu.dot_dimension_numbers<[1], [0], [0], [1], [0, 0, 1, 1], [], []>} : vector<8x8xf32>, vector<8x8xf32>, vector<8x8xf32> -> vector<8x8xf32>
    %112 = vector.extract_strided_slice %25 {offsets = [24, 0], sizes = [8, 32], strides = [1, 1]} : vector<32x32xf32> to vector<8x32xf32>
    %cst_45 = arith.constant dense<0.000000e+00> : vector<8x32xf32>
    %113 = tpu.matmul %111, %112, %cst_45 {dimension_numbers = #tpu.dot_dimension_numbers<[1], [0], [0], [1], [0, 0, 1, 1], [], []>} : vector<8x8xf32>, vector<8x32xf32>, vector<8x32xf32> -> vector<8x32xf32>
    %114 = arith.addf %95, %113 : vector<8x32xf32>
    %115 = vector.broadcast %27 : vector<1x32xf32> to vector<8x32xf32>
    %116 = arith.addf %114, %115 : vector<8x32xf32>
    %117 = vector.extract_strided_slice %18 {offsets = [0, 0, 0], sizes = [1, 8, 32], strides = [1, 1, 1]} : vector<2x8x32xf32> to vector<1x8x32xf32>
    %118 = vector.shape_cast %117 : vector<1x8x32xf32> to vector<8x32xf32>
    %119 = arith.addf %118, %116 : vector<8x32xf32>
    %cst_46 = arith.constant dense<0.000000e+00> : vector<32xf32>
    %120 = vector.multi_reduction <add>, %119, %cst_46 [0] : vector<8x32xf32> to vector<32xf32>
    %121 = vector.shape_cast %120 : vector<32xf32> to vector<1x32xf32>
    %cst_47 = arith.constant 8.000000e+00 : f32
    %122 = vector.broadcast %cst_47 : f32 to vector<1x32xf32>
    %123 = arith.divf %121, %122 : vector<1x32xf32>
    %124 = arith.mulf %119, %119 : vector<8x32xf32>
    %cst_48 = arith.constant dense<0.000000e+00> : vector<32xf32>
    %125 = vector.multi_reduction <add>, %124, %cst_48 [0] : vector<8x32xf32> to vector<32xf32>
    %126 = vector.shape_cast %125 : vector<32xf32> to vector<1x32xf32>
    %cst_49 = arith.constant 8.000000e+00 : f32
    %127 = vector.broadcast %cst_49 : f32 to vector<1x32xf32>
    %128 = arith.divf %126, %127 : vector<1x32xf32>
    %129 = arith.mulf %123, %123 : vector<1x32xf32>
    %130 = arith.subf %128, %129 : vector<1x32xf32>
    %131 = vector.broadcast %123 : vector<1x32xf32> to vector<8x32xf32>
    %132 = arith.subf %119, %131 : vector<8x32xf32>
    %cst_50 = arith.constant 9.99999974E-6 : f32
    %133 = vector.broadcast %cst_50 : f32 to vector<1x32xf32>
    %134 = arith.addf %130, %133 : vector<1x32xf32>
    %135 = math.rsqrt %134 : vector<1x32xf32>
    %136 = vector.broadcast %135 : vector<1x32xf32> to vector<8x32xf32>
    %137 = arith.mulf %132, %136 : vector<8x32xf32>
    %138 = vector.broadcast %29 : vector<1x32xf32> to vector<8x32xf32>
    %139 = arith.mulf %137, %138 : vector<8x32xf32>
    %140 = vector.broadcast %31 : vector<1x32xf32> to vector<8x32xf32>
    %141 = arith.addf %139, %140 : vector<8x32xf32>
    %c0_51 = arith.constant 0 : index
    %c0_52 = arith.constant 0 : index
    %c0_53 = arith.constant 0 : index
    %142 = vector.load %arg16[%c0_51, %c0_52, %c0_53] : memref<2x8x32xf32, #tpu.memory_space<vmem>>, vector<1x8x32xf32>
    %143 = vector.shape_cast %142 : vector<1x8x32xf32> to vector<8x32xf32>
    %144 = vector.shape_cast %141 : vector<8x32xf32> to vector<1x8x32xf32>
    tpu.vector_store %arg16[%c0_51, %c0_52, %c0_53], %144 {strides = array<i32>} : memref<2x8x32xf32, #tpu.memory_space<vmem>>, vector<1x8x32xf32>,
    %145 = vector.extract_strided_slice %23 {offsets = [1, 0, 0], sizes = [1, 8, 32], strides = [1, 1, 1]} : vector<2x8x96xf32> to vector<1x8x32xf32>
    %146 = vector.shape_cast %145 : vector<1x8x32xf32> to vector<8x32xf32>
    %147 = vector.extract_strided_slice %23 {offsets = [1, 0, 32], sizes = [1, 8, 32], strides = [1, 1, 1]} : vector<2x8x96xf32> to vector<1x8x32xf32>
    %148 = vector.shape_cast %147 : vector<1x8x32xf32> to vector<8x32xf32>
    %149 = vector.extract_strided_slice %23 {offsets = [1, 0, 64], sizes = [1, 8, 32], strides = [1, 1, 1]} : vector<2x8x96xf32> to vector<1x8x32xf32>
    %150 = vector.shape_cast %149 : vector<1x8x32xf32> to vector<8x32xf32>
    %cst_54 = arith.constant 0.000000e+00 : f32
    %151 = vector.broadcast %cst_54 : f32 to vector<8x32xf32>
    %152 = vector.extract_strided_slice %146 {offsets = [0, 0], sizes = [8, 8], strides = [1, 1]} : vector<8x32xf32> to vector<8x8xf32>
    %153 = vector.extract_strided_slice %148 {offsets = [0, 0], sizes = [8, 8], strides = [1, 1]} : vector<8x32xf32> to vector<8x8xf32>
    %cst_55 = arith.constant dense<0.000000e+00> : vector<8x8xf32>
    %154 = tpu.matmul %152, %153, %cst_55 {dimension_numbers = #tpu.dot_dimension_numbers<[1], [1], [0], [0], [0, 0, 1, 0], [], []>} : vector<8x8xf32>, vector<8x8xf32>, vector<8x8xf32> -> vector<8x8xf32>
    %cst_56 = arith.constant 0.353553385 : f32
    %155 = vector.broadcast %cst_56 : f32 to vector<8x8xf32>
    %156 = arith.mulf %154, %155 : vector<8x8xf32>
    %cst_57 = arith.constant dense<0xFF800000> : vector<8xf32>
    %157 = vector.multi_reduction <maximumf>, %156, %cst_57 [1] : vector<8x8xf32> to vector<8xf32>
    %158 = vector.shape_cast %157 : vector<8xf32> to vector<8x1xf32>
    %159 = vector.broadcast %158 : vector<8x1xf32> to vector<8x8xf32>
    %160 = arith.subf %156, %159 : vector<8x8xf32>
    %161 = math.exp %160 : vector<8x8xf32>
    %cst_58 = arith.constant dense<0.000000e+00> : vector<8xf32>
    %162 = vector.multi_reduction <add>, %161, %cst_58 [1] : vector<8x8xf32> to vector<8xf32>
    %163 = vector.shape_cast %162 : vector<8xf32> to vector<8x1xf32>
    %164 = vector.broadcast %163 : vector<8x1xf32> to vector<8x8xf32>
    %165 = arith.divf %161, %164 : vector<8x8xf32>
    %166 = vector.extract_strided_slice %150 {offsets = [0, 0], sizes = [8, 8], strides = [1, 1]} : vector<8x32xf32> to vector<8x8xf32>
    %cst_59 = arith.constant dense<0.000000e+00> : vector<8x8xf32>
    %167 = tpu.matmul %165, %166, %cst_59 {dimension_numbers = #tpu.dot_dimension_numbers<[1], [0], [0], [1], [0, 0, 1, 1], [], []>} : vector<8x8xf32>, vector<8x8xf32>, vector<8x8xf32> -> vector<8x8xf32>
    %168 = vector.extract_strided_slice %25 {offsets = [0, 0], sizes = [8, 32], strides = [1, 1]} : vector<32x32xf32> to vector<8x32xf32>
    %cst_60 = arith.constant dense<0.000000e+00> : vector<8x32xf32>
    %169 = tpu.matmul %167, %168, %cst_60 {dimension_numbers = #tpu.dot_dimension_numbers<[1], [0], [0], [1], [0, 0, 1, 1], [], []>} : vector<8x8xf32>, vector<8x32xf32>, vector<8x32xf32> -> vector<8x32xf32>
    %170 = arith.addf %151, %169 : vector<8x32xf32>
    %171 = vector.extract_strided_slice %146 {offsets = [0, 8], sizes = [8, 8], strides = [1, 1]} : vector<8x32xf32> to vector<8x8xf32>
    %172 = vector.extract_strided_slice %148 {offsets = [0, 8], sizes = [8, 8], strides = [1, 1]} : vector<8x32xf32> to vector<8x8xf32>
    %cst_61 = arith.constant dense<0.000000e+00> : vector<8x8xf32>
    %173 = tpu.matmul %171, %172, %cst_61 {dimension_numbers = #tpu.dot_dimension_numbers<[1], [1], [0], [0], [0, 0, 1, 0], [], []>} : vector<8x8xf32>, vector<8x8xf32>, vector<8x8xf32> -> vector<8x8xf32>
    %cst_62 = arith.constant 0.353553385 : f32
    %174 = vector.broadcast %cst_62 : f32 to vector<8x8xf32>
    %175 = arith.mulf %173, %174 : vector<8x8xf32>
    %cst_63 = arith.constant dense<0xFF800000> : vector<8xf32>
    %176 = vector.multi_reduction <maximumf>, %175, %cst_63 [1] : vector<8x8xf32> to vector<8xf32>
    %177 = vector.shape_cast %176 : vector<8xf32> to vector<8x1xf32>
    %178 = vector.broadcast %177 : vector<8x1xf32> to vector<8x8xf32>
    %179 = arith.subf %175, %178 : vector<8x8xf32>
    %180 = math.exp %179 : vector<8x8xf32>
    %cst_64 = arith.constant dense<0.000000e+00> : vector<8xf32>
    %181 = vector.multi_reduction <add>, %180, %cst_64 [1] : vector<8x8xf32> to vector<8xf32>
    %182 = vector.shape_cast %181 : vector<8xf32> to vector<8x1xf32>
    %183 = vector.broadcast %182 : vector<8x1xf32> to vector<8x8xf32>
    %184 = arith.divf %180, %183 : vector<8x8xf32>
    %185 = vector.extract_strided_slice %150 {offsets = [0, 8], sizes = [8, 8], strides = [1, 1]} : vector<8x32xf32> to vector<8x8xf32>
    %cst_65 = arith.constant dense<0.000000e+00> : vector<8x8xf32>
    %186 = tpu.matmul %184, %185, %cst_65 {dimension_numbers = #tpu.dot_dimension_numbers<[1], [0], [0], [1], [0, 0, 1, 1], [], []>} : vector<8x8xf32>, vector<8x8xf32>, vector<8x8xf32> -> vector<8x8xf32>
    %187 = vector.extract_strided_slice %25 {offsets = [8, 0], sizes = [8, 32], strides = [1, 1]} : vector<32x32xf32> to vector<8x32xf32>
    %cst_66 = arith.constant dense<0.000000e+00> : vector<8x32xf32>
    %188 = tpu.matmul %186, %187, %cst_66 {dimension_numbers = #tpu.dot_dimension_numbers<[1], [0], [0], [1], [0, 0, 1, 1], [], []>} : vector<8x8xf32>, vector<8x32xf32>, vector<8x32xf32> -> vector<8x32xf32>
    %189 = arith.addf %170, %188 : vector<8x32xf32>
    %190 = vector.extract_strided_slice %146 {offsets = [0, 16], sizes = [8, 8], strides = [1, 1]} : vector<8x32xf32> to vector<8x8xf32>
    %191 = vector.extract_strided_slice %148 {offsets = [0, 16], sizes = [8, 8], strides = [1, 1]} : vector<8x32xf32> to vector<8x8xf32>
    %cst_67 = arith.constant dense<0.000000e+00> : vector<8x8xf32>
    %192 = tpu.matmul %190, %191, %cst_67 {dimension_numbers = #tpu.dot_dimension_numbers<[1], [1], [0], [0], [0, 0, 1, 0], [], []>} : vector<8x8xf32>, vector<8x8xf32>, vector<8x8xf32> -> vector<8x8xf32>
    %cst_68 = arith.constant 0.353553385 : f32
    %193 = vector.broadcast %cst_68 : f32 to vector<8x8xf32>
    %194 = arith.mulf %192, %193 : vector<8x8xf32>
    %cst_69 = arith.constant dense<0xFF800000> : vector<8xf32>
    %195 = vector.multi_reduction <maximumf>, %194, %cst_69 [1] : vector<8x8xf32> to vector<8xf32>
    %196 = vector.shape_cast %195 : vector<8xf32> to vector<8x1xf32>
    %197 = vector.broadcast %196 : vector<8x1xf32> to vector<8x8xf32>
    %198 = arith.subf %194, %197 : vector<8x8xf32>
    %199 = math.exp %198 : vector<8x8xf32>
    %cst_70 = arith.constant dense<0.000000e+00> : vector<8xf32>
    %200 = vector.multi_reduction <add>, %199, %cst_70 [1] : vector<8x8xf32> to vector<8xf32>
    %201 = vector.shape_cast %200 : vector<8xf32> to vector<8x1xf32>
    %202 = vector.broadcast %201 : vector<8x1xf32> to vector<8x8xf32>
    %203 = arith.divf %199, %202 : vector<8x8xf32>
    %204 = vector.extract_strided_slice %150 {offsets = [0, 16], sizes = [8, 8], strides = [1, 1]} : vector<8x32xf32> to vector<8x8xf32>
    %cst_71 = arith.constant dense<0.000000e+00> : vector<8x8xf32>
    %205 = tpu.matmul %203, %204, %cst_71 {dimension_numbers = #tpu.dot_dimension_numbers<[1], [0], [0], [1], [0, 0, 1, 1], [], []>} : vector<8x8xf32>, vector<8x8xf32>, vector<8x8xf32> -> vector<8x8xf32>
    %206 = vector.extract_strided_slice %25 {offsets = [16, 0], sizes = [8, 32], strides = [1, 1]} : vector<32x32xf32> to vector<8x32xf32>
    %cst_72 = arith.constant dense<0.000000e+00> : vector<8x32xf32>
    %207 = tpu.matmul %205, %206, %cst_72 {dimension_numbers = #tpu.dot_dimension_numbers<[1], [0], [0], [1], [0, 0, 1, 1], [], []>} : vector<8x8xf32>, vector<8x32xf32>, vector<8x32xf32> -> vector<8x32xf32>
    %208 = arith.addf %189, %207 : vector<8x32xf32>
    %209 = vector.extract_strided_slice %146 {offsets = [0, 24], sizes = [8, 8], strides = [1, 1]} : vector<8x32xf32> to vector<8x8xf32>
    %210 = vector.extract_strided_slice %148 {offsets = [0, 24], sizes = [8, 8], strides = [1, 1]} : vector<8x32xf32> to vector<8x8xf32>
    %cst_73 = arith.constant dense<0.000000e+00> : vector<8x8xf32>
    %211 = tpu.matmul %209, %210, %cst_73 {dimension_numbers = #tpu.dot_dimension_numbers<[1], [1], [0], [0], [0, 0, 1, 0], [], []>} : vector<8x8xf32>, vector<8x8xf32>, vector<8x8xf32> -> vector<8x8xf32>
    %cst_74 = arith.constant 0.353553385 : f32
    %212 = vector.broadcast %cst_74 : f32 to vector<8x8xf32>
    %213 = arith.mulf %211, %212 : vector<8x8xf32>
    %cst_75 = arith.constant dense<0xFF800000> : vector<8xf32>
    %214 = vector.multi_reduction <maximumf>, %213, %cst_75 [1] : vector<8x8xf32> to vector<8xf32>
    %215 = vector.shape_cast %214 : vector<8xf32> to vector<8x1xf32>
    %216 = vector.broadcast %215 : vector<8x1xf32> to vector<8x8xf32>
    %217 = arith.subf %213, %216 : vector<8x8xf32>
    %218 = math.exp %217 : vector<8x8xf32>
    %cst_76 = arith.constant dense<0.000000e+00> : vector<8xf32>
    %219 = vector.multi_reduction <add>, %218, %cst_76 [1] : vector<8x8xf32> to vector<8xf32>
    %220 = vector.shape_cast %219 : vector<8xf32> to vector<8x1xf32>
    %221 = vector.broadcast %220 : vector<8x1xf32> to vector<8x8xf32>
    %222 = arith.divf %218, %221 : vector<8x8xf32>
    %223 = vector.extract_strided_slice %150 {offsets = [0, 24], sizes = [8, 8], strides = [1, 1]} : vector<8x32xf32> to vector<8x8xf32>
    %cst_77 = arith.constant dense<0.000000e+00> : vector<8x8xf32>
    %224 = tpu.matmul %222, %223, %cst_77 {dimension_numbers = #tpu.dot_dimension_numbers<[1], [0], [0], [1], [0, 0, 1, 1], [], []>} : vector<8x8xf32>, vector<8x8xf32>, vector<8x8xf32> -> vector<8x8xf32>
    %225 = vector.extract_strided_slice %25 {offsets = [24, 0], sizes = [8, 32], strides = [1, 1]} : vector<32x32xf32> to vector<8x32xf32>
    %cst_78 = arith.constant dense<0.000000e+00> : vector<8x32xf32>
    %226 = tpu.matmul %224, %225, %cst_78 {dimension_numbers = #tpu.dot_dimension_numbers<[1], [0], [0], [1], [0, 0, 1, 1], [], []>} : vector<8x8xf32>, vector<8x32xf32>, vector<8x32xf32> -> vector<8x32xf32>
    %227 = arith.addf %208, %226 : vector<8x32xf32>
    %228 = vector.broadcast %27 : vector<1x32xf32> to vector<8x32xf32>
    %229 = arith.addf %227, %228 : vector<8x32xf32>
    %230 = vector.extract_strided_slice %18 {offsets = [1, 0, 0], sizes = [1, 8, 32], strides = [1, 1, 1]} : vector<2x8x32xf32> to vector<1x8x32xf32>
    %231 = vector.shape_cast %230 : vector<1x8x32xf32> to vector<8x32xf32>
    %232 = arith.addf %231, %229 : vector<8x32xf32>
    %cst_79 = arith.constant dense<0.000000e+00> : vector<32xf32>
    %233 = vector.multi_reduction <add>, %232, %cst_79 [0] : vector<8x32xf32> to vector<32xf32>
    %234 = vector.shape_cast %233 : vector<32xf32> to vector<1x32xf32>
    %cst_80 = arith.constant 8.000000e+00 : f32
    %235 = vector.broadcast %cst_80 : f32 to vector<1x32xf32>
    %236 = arith.divf %234, %235 : vector<1x32xf32>
    %237 = arith.mulf %232, %232 : vector<8x32xf32>
    %cst_81 = arith.constant dense<0.000000e+00> : vector<32xf32>
    %238 = vector.multi_reduction <add>, %237, %cst_81 [0] : vector<8x32xf32> to vector<32xf32>
    %239 = vector.shape_cast %238 : vector<32xf32> to vector<1x32xf32>
    %cst_82 = arith.constant 8.000000e+00 : f32
    %240 = vector.broadcast %cst_82 : f32 to vector<1x32xf32>
    %241 = arith.divf %239, %240 : vector<1x32xf32>
    %242 = arith.mulf %236, %236 : vector<1x32xf32>
    %243 = arith.subf %241, %242 : vector<1x32xf32>
    %244 = vector.broadcast %236 : vector<1x32xf32> to vector<8x32xf32>
    %245 = arith.subf %232, %244 : vector<8x32xf32>
    %cst_83 = arith.constant 9.99999974E-6 : f32
    %246 = vector.broadcast %cst_83 : f32 to vector<1x32xf32>
    %247 = arith.addf %243, %246 : vector<1x32xf32>
    %248 = math.rsqrt %247 : vector<1x32xf32>
    %249 = vector.broadcast %248 : vector<1x32xf32> to vector<8x32xf32>
    %250 = arith.mulf %245, %249 : vector<8x32xf32>
    %251 = vector.broadcast %29 : vector<1x32xf32> to vector<8x32xf32>
    %252 = arith.mulf %250, %251 : vector<8x32xf32>
    %253 = vector.broadcast %31 : vector<1x32xf32> to vector<8x32xf32>
    %254 = arith.addf %252, %253 : vector<8x32xf32>
    %c1 = arith.constant 1 : index
    %c0_84 = arith.constant 0 : index
    %c0_85 = arith.constant 0 : index
    %255 = vector.load %arg16[%c1, %c0_84, %c0_85] : memref<2x8x32xf32, #tpu.memory_space<vmem>>, vector<1x8x32xf32>
    %256 = vector.shape_cast %255 : vector<1x8x32xf32> to vector<8x32xf32>
    %257 = vector.shape_cast %254 : vector<8x32xf32> to vector<1x8x32xf32>
    tpu.vector_store %arg16[%c1, %c0_84, %c0_85], %257 {strides = array<i32>} : memref<2x8x32xf32, #tpu.memory_space<vmem>>, vector<1x8x32xf32>,
    %c0_86 = arith.constant 0 : index
    %c0_87 = arith.constant 0 : index
    %c0_88 = arith.constant 0 : index
    %258 = vector.load %arg16[%c0_86, %c0_87, %c0_88] : memref<2x8x32xf32, #tpu.memory_space<vmem>>, vector<2x8x32xf32>
    %c0_89 = arith.constant 0 : index
    %c0_90 = arith.constant 0 : index
    %c0_91 = arith.constant 0 : index
    %259 = vector.load %arg9[%c0_89, %c0_90, %c0_91] : memref<2x32x64xf32, #tpu.memory_space<vmem>>, vector<1x32x64xf32>
    %260 = vector.shape_cast %259 : vector<1x32x64xf32> to vector<32x64xf32>
    %261 = vector.shape_cast %258 : vector<2x8x32xf32> to vector<16x32xf32>
    %cst_92 = arith.constant dense<0.000000e+00> : vector<16x64xf32>
    %262 = tpu.matmul %261, %260, %cst_92 {dimension_numbers = #tpu.dot_dimension_numbers<[1], [0], [0], [1], [0, 0, 1, 1], [], []>} : vector<16x32xf32>, vector<32x64xf32>, vector<16x64xf32> -> vector<16x64xf32>
    %263 = vector.shape_cast %262 : vector<16x64xf32> to vector<2x8x64xf32>
    %c0_93 = arith.constant 0 : index
    %c0_94 = arith.constant 0 : index
    %c0_95 = arith.constant 0 : index
    %264 = vector.load %arg10[%c0_93, %c0_94, %c0_95] : memref<2x1x64xf32, #tpu.memory_space<vmem>>, vector<1x1x64xf32>
    %265 = vector.shape_cast %264 : vector<1x1x64xf32> to vector<1x64xf32>
    %266 = vector.shape_cast %265 : vector<1x64xf32> to vector<1x1x64xf32>
    %267 = vector.broadcast %266 : vector<1x1x64xf32> to vector<2x8x64xf32>
    %268 = arith.addf %263, %267 : vector<2x8x64xf32>
    %cst_96 = arith.constant 0.000000e+00 : f32
    %269 = vector.broadcast %cst_96 : f32 to vector<2x8x64xf32>
    %270 = arith.maximumf %268, %269 : vector<2x8x64xf32>
    %c0_97 = arith.constant 0 : index
    %c0_98 = arith.constant 0 : index
    %c0_99 = arith.constant 0 : index
    %271 = vector.load %arg11[%c0_97, %c0_98, %c0_99] : memref<2x64x32xf32, #tpu.memory_space<vmem>>, vector<1x64x32xf32>
    %272 = vector.shape_cast %271 : vector<1x64x32xf32> to vector<64x32xf32>
    %273 = vector.shape_cast %270 : vector<2x8x64xf32> to vector<16x64xf32>
    %cst_100 = arith.constant dense<0.000000e+00> : vector<16x32xf32>
    %274 = tpu.matmul %273, %272, %cst_100 {dimension_numbers = #tpu.dot_dimension_numbers<[1], [0], [0], [1], [0, 0, 1, 1], [], []>} : vector<16x64xf32>, vector<64x32xf32>, vector<16x32xf32> -> vector<16x32xf32>
    %275 = vector.shape_cast %274 : vector<16x32xf32> to vector<2x8x32xf32>
    %c0_101 = arith.constant 0 : index
    %c0_102 = arith.constant 0 : index
    %c0_103 = arith.constant 0 : index
    %276 = vector.load %arg12[%c0_101, %c0_102, %c0_103] : memref<2x1x32xf32, #tpu.memory_space<vmem>>, vector<1x1x32xf32>
    %277 = vector.shape_cast %276 : vector<1x1x32xf32> to vector<1x32xf32>
    %278 = vector.shape_cast %277 : vector<1x32xf32> to vector<1x1x32xf32>
    %279 = vector.broadcast %278 : vector<1x1x32xf32> to vector<2x8x32xf32>
    %280 = arith.addf %275, %279 : vector<2x8x32xf32>
    %281 = arith.addf %258, %280 : vector<2x8x32xf32>
    %c0_104 = arith.constant 0 : index
    %c0_105 = arith.constant 0 : index
    %c0_106 = arith.constant 0 : index
    %282 = vector.load %arg13[%c0_104, %c0_105, %c0_106] : memref<2x1x32xf32, #tpu.memory_space<vmem>>, vector<1x1x32xf32>
    %283 = vector.shape_cast %282 : vector<1x1x32xf32> to vector<1x32xf32>
    %c0_107 = arith.constant 0 : index
    %c0_108 = arith.constant 0 : index
    %c0_109 = arith.constant 0 : index
    %284 = vector.load %arg14[%c0_107, %c0_108, %c0_109] : memref<2x1x32xf32, #tpu.memory_space<vmem>>, vector<1x1x32xf32>
    %285 = vector.shape_cast %284 : vector<1x1x32xf32> to vector<1x32xf32>
    %cst_110 = arith.constant dense<0.000000e+00> : vector<2x32xf32>
    %286 = vector.multi_reduction <add>, %281, %cst_110 [1] : vector<2x8x32xf32> to vector<2x32xf32>
    %287 = vector.shape_cast %286 : vector<2x32xf32> to vector<2x1x32xf32>
    %cst_111 = arith.constant 8.000000e+00 : f32
    %288 = vector.broadcast %cst_111 : f32 to vector<2x1x32xf32>
    %289 = arith.divf %287, %288 : vector<2x1x32xf32>
    %290 = arith.mulf %281, %281 : vector<2x8x32xf32>
    %cst_112 = arith.constant dense<0.000000e+00> : vector<2x32xf32>
    %291 = vector.multi_reduction <add>, %290, %cst_112 [1] : vector<2x8x32xf32> to vector<2x32xf32>
    %292 = vector.shape_cast %291 : vector<2x32xf32> to vector<2x1x32xf32>
    %cst_113 = arith.constant 8.000000e+00 : f32
    %293 = vector.broadcast %cst_113 : f32 to vector<2x1x32xf32>
    %294 = arith.divf %292, %293 : vector<2x1x32xf32>
    %295 = arith.mulf %289, %289 : vector<2x1x32xf32>
    %296 = arith.subf %294, %295 : vector<2x1x32xf32>
    %297 = vector.broadcast %289 : vector<2x1x32xf32> to vector<2x8x32xf32>
    %298 = arith.subf %281, %297 : vector<2x8x32xf32>
    %cst_114 = arith.constant 9.99999974E-6 : f32
    %299 = vector.broadcast %cst_114 : f32 to vector<2x1x32xf32>
    %300 = arith.addf %296, %299 : vector<2x1x32xf32>
    %301 = math.rsqrt %300 : vector<2x1x32xf32>
    %302 = vector.broadcast %301 : vector<2x1x32xf32> to vector<2x8x32xf32>
    %303 = arith.mulf %298, %302 : vector<2x8x32xf32>
    %304 = vector.shape_cast %283 : vector<1x32xf32> to vector<1x1x32xf32>
    %305 = vector.broadcast %304 : vector<1x1x32xf32> to vector<2x8x32xf32>
    %306 = arith.mulf %303, %305 : vector<2x8x32xf32>
    %307 = vector.shape_cast %285 : vector<1x32xf32> to vector<1x1x32xf32>
    %308 = vector.broadcast %307 : vector<1x1x32xf32> to vector<2x8x32xf32>
    %309 = arith.addf %306, %308 : vector<2x8x32xf32>
    %c1_115 = arith.constant 1 : index
    %c0_116 = arith.constant 0 : index
    %c0_117 = arith.constant 0 : index
    %310 = vector.load %arg4[%c1_115, %c0_116, %c0_117] : memref<2x32x96xf32, #tpu.memory_space<vmem>>, vector<1x32x96xf32>
    %311 = vector.shape_cast %310 : vector<1x32x96xf32> to vector<32x96xf32>
    %312 = vector.shape_cast %309 : vector<2x8x32xf32> to vector<16x32xf32>
    %cst_118 = arith.constant dense<0.000000e+00> : vector<16x96xf32>
    %313 = tpu.matmul %312, %311, %cst_118 {dimension_numbers = #tpu.dot_dimension_numbers<[1], [0], [0], [1], [0, 0, 1, 1], [], []>} : vector<16x32xf32>, vector<32x96xf32>, vector<16x96xf32> -> vector<16x96xf32>
    %314 = vector.shape_cast %313 : vector<16x96xf32> to vector<2x8x96xf32>
    %c1_119 = arith.constant 1 : index
    %c0_120 = arith.constant 0 : index
    %c0_121 = arith.constant 0 : index
    %315 = vector.load %arg5[%c1_119, %c0_120, %c0_121] : memref<2x32x32xf32, #tpu.memory_space<vmem>>, vector<1x32x32xf32>
    %316 = vector.shape_cast %315 : vector<1x32x32xf32> to vector<32x32xf32>
    %c1_122 = arith.constant 1 : index
    %c0_123 = arith.constant 0 : index
    %c0_124 = arith.constant 0 : index
    %317 = vector.load %arg6[%c1_122, %c0_123, %c0_124] : memref<2x1x32xf32, #tpu.memory_space<vmem>>, vector<1x1x32xf32>
    %318 = vector.shape_cast %317 : vector<1x1x32xf32> to vector<1x32xf32>
    %c1_125 = arith.constant 1 : index
    %c0_126 = arith.constant 0 : index
    %c0_127 = arith.constant 0 : index
    %319 = vector.load %arg7[%c1_125, %c0_126, %c0_127] : memref<2x1x32xf32, #tpu.memory_space<vmem>>, vector<1x1x32xf32>
    %320 = vector.shape_cast %319 : vector<1x1x32xf32> to vector<1x32xf32>
    %c1_128 = arith.constant 1 : index
    %c0_129 = arith.constant 0 : index
    %c0_130 = arith.constant 0 : index
    %321 = vector.load %arg8[%c1_128, %c0_129, %c0_130] : memref<2x1x32xf32, #tpu.memory_space<vmem>>, vector<1x1x32xf32>
    %322 = vector.shape_cast %321 : vector<1x1x32xf32> to vector<1x32xf32>
    %323 = vector.extract_strided_slice %314 {offsets = [0, 0, 0], sizes = [1, 8, 32], strides = [1, 1, 1]} : vector<2x8x96xf32> to vector<1x8x32xf32>
    %324 = vector.shape_cast %323 : vector<1x8x32xf32> to vector<8x32xf32>
    %325 = vector.extract_strided_slice %314 {offsets = [0, 0, 32], sizes = [1, 8, 32], strides = [1, 1, 1]} : vector<2x8x96xf32> to vector<1x8x32xf32>
    %326 = vector.shape_cast %325 : vector<1x8x32xf32> to vector<8x32xf32>
    %327 = vector.extract_strided_slice %314 {offsets = [0, 0, 64], sizes = [1, 8, 32], strides = [1, 1, 1]} : vector<2x8x96xf32> to vector<1x8x32xf32>
    %328 = vector.shape_cast %327 : vector<1x8x32xf32> to vector<8x32xf32>
    %cst_131 = arith.constant 0.000000e+00 : f32
    %329 = vector.broadcast %cst_131 : f32 to vector<8x32xf32>
    %330 = vector.extract_strided_slice %324 {offsets = [0, 0], sizes = [8, 8], strides = [1, 1]} : vector<8x32xf32> to vector<8x8xf32>
    %331 = vector.extract_strided_slice %326 {offsets = [0, 0], sizes = [8, 8], strides = [1, 1]} : vector<8x32xf32> to vector<8x8xf32>
    %cst_132 = arith.constant dense<0.000000e+00> : vector<8x8xf32>
    %332 = tpu.matmul %330, %331, %cst_132 {dimension_numbers = #tpu.dot_dimension_numbers<[1], [1], [0], [0], [0, 0, 1, 0], [], []>} : vector<8x8xf32>, vector<8x8xf32>, vector<8x8xf32> -> vector<8x8xf32>
    %cst_133 = arith.constant 0.353553385 : f32
    %333 = vector.broadcast %cst_133 : f32 to vector<8x8xf32>
    %334 = arith.mulf %332, %333 : vector<8x8xf32>
    %cst_134 = arith.constant dense<0xFF800000> : vector<8xf32>
    %335 = vector.multi_reduction <maximumf>, %334, %cst_134 [1] : vector<8x8xf32> to vector<8xf32>
    %336 = vector.shape_cast %335 : vector<8xf32> to vector<8x1xf32>
    %337 = vector.broadcast %336 : vector<8x1xf32> to vector<8x8xf32>
    %338 = arith.subf %334, %337 : vector<8x8xf32>
    %339 = math.exp %338 : vector<8x8xf32>
    %cst_135 = arith.constant dense<0.000000e+00> : vector<8xf32>
    %340 = vector.multi_reduction <add>, %339, %cst_135 [1] : vector<8x8xf32> to vector<8xf32>
    %341 = vector.shape_cast %340 : vector<8xf32> to vector<8x1xf32>
    %342 = vector.broadcast %341 : vector<8x1xf32> to vector<8x8xf32>
    %343 = arith.divf %339, %342 : vector<8x8xf32>
    %344 = vector.extract_strided_slice %328 {offsets = [0, 0], sizes = [8, 8], strides = [1, 1]} : vector<8x32xf32> to vector<8x8xf32>
    %cst_136 = arith.constant dense<0.000000e+00> : vector<8x8xf32>
    %345 = tpu.matmul %343, %344, %cst_136 {dimension_numbers = #tpu.dot_dimension_numbers<[1], [0], [0], [1], [0, 0, 1, 1], [], []>} : vector<8x8xf32>, vector<8x8xf32>, vector<8x8xf32> -> vector<8x8xf32>
    %346 = vector.extract_strided_slice %316 {offsets = [0, 0], sizes = [8, 32], strides = [1, 1]} : vector<32x32xf32> to vector<8x32xf32>
    %cst_137 = arith.constant dense<0.000000e+00> : vector<8x32xf32>
    %347 = tpu.matmul %345, %346, %cst_137 {dimension_numbers = #tpu.dot_dimension_numbers<[1], [0], [0], [1], [0, 0, 1, 1], [], []>} : vector<8x8xf32>, vector<8x32xf32>, vector<8x32xf32> -> vector<8x32xf32>
    %348 = arith.addf %329, %347 : vector<8x32xf32>
    %349 = vector.extract_strided_slice %324 {offsets = [0, 8], sizes = [8, 8], strides = [1, 1]} : vector<8x32xf32> to vector<8x8xf32>
    %350 = vector.extract_strided_slice %326 {offsets = [0, 8], sizes = [8, 8], strides = [1, 1]} : vector<8x32xf32> to vector<8x8xf32>
    %cst_138 = arith.constant dense<0.000000e+00> : vector<8x8xf32>
    %351 = tpu.matmul %349, %350, %cst_138 {dimension_numbers = #tpu.dot_dimension_numbers<[1], [1], [0], [0], [0, 0, 1, 0], [], []>} : vector<8x8xf32>, vector<8x8xf32>, vector<8x8xf32> -> vector<8x8xf32>
    %cst_139 = arith.constant 0.353553385 : f32
    %352 = vector.broadcast %cst_139 : f32 to vector<8x8xf32>
    %353 = arith.mulf %351, %352 : vector<8x8xf32>
    %cst_140 = arith.constant dense<0xFF800000> : vector<8xf32>
    %354 = vector.multi_reduction <maximumf>, %353, %cst_140 [1] : vector<8x8xf32> to vector<8xf32>
    %355 = vector.shape_cast %354 : vector<8xf32> to vector<8x1xf32>
    %356 = vector.broadcast %355 : vector<8x1xf32> to vector<8x8xf32>
    %357 = arith.subf %353, %356 : vector<8x8xf32>
    %358 = math.exp %357 : vector<8x8xf32>
    %cst_141 = arith.constant dense<0.000000e+00> : vector<8xf32>
    %359 = vector.multi_reduction <add>, %358, %cst_141 [1] : vector<8x8xf32> to vector<8xf32>
    %360 = vector.shape_cast %359 : vector<8xf32> to vector<8x1xf32>
    %361 = vector.broadcast %360 : vector<8x1xf32> to vector<8x8xf32>
    %362 = arith.divf %358, %361 : vector<8x8xf32>
    %363 = vector.extract_strided_slice %328 {offsets = [0, 8], sizes = [8, 8], strides = [1, 1]} : vector<8x32xf32> to vector<8x8xf32>
    %cst_142 = arith.constant dense<0.000000e+00> : vector<8x8xf32>
    %364 = tpu.matmul %362, %363, %cst_142 {dimension_numbers = #tpu.dot_dimension_numbers<[1], [0], [0], [1], [0, 0, 1, 1], [], []>} : vector<8x8xf32>, vector<8x8xf32>, vector<8x8xf32> -> vector<8x8xf32>
    %365 = vector.extract_strided_slice %316 {offsets = [8, 0], sizes = [8, 32], strides = [1, 1]} : vector<32x32xf32> to vector<8x32xf32>
    %cst_143 = arith.constant dense<0.000000e+00> : vector<8x32xf32>
    %366 = tpu.matmul %364, %365, %cst_143 {dimension_numbers = #tpu.dot_dimension_numbers<[1], [0], [0], [1], [0, 0, 1, 1], [], []>} : vector<8x8xf32>, vector<8x32xf32>, vector<8x32xf32> -> vector<8x32xf32>
    %367 = arith.addf %348, %366 : vector<8x32xf32>
    %368 = vector.extract_strided_slice %324 {offsets = [0, 16], sizes = [8, 8], strides = [1, 1]} : vector<8x32xf32> to vector<8x8xf32>
    %369 = vector.extract_strided_slice %326 {offsets = [0, 16], sizes = [8, 8], strides = [1, 1]} : vector<8x32xf32> to vector<8x8xf32>
    %cst_144 = arith.constant dense<0.000000e+00> : vector<8x8xf32>
    %370 = tpu.matmul %368, %369, %cst_144 {dimension_numbers = #tpu.dot_dimension_numbers<[1], [1], [0], [0], [0, 0, 1, 0], [], []>} : vector<8x8xf32>, vector<8x8xf32>, vector<8x8xf32> -> vector<8x8xf32>
    %cst_145 = arith.constant 0.353553385 : f32
    %371 = vector.broadcast %cst_145 : f32 to vector<8x8xf32>
    %372 = arith.mulf %370, %371 : vector<8x8xf32>
    %cst_146 = arith.constant dense<0xFF800000> : vector<8xf32>
    %373 = vector.multi_reduction <maximumf>, %372, %cst_146 [1] : vector<8x8xf32> to vector<8xf32>
    %374 = vector.shape_cast %373 : vector<8xf32> to vector<8x1xf32>
    %375 = vector.broadcast %374 : vector<8x1xf32> to vector<8x8xf32>
    %376 = arith.subf %372, %375 : vector<8x8xf32>
    %377 = math.exp %376 : vector<8x8xf32>
    %cst_147 = arith.constant dense<0.000000e+00> : vector<8xf32>
    %378 = vector.multi_reduction <add>, %377, %cst_147 [1] : vector<8x8xf32> to vector<8xf32>
    %379 = vector.shape_cast %378 : vector<8xf32> to vector<8x1xf32>
    %380 = vector.broadcast %379 : vector<8x1xf32> to vector<8x8xf32>
    %381 = arith.divf %377, %380 : vector<8x8xf32>
    %382 = vector.extract_strided_slice %328 {offsets = [0, 16], sizes = [8, 8], strides = [1, 1]} : vector<8x32xf32> to vector<8x8xf32>
    %cst_148 = arith.constant dense<0.000000e+00> : vector<8x8xf32>
    %383 = tpu.matmul %381, %382, %cst_148 {dimension_numbers = #tpu.dot_dimension_numbers<[1], [0], [0], [1], [0, 0, 1, 1], [], []>} : vector<8x8xf32>, vector<8x8xf32>, vector<8x8xf32> -> vector<8x8xf32>
    %384 = vector.extract_strided_slice %316 {offsets = [16, 0], sizes = [8, 32], strides = [1, 1]} : vector<32x32xf32> to vector<8x32xf32>
    %cst_149 = arith.constant dense<0.000000e+00> : vector<8x32xf32>
    %385 = tpu.matmul %383, %384, %cst_149 {dimension_numbers = #tpu.dot_dimension_numbers<[1], [0], [0], [1], [0, 0, 1, 1], [], []>} : vector<8x8xf32>, vector<8x32xf32>, vector<8x32xf32> -> vector<8x32xf32>
    %386 = arith.addf %367, %385 : vector<8x32xf32>
    %387 = vector.extract_strided_slice %324 {offsets = [0, 24], sizes = [8, 8], strides = [1, 1]} : vector<8x32xf32> to vector<8x8xf32>
    %388 = vector.extract_strided_slice %326 {offsets = [0, 24], sizes = [8, 8], strides = [1, 1]} : vector<8x32xf32> to vector<8x8xf32>
    %cst_150 = arith.constant dense<0.000000e+00> : vector<8x8xf32>
    %389 = tpu.matmul %387, %388, %cst_150 {dimension_numbers = #tpu.dot_dimension_numbers<[1], [1], [0], [0], [0, 0, 1, 0], [], []>} : vector<8x8xf32>, vector<8x8xf32>, vector<8x8xf32> -> vector<8x8xf32>
    %cst_151 = arith.constant 0.353553385 : f32
    %390 = vector.broadcast %cst_151 : f32 to vector<8x8xf32>
    %391 = arith.mulf %389, %390 : vector<8x8xf32>
    %cst_152 = arith.constant dense<0xFF800000> : vector<8xf32>
    %392 = vector.multi_reduction <maximumf>, %391, %cst_152 [1] : vector<8x8xf32> to vector<8xf32>
    %393 = vector.shape_cast %392 : vector<8xf32> to vector<8x1xf32>
    %394 = vector.broadcast %393 : vector<8x1xf32> to vector<8x8xf32>
    %395 = arith.subf %391, %394 : vector<8x8xf32>
    %396 = math.exp %395 : vector<8x8xf32>
    %cst_153 = arith.constant dense<0.000000e+00> : vector<8xf32>
    %397 = vector.multi_reduction <add>, %396, %cst_153 [1] : vector<8x8xf32> to vector<8xf32>
    %398 = vector.shape_cast %397 : vector<8xf32> to vector<8x1xf32>
    %399 = vector.broadcast %398 : vector<8x1xf32> to vector<8x8xf32>
    %400 = arith.divf %396, %399 : vector<8x8xf32>
    %401 = vector.extract_strided_slice %328 {offsets = [0, 24], sizes = [8, 8], strides = [1, 1]} : vector<8x32xf32> to vector<8x8xf32>
    %cst_154 = arith.constant dense<0.000000e+00> : vector<8x8xf32>
    %402 = tpu.matmul %400, %401, %cst_154 {dimension_numbers = #tpu.dot_dimension_numbers<[1], [0], [0], [1], [0, 0, 1, 1], [], []>} : vector<8x8xf32>, vector<8x8xf32>, vector<8x8xf32> -> vector<8x8xf32>
    %403 = vector.extract_strided_slice %316 {offsets = [24, 0], sizes = [8, 32], strides = [1, 1]} : vector<32x32xf32> to vector<8x32xf32>
    %cst_155 = arith.constant dense<0.000000e+00> : vector<8x32xf32>
    %404 = tpu.matmul %402, %403, %cst_155 {dimension_numbers = #tpu.dot_dimension_numbers<[1], [0], [0], [1], [0, 0, 1, 1], [], []>} : vector<8x8xf32>, vector<8x32xf32>, vector<8x32xf32> -> vector<8x32xf32>
    %405 = arith.addf %386, %404 : vector<8x32xf32>
    %406 = vector.broadcast %318 : vector<1x32xf32> to vector<8x32xf32>
    %407 = arith.addf %405, %406 : vector<8x32xf32>
    %408 = vector.extract_strided_slice %309 {offsets = [0, 0, 0], sizes = [1, 8, 32], strides = [1, 1, 1]} : vector<2x8x32xf32> to vector<1x8x32xf32>
    %409 = vector.shape_cast %408 : vector<1x8x32xf32> to vector<8x32xf32>
    %410 = arith.addf %409, %407 : vector<8x32xf32>
    %cst_156 = arith.constant dense<0.000000e+00> : vector<32xf32>
    %411 = vector.multi_reduction <add>, %410, %cst_156 [0] : vector<8x32xf32> to vector<32xf32>
    %412 = vector.shape_cast %411 : vector<32xf32> to vector<1x32xf32>
    %cst_157 = arith.constant 8.000000e+00 : f32
    %413 = vector.broadcast %cst_157 : f32 to vector<1x32xf32>
    %414 = arith.divf %412, %413 : vector<1x32xf32>
    %415 = arith.mulf %410, %410 : vector<8x32xf32>
    %cst_158 = arith.constant dense<0.000000e+00> : vector<32xf32>
    %416 = vector.multi_reduction <add>, %415, %cst_158 [0] : vector<8x32xf32> to vector<32xf32>
    %417 = vector.shape_cast %416 : vector<32xf32> to vector<1x32xf32>
    %cst_159 = arith.constant 8.000000e+00 : f32
    %418 = vector.broadcast %cst_159 : f32 to vector<1x32xf32>
    %419 = arith.divf %417, %418 : vector<1x32xf32>
    %420 = arith.mulf %414, %414 : vector<1x32xf32>
    %421 = arith.subf %419, %420 : vector<1x32xf32>
    %422 = vector.broadcast %414 : vector<1x32xf32> to vector<8x32xf32>
    %423 = arith.subf %410, %422 : vector<8x32xf32>
    %cst_160 = arith.constant 9.99999974E-6 : f32
    %424 = vector.broadcast %cst_160 : f32 to vector<1x32xf32>
    %425 = arith.addf %421, %424 : vector<1x32xf32>
    %426 = math.rsqrt %425 : vector<1x32xf32>
    %427 = vector.broadcast %426 : vector<1x32xf32> to vector<8x32xf32>
    %428 = arith.mulf %423, %427 : vector<8x32xf32>
    %429 = vector.broadcast %320 : vector<1x32xf32> to vector<8x32xf32>
    %430 = arith.mulf %428, %429 : vector<8x32xf32>
    %431 = vector.broadcast %322 : vector<1x32xf32> to vector<8x32xf32>
    %432 = arith.addf %430, %431 : vector<8x32xf32>
    %c0_161 = arith.constant 0 : index
    %c0_162 = arith.constant 0 : index
    %c0_163 = arith.constant 0 : index
    %433 = vector.load %arg16[%c0_161, %c0_162, %c0_163] : memref<2x8x32xf32, #tpu.memory_space<vmem>>, vector<1x8x32xf32>
    %434 = vector.shape_cast %433 : vector<1x8x32xf32> to vector<8x32xf32>
    %435 = vector.shape_cast %432 : vector<8x32xf32> to vector<1x8x32xf32>
    tpu.vector_store %arg16[%c0_161, %c0_162, %c0_163], %435 {strides = array<i32>} : memref<2x8x32xf32, #tpu.memory_space<vmem>>, vector<1x8x32xf32>,
    %436 = vector.extract_strided_slice %314 {offsets = [1, 0, 0], sizes = [1, 8, 32], strides = [1, 1, 1]} : vector<2x8x96xf32> to vector<1x8x32xf32>
    %437 = vector.shape_cast %436 : vector<1x8x32xf32> to vector<8x32xf32>
    %438 = vector.extract_strided_slice %314 {offsets = [1, 0, 32], sizes = [1, 8, 32], strides = [1, 1, 1]} : vector<2x8x96xf32> to vector<1x8x32xf32>
    %439 = vector.shape_cast %438 : vector<1x8x32xf32> to vector<8x32xf32>
    %440 = vector.extract_strided_slice %314 {offsets = [1, 0, 64], sizes = [1, 8, 32], strides = [1, 1, 1]} : vector<2x8x96xf32> to vector<1x8x32xf32>
    %441 = vector.shape_cast %440 : vector<1x8x32xf32> to vector<8x32xf32>
    %cst_164 = arith.constant 0.000000e+00 : f32
    %442 = vector.broadcast %cst_164 : f32 to vector<8x32xf32>
    %443 = vector.extract_strided_slice %437 {offsets = [0, 0], sizes = [8, 8], strides = [1, 1]} : vector<8x32xf32> to vector<8x8xf32>
    %444 = vector.extract_strided_slice %439 {offsets = [0, 0], sizes = [8, 8], strides = [1, 1]} : vector<8x32xf32> to vector<8x8xf32>
    %cst_165 = arith.constant dense<0.000000e+00> : vector<8x8xf32>
    %445 = tpu.matmul %443, %444, %cst_165 {dimension_numbers = #tpu.dot_dimension_numbers<[1], [1], [0], [0], [0, 0, 1, 0], [], []>} : vector<8x8xf32>, vector<8x8xf32>, vector<8x8xf32> -> vector<8x8xf32>
    %cst_166 = arith.constant 0.353553385 : f32
    %446 = vector.broadcast %cst_166 : f32 to vector<8x8xf32>
    %447 = arith.mulf %445, %446 : vector<8x8xf32>
    %cst_167 = arith.constant dense<0xFF800000> : vector<8xf32>
    %448 = vector.multi_reduction <maximumf>, %447, %cst_167 [1] : vector<8x8xf32> to vector<8xf32>
    %449 = vector.shape_cast %448 : vector<8xf32> to vector<8x1xf32>
    %450 = vector.broadcast %449 : vector<8x1xf32> to vector<8x8xf32>
    %451 = arith.subf %447, %450 : vector<8x8xf32>
    %452 = math.exp %451 : vector<8x8xf32>
    %cst_168 = arith.constant dense<0.000000e+00> : vector<8xf32>
    %453 = vector.multi_reduction <add>, %452, %cst_168 [1] : vector<8x8xf32> to vector<8xf32>
    %454 = vector.shape_cast %453 : vector<8xf32> to vector<8x1xf32>
    %455 = vector.broadcast %454 : vector<8x1xf32> to vector<8x8xf32>
    %456 = arith.divf %452, %455 : vector<8x8xf32>
    %457 = vector.extract_strided_slice %441 {offsets = [0, 0], sizes = [8, 8], strides = [1, 1]} : vector<8x32xf32> to vector<8x8xf32>
    %cst_169 = arith.constant dense<0.000000e+00> : vector<8x8xf32>
    %458 = tpu.matmul %456, %457, %cst_169 {dimension_numbers = #tpu.dot_dimension_numbers<[1], [0], [0], [1], [0, 0, 1, 1], [], []>} : vector<8x8xf32>, vector<8x8xf32>, vector<8x8xf32> -> vector<8x8xf32>
    %459 = vector.extract_strided_slice %316 {offsets = [0, 0], sizes = [8, 32], strides = [1, 1]} : vector<32x32xf32> to vector<8x32xf32>
    %cst_170 = arith.constant dense<0.000000e+00> : vector<8x32xf32>
    %460 = tpu.matmul %458, %459, %cst_170 {dimension_numbers = #tpu.dot_dimension_numbers<[1], [0], [0], [1], [0, 0, 1, 1], [], []>} : vector<8x8xf32>, vector<8x32xf32>, vector<8x32xf32> -> vector<8x32xf32>
    %461 = arith.addf %442, %460 : vector<8x32xf32>
    %462 = vector.extract_strided_slice %437 {offsets = [0, 8], sizes = [8, 8], strides = [1, 1]} : vector<8x32xf32> to vector<8x8xf32>
    %463 = vector.extract_strided_slice %439 {offsets = [0, 8], sizes = [8, 8], strides = [1, 1]} : vector<8x32xf32> to vector<8x8xf32>
    %cst_171 = arith.constant dense<0.000000e+00> : vector<8x8xf32>
    %464 = tpu.matmul %462, %463, %cst_171 {dimension_numbers = #tpu.dot_dimension_numbers<[1], [1], [0], [0], [0, 0, 1, 0], [], []>} : vector<8x8xf32>, vector<8x8xf32>, vector<8x8xf32> -> vector<8x8xf32>
    %cst_172 = arith.constant 0.353553385 : f32
    %465 = vector.broadcast %cst_172 : f32 to vector<8x8xf32>
    %466 = arith.mulf %464, %465 : vector<8x8xf32>
    %cst_173 = arith.constant dense<0xFF800000> : vector<8xf32>
    %467 = vector.multi_reduction <maximumf>, %466, %cst_173 [1] : vector<8x8xf32> to vector<8xf32>
    %468 = vector.shape_cast %467 : vector<8xf32> to vector<8x1xf32>
    %469 = vector.broadcast %468 : vector<8x1xf32> to vector<8x8xf32>
    %470 = arith.subf %466, %469 : vector<8x8xf32>
    %471 = math.exp %470 : vector<8x8xf32>
    %cst_174 = arith.constant dense<0.000000e+00> : vector<8xf32>
    %472 = vector.multi_reduction <add>, %471, %cst_174 [1] : vector<8x8xf32> to vector<8xf32>
    %473 = vector.shape_cast %472 : vector<8xf32> to vector<8x1xf32>
    %474 = vector.broadcast %473 : vector<8x1xf32> to vector<8x8xf32>
    %475 = arith.divf %471, %474 : vector<8x8xf32>
    %476 = vector.extract_strided_slice %441 {offsets = [0, 8], sizes = [8, 8], strides = [1, 1]} : vector<8x32xf32> to vector<8x8xf32>
    %cst_175 = arith.constant dense<0.000000e+00> : vector<8x8xf32>
    %477 = tpu.matmul %475, %476, %cst_175 {dimension_numbers = #tpu.dot_dimension_numbers<[1], [0], [0], [1], [0, 0, 1, 1], [], []>} : vector<8x8xf32>, vector<8x8xf32>, vector<8x8xf32> -> vector<8x8xf32>
    %478 = vector.extract_strided_slice %316 {offsets = [8, 0], sizes = [8, 32], strides = [1, 1]} : vector<32x32xf32> to vector<8x32xf32>
    %cst_176 = arith.constant dense<0.000000e+00> : vector<8x32xf32>
    %479 = tpu.matmul %477, %478, %cst_176 {dimension_numbers = #tpu.dot_dimension_numbers<[1], [0], [0], [1], [0, 0, 1, 1], [], []>} : vector<8x8xf32>, vector<8x32xf32>, vector<8x32xf32> -> vector<8x32xf32>
    %480 = arith.addf %461, %479 : vector<8x32xf32>
    %481 = vector.extract_strided_slice %437 {offsets = [0, 16], sizes = [8, 8], strides = [1, 1]} : vector<8x32xf32> to vector<8x8xf32>
    %482 = vector.extract_strided_slice %439 {offsets = [0, 16], sizes = [8, 8], strides = [1, 1]} : vector<8x32xf32> to vector<8x8xf32>
    %cst_177 = arith.constant dense<0.000000e+00> : vector<8x8xf32>
    %483 = tpu.matmul %481, %482, %cst_177 {dimension_numbers = #tpu.dot_dimension_numbers<[1], [1], [0], [0], [0, 0, 1, 0], [], []>} : vector<8x8xf32>, vector<8x8xf32>, vector<8x8xf32> -> vector<8x8xf32>
    %cst_178 = arith.constant 0.353553385 : f32
    %484 = vector.broadcast %cst_178 : f32 to vector<8x8xf32>
    %485 = arith.mulf %483, %484 : vector<8x8xf32>
    %cst_179 = arith.constant dense<0xFF800000> : vector<8xf32>
    %486 = vector.multi_reduction <maximumf>, %485, %cst_179 [1] : vector<8x8xf32> to vector<8xf32>
    %487 = vector.shape_cast %486 : vector<8xf32> to vector<8x1xf32>
    %488 = vector.broadcast %487 : vector<8x1xf32> to vector<8x8xf32>
    %489 = arith.subf %485, %488 : vector<8x8xf32>
    %490 = math.exp %489 : vector<8x8xf32>
    %cst_180 = arith.constant dense<0.000000e+00> : vector<8xf32>
    %491 = vector.multi_reduction <add>, %490, %cst_180 [1] : vector<8x8xf32> to vector<8xf32>
    %492 = vector.shape_cast %491 : vector<8xf32> to vector<8x1xf32>
    %493 = vector.broadcast %492 : vector<8x1xf32> to vector<8x8xf32>
    %494 = arith.divf %490, %493 : vector<8x8xf32>
    %495 = vector.extract_strided_slice %441 {offsets = [0, 16], sizes = [8, 8], strides = [1, 1]} : vector<8x32xf32> to vector<8x8xf32>
    %cst_181 = arith.constant dense<0.000000e+00> : vector<8x8xf32>
    %496 = tpu.matmul %494, %495, %cst_181 {dimension_numbers = #tpu.dot_dimension_numbers<[1], [0], [0], [1], [0, 0, 1, 1], [], []>} : vector<8x8xf32>, vector<8x8xf32>, vector<8x8xf32> -> vector<8x8xf32>
    %497 = vector.extract_strided_slice %316 {offsets = [16, 0], sizes = [8, 32], strides = [1, 1]} : vector<32x32xf32> to vector<8x32xf32>
    %cst_182 = arith.constant dense<0.000000e+00> : vector<8x32xf32>
    %498 = tpu.matmul %496, %497, %cst_182 {dimension_numbers = #tpu.dot_dimension_numbers<[1], [0], [0], [1], [0, 0, 1, 1], [], []>} : vector<8x8xf32>, vector<8x32xf32>, vector<8x32xf32> -> vector<8x32xf32>
    %499 = arith.addf %480, %498 : vector<8x32xf32>
    %500 = vector.extract_strided_slice %437 {offsets = [0, 24], sizes = [8, 8], strides = [1, 1]} : vector<8x32xf32> to vector<8x8xf32>
    %501 = vector.extract_strided_slice %439 {offsets = [0, 24], sizes = [8, 8], strides = [1, 1]} : vector<8x32xf32> to vector<8x8xf32>
    %cst_183 = arith.constant dense<0.000000e+00> : vector<8x8xf32>
    %502 = tpu.matmul %500, %501, %cst_183 {dimension_numbers = #tpu.dot_dimension_numbers<[1], [1], [0], [0], [0, 0, 1, 0], [], []>} : vector<8x8xf32>, vector<8x8xf32>, vector<8x8xf32> -> vector<8x8xf32>
    %cst_184 = arith.constant 0.353553385 : f32
    %503 = vector.broadcast %cst_184 : f32 to vector<8x8xf32>
    %504 = arith.mulf %502, %503 : vector<8x8xf32>
    %cst_185 = arith.constant dense<0xFF800000> : vector<8xf32>
    %505 = vector.multi_reduction <maximumf>, %504, %cst_185 [1] : vector<8x8xf32> to vector<8xf32>
    %506 = vector.shape_cast %505 : vector<8xf32> to vector<8x1xf32>
    %507 = vector.broadcast %506 : vector<8x1xf32> to vector<8x8xf32>
    %508 = arith.subf %504, %507 : vector<8x8xf32>
    %509 = math.exp %508 : vector<8x8xf32>
    %cst_186 = arith.constant dense<0.000000e+00> : vector<8xf32>
    %510 = vector.multi_reduction <add>, %509, %cst_186 [1] : vector<8x8xf32> to vector<8xf32>
    %511 = vector.shape_cast %510 : vector<8xf32> to vector<8x1xf32>
    %512 = vector.broadcast %511 : vector<8x1xf32> to vector<8x8xf32>
    %513 = arith.divf %509, %512 : vector<8x8xf32>
    %514 = vector.extract_strided_slice %441 {offsets = [0, 24], sizes = [8, 8], strides = [1, 1]} : vector<8x32xf32> to vector<8x8xf32>
    %cst_187 = arith.constant dense<0.000000e+00> : vector<8x8xf32>
    %515 = tpu.matmul %513, %514, %cst_187 {dimension_numbers = #tpu.dot_dimension_numbers<[1], [0], [0], [1], [0, 0, 1, 1], [], []>} : vector<8x8xf32>, vector<8x8xf32>, vector<8x8xf32> -> vector<8x8xf32>
    %516 = vector.extract_strided_slice %316 {offsets = [24, 0], sizes = [8, 32], strides = [1, 1]} : vector<32x32xf32> to vector<8x32xf32>
    %cst_188 = arith.constant dense<0.000000e+00> : vector<8x32xf32>
    %517 = tpu.matmul %515, %516, %cst_188 {dimension_numbers = #tpu.dot_dimension_numbers<[1], [0], [0], [1], [0, 0, 1, 1], [], []>} : vector<8x8xf32>, vector<8x32xf32>, vector<8x32xf32> -> vector<8x32xf32>
    %518 = arith.addf %499, %517 : vector<8x32xf32>
    %519 = vector.broadcast %318 : vector<1x32xf32> to vector<8x32xf32>
    %520 = arith.addf %518, %519 : vector<8x32xf32>
    %521 = vector.extract_strided_slice %309 {offsets = [1, 0, 0], sizes = [1, 8, 32], strides = [1, 1, 1]} : vector<2x8x32xf32> to vector<1x8x32xf32>
    %522 = vector.shape_cast %521 : vector<1x8x32xf32> to vector<8x32xf32>
    %523 = arith.addf %522, %520 : vector<8x32xf32>
    %cst_189 = arith.constant dense<0.000000e+00> : vector<32xf32>
    %524 = vector.multi_reduction <add>, %523, %cst_189 [0] : vector<8x32xf32> to vector<32xf32>
    %525 = vector.shape_cast %524 : vector<32xf32> to vector<1x32xf32>
    %cst_190 = arith.constant 8.000000e+00 : f32
    %526 = vector.broadcast %cst_190 : f32 to vector<1x32xf32>
    %527 = arith.divf %525, %526 : vector<1x32xf32>
    %528 = arith.mulf %523, %523 : vector<8x32xf32>
    %cst_191 = arith.constant dense<0.000000e+00> : vector<32xf32>
    %529 = vector.multi_reduction <add>, %528, %cst_191 [0] : vector<8x32xf32> to vector<32xf32>
    %530 = vector.shape_cast %529 : vector<32xf32> to vector<1x32xf32>
    %cst_192 = arith.constant 8.000000e+00 : f32
    %531 = vector.broadcast %cst_192 : f32 to vector<1x32xf32>
    %532 = arith.divf %530, %531 : vector<1x32xf32>
    %533 = arith.mulf %527, %527 : vector<1x32xf32>
    %534 = arith.subf %532, %533 : vector<1x32xf32>
    %535 = vector.broadcast %527 : vector<1x32xf32> to vector<8x32xf32>
    %536 = arith.subf %523, %535 : vector<8x32xf32>
    %cst_193 = arith.constant 9.99999974E-6 : f32
    %537 = vector.broadcast %cst_193 : f32 to vector<1x32xf32>
    %538 = arith.addf %534, %537 : vector<1x32xf32>
    %539 = math.rsqrt %538 : vector<1x32xf32>
    %540 = vector.broadcast %539 : vector<1x32xf32> to vector<8x32xf32>
    %541 = arith.mulf %536, %540 : vector<8x32xf32>
    %542 = vector.broadcast %320 : vector<1x32xf32> to vector<8x32xf32>
    %543 = arith.mulf %541, %542 : vector<8x32xf32>
    %544 = vector.broadcast %322 : vector<1x32xf32> to vector<8x32xf32>
    %545 = arith.addf %543, %544 : vector<8x32xf32>
    %c1_194 = arith.constant 1 : index
    %c0_195 = arith.constant 0 : index
    %c0_196 = arith.constant 0 : index
    %546 = vector.load %arg16[%c1_194, %c0_195, %c0_196] : memref<2x8x32xf32, #tpu.memory_space<vmem>>, vector<1x8x32xf32>
    %547 = vector.shape_cast %546 : vector<1x8x32xf32> to vector<8x32xf32>
    %548 = vector.shape_cast %545 : vector<8x32xf32> to vector<1x8x32xf32>
    tpu.vector_store %arg16[%c1_194, %c0_195, %c0_196], %548 {strides = array<i32>} : memref<2x8x32xf32, #tpu.memory_space<vmem>>, vector<1x8x32xf32>,
    %c0_197 = arith.constant 0 : index
    %c0_198 = arith.constant 0 : index
    %c0_199 = arith.constant 0 : index
    %549 = vector.load %arg16[%c0_197, %c0_198, %c0_199] : memref<2x8x32xf32, #tpu.memory_space<vmem>>, vector<2x8x32xf32>
    %c1_200 = arith.constant 1 : index
    %c0_201 = arith.constant 0 : index
    %c0_202 = arith.constant 0 : index
    %550 = vector.load %arg9[%c1_200, %c0_201, %c0_202] : memref<2x32x64xf32, #tpu.memory_space<vmem>>, vector<1x32x64xf32>
    %551 = vector.shape_cast %550 : vector<1x32x64xf32> to vector<32x64xf32>
    %552 = vector.shape_cast %549 : vector<2x8x32xf32> to vector<16x32xf32>
    %cst_203 = arith.constant dense<0.000000e+00> : vector<16x64xf32>
    %553 = tpu.matmul %552, %551, %cst_203 {dimension_numbers = #tpu.dot_dimension_numbers<[1], [0], [0], [1], [0, 0, 1, 1], [], []>} : vector<16x32xf32>, vector<32x64xf32>, vector<16x64xf32> -> vector<16x64xf32>
    %554 = vector.shape_cast %553 : vector<16x64xf32> to vector<2x8x64xf32>
    %c1_204 = arith.constant 1 : index
    %c0_205 = arith.constant 0 : index
    %c0_206 = arith.constant 0 : index
    %555 = vector.load %arg10[%c1_204, %c0_205, %c0_206] : memref<2x1x64xf32, #tpu.memory_space<vmem>>, vector<1x1x64xf32>
    %556 = vector.shape_cast %555 : vector<1x1x64xf32> to vector<1x64xf32>
    %557 = vector.shape_cast %556 : vector<1x64xf32> to vector<1x1x64xf32>
    %558 = vector.broadcast %557 : vector<1x1x64xf32> to vector<2x8x64xf32>
    %559 = arith.addf %554, %558 : vector<2x8x64xf32>
    %cst_207 = arith.constant 0.000000e+00 : f32
    %560 = vector.broadcast %cst_207 : f32 to vector<2x8x64xf32>
    %561 = arith.maximumf %559, %560 : vector<2x8x64xf32>
    %c1_208 = arith.constant 1 : index
    %c0_209 = arith.constant 0 : index
    %c0_210 = arith.constant 0 : index
    %562 = vector.load %arg11[%c1_208, %c0_209, %c0_210] : memref<2x64x32xf32, #tpu.memory_space<vmem>>, vector<1x64x32xf32>
    %563 = vector.shape_cast %562 : vector<1x64x32xf32> to vector<64x32xf32>
    %564 = vector.shape_cast %561 : vector<2x8x64xf32> to vector<16x64xf32>
    %cst_211 = arith.constant dense<0.000000e+00> : vector<16x32xf32>
    %565 = tpu.matmul %564, %563, %cst_211 {dimension_numbers = #tpu.dot_dimension_numbers<[1], [0], [0], [1], [0, 0, 1, 1], [], []>} : vector<16x64xf32>, vector<64x32xf32>, vector<16x32xf32> -> vector<16x32xf32>
    %566 = vector.shape_cast %565 : vector<16x32xf32> to vector<2x8x32xf32>
    %c1_212 = arith.constant 1 : index
    %c0_213 = arith.constant 0 : index
    %c0_214 = arith.constant 0 : index
    %567 = vector.load %arg12[%c1_212, %c0_213, %c0_214] : memref<2x1x32xf32, #tpu.memory_space<vmem>>, vector<1x1x32xf32>
    %568 = vector.shape_cast %567 : vector<1x1x32xf32> to vector<1x32xf32>
    %569 = vector.shape_cast %568 : vector<1x32xf32> to vector<1x1x32xf32>
    %570 = vector.broadcast %569 : vector<1x1x32xf32> to vector<2x8x32xf32>
    %571 = arith.addf %566, %570 : vector<2x8x32xf32>
    %572 = arith.addf %549, %571 : vector<2x8x32xf32>
    %c1_215 = arith.constant 1 : index
    %c0_216 = arith.constant 0 : index
    %c0_217 = arith.constant 0 : index
    %573 = vector.load %arg13[%c1_215, %c0_216, %c0_217] : memref<2x1x32xf32, #tpu.memory_space<vmem>>, vector<1x1x32xf32>
    %574 = vector.shape_cast %573 : vector<1x1x32xf32> to vector<1x32xf32>
    %c1_218 = arith.constant 1 : index
    %c0_219 = arith.constant 0 : index
    %c0_220 = arith.constant 0 : index
    %575 = vector.load %arg14[%c1_218, %c0_219, %c0_220] : memref<2x1x32xf32, #tpu.memory_space<vmem>>, vector<1x1x32xf32>
    %576 = vector.shape_cast %575 : vector<1x1x32xf32> to vector<1x32xf32>
    %cst_221 = arith.constant dense<0.000000e+00> : vector<2x32xf32>
    %577 = vector.multi_reduction <add>, %572, %cst_221 [1] : vector<2x8x32xf32> to vector<2x32xf32>
    %578 = vector.shape_cast %577 : vector<2x32xf32> to vector<2x1x32xf32>
    %cst_222 = arith.constant 8.000000e+00 : f32
    %579 = vector.broadcast %cst_222 : f32 to vector<2x1x32xf32>
    %580 = arith.divf %578, %579 : vector<2x1x32xf32>
    %581 = arith.mulf %572, %572 : vector<2x8x32xf32>
    %cst_223 = arith.constant dense<0.000000e+00> : vector<2x32xf32>
    %582 = vector.multi_reduction <add>, %581, %cst_223 [1] : vector<2x8x32xf32> to vector<2x32xf32>
    %583 = vector.shape_cast %582 : vector<2x32xf32> to vector<2x1x32xf32>
    %cst_224 = arith.constant 8.000000e+00 : f32
    %584 = vector.broadcast %cst_224 : f32 to vector<2x1x32xf32>
    %585 = arith.divf %583, %584 : vector<2x1x32xf32>
    %586 = arith.mulf %580, %580 : vector<2x1x32xf32>
    %587 = arith.subf %585, %586 : vector<2x1x32xf32>
    %588 = vector.broadcast %580 : vector<2x1x32xf32> to vector<2x8x32xf32>
    %589 = arith.subf %572, %588 : vector<2x8x32xf32>
    %cst_225 = arith.constant 9.99999974E-6 : f32
    %590 = vector.broadcast %cst_225 : f32 to vector<2x1x32xf32>
    %591 = arith.addf %587, %590 : vector<2x1x32xf32>
    %592 = math.rsqrt %591 : vector<2x1x32xf32>
    %593 = vector.broadcast %592 : vector<2x1x32xf32> to vector<2x8x32xf32>
    %594 = arith.mulf %589, %593 : vector<2x8x32xf32>
    %595 = vector.shape_cast %574 : vector<1x32xf32> to vector<1x1x32xf32>
    %596 = vector.broadcast %595 : vector<1x1x32xf32> to vector<2x8x32xf32>
    %597 = arith.mulf %594, %596 : vector<2x8x32xf32>
    %598 = vector.shape_cast %576 : vector<1x32xf32> to vector<1x1x32xf32>
    %599 = vector.broadcast %598 : vector<1x1x32xf32> to vector<2x8x32xf32>
    %600 = arith.addf %597, %599 : vector<2x8x32xf32>
    %cst_226 = arith.constant 0.000000e+00 : f32
    %601 = vector.broadcast %cst_226 : f32 to vector<2x128x32xf32>
    %c0_227 = arith.constant 0 : index
    %c0_228 = arith.constant 0 : index
    %c0_229 = arith.constant 0 : index
    %602 = vector.load %arg15[%c0_227, %c0_228, %c0_229] : memref<2x128x32xf32, #tpu.memory_space<vmem>>, vector<2x128x32xf32>
    tpu.vector_store %arg15[%c0_227, %c0_228, %c0_229], %601 {strides = array<i32>} : memref<2x128x32xf32, #tpu.memory_space<vmem>>, vector<2x128x32xf32>,
    %c0_230 = arith.constant 0 : index
    %c0_231 = arith.constant 0 : index
    %c0_232 = arith.constant 0 : index
    %603 = vector.load %arg15[%c0_230, %c0_231, %c0_232] : memref<2x128x32xf32, #tpu.memory_space<vmem>>, vector<2x8x32xf32>
    tpu.vector_store %arg15[%c0_230, %c0_231, %c0_232], %600 {strides = array<i32>} : memref<2x128x32xf32, #tpu.memory_space<vmem>>, vector<2x8x32xf32>,
    return
  }
  func.func @transform_0(%arg0: i32) -> (i32, i32, i32) {
    %c0_i32 = arith.constant 0 : i32
    %c0_i32_0 = arith.constant 0 : i32
    %c0_i32_1 = arith.constant 0 : i32
    return %arg0, %c0_i32, %c0_i32_0 : i32, i32, i32
  }
  func.func @transform_1(%arg0: i32) -> (i32, i32) {
    %c0_i32 = arith.constant 0 : i32
    %c0_i32_0 = arith.constant 0 : i32
    %c0_i32_1 = arith.constant 0 : i32
    return %c0_i32, %c0_i32_0 : i32, i32
  }
  func.func @transform_2(%arg0: i32) -> (i32, i32) {
    %c0_i32 = arith.constant 0 : i32
    %c0_i32_0 = arith.constant 0 : i32
    %c0_i32_1 = arith.constant 0 : i32
    return %c0_i32, %c0_i32_0 : i32, i32
  }
  func.func @transform_3(%arg0: i32) -> (i32, i32, i32) {
    %c0_i32 = arith.constant 0 : i32
    %c0_i32_0 = arith.constant 0 : i32
    %c0_i32_1 = arith.constant 0 : i32
    %c0_i32_2 = arith.constant 0 : i32
    return %c0_i32, %c0_i32_0, %c0_i32_1 : i32, i32, i32
  }
  func.func @transform_4(%arg0: i32) -> (i32, i32, i32) {
    %c0_i32 = arith.constant 0 : i32
    %c0_i32_0 = arith.constant 0 : i32
    %c0_i32_1 = arith.constant 0 : i32
    %c0_i32_2 = arith.constant 0 : i32
    return %c0_i32, %c0_i32_0, %c0_i32_1 : i32, i32, i32
  }
  func.func @transform_5(%arg0: i32) -> (i32, i32, i32) {
    %c0_i32 = arith.constant 0 : i32
    %c0_i32_0 = arith.constant 0 : i32
    %c0_i32_1 = arith.constant 0 : i32
    %c0_i32_2 = arith.constant 0 : i32
    return %c0_i32, %c0_i32_0, %c0_i32_1 : i32, i32, i32
  }
  func.func @transform_6(%arg0: i32) -> (i32, i32, i32) {
    %c0_i32 = arith.constant 0 : i32
    %c0_i32_0 = arith.constant 0 : i32
    %c0_i32_1 = arith.constant 0 : i32
    %c0_i32_2 = arith.constant 0 : i32
    return %c0_i32, %c0_i32_0, %c0_i32_1 : i32, i32, i32
  }
  func.func @transform_7(%arg0: i32) -> (i32, i32, i32) {
    %c0_i32 = arith.constant 0 : i32
    %c0_i32_0 = arith.constant 0 : i32
    %c0_i32_1 = arith.constant 0 : i32
    %c0_i32_2 = arith.constant 0 : i32
    return %c0_i32, %c0_i32_0, %c0_i32_1 : i32, i32, i32
  }
  func.func @transform_8(%arg0: i32) -> (i32, i32, i32) {
    %c0_i32 = arith.constant 0 : i32
    %c0_i32_0 = arith.constant 0 : i32
    %c0_i32_1 = arith.constant 0 : i32
    %c0_i32_2 = arith.constant 0 : i32
    return %c0_i32, %c0_i32_0, %c0_i32_1 : i32, i32, i32
  }
  func.func @transform_9(%arg0: i32) -> (i32, i32, i32) {
    %c0_i32 = arith.constant 0 : i32
    %c0_i32_0 = arith.constant 0 : i32
    %c0_i32_1 = arith.constant 0 : i32
    %c0_i32_2 = arith.constant 0 : i32
    return %c0_i32, %c0_i32_0, %c0_i32_1 : i32, i32, i32
  }
  func.func @transform_10(%arg0: i32) -> (i32, i32, i32) {
    %c0_i32 = arith.constant 0 : i32
    %c0_i32_0 = arith.constant 0 : i32
    %c0_i32_1 = arith.constant 0 : i32
    %c0_i32_2 = arith.constant 0 : i32
    return %c0_i32, %c0_i32_0, %c0_i32_1 : i32, i32, i32
  }
  func.func @transform_11(%arg0: i32) -> (i32, i32, i32) {
    %c0_i32 = arith.constant 0 : i32
    %c0_i32_0 = arith.constant 0 : i32
    %c0_i32_1 = arith.constant 0 : i32
    %c0_i32_2 = arith.constant 0 : i32
    return %c0_i32, %c0_i32_0, %c0_i32_1 : i32, i32, i32
  }
  func.func @transform_12(%arg0: i32) -> (i32, i32, i32) {
    %c0_i32 = arith.constant 0 : i32
    %c0_i32_0 = arith.constant 0 : i32
    %c0_i32_1 = arith.constant 0 : i32
    %c0_i32_2 = arith.constant 0 : i32
    return %c0_i32, %c0_i32_0, %c0_i32_1 : i32, i32, i32
  }
  func.func @transform_13(%arg0: i32) -> (i32, i32, i32) {
    %c0_i32 = arith.constant 0 : i32
    %c0_i32_0 = arith.constant 0 : i32
    %c0_i32_1 = arith.constant 0 : i32
    %c0_i32_2 = arith.constant 0 : i32
    return %c0_i32, %c0_i32_0, %c0_i32_1 : i32, i32, i32
  }
  func.func @transform_14(%arg0: i32) -> (i32, i32, i32) {
    %c0_i32 = arith.constant 0 : i32
    %c0_i32_0 = arith.constant 0 : i32
    %c0_i32_1 = arith.constant 0 : i32
    return %arg0, %c0_i32, %c0_i32_0 : i32, i32, i32
  }
}

</mosaic_0001>

<llo_original>
// kernel: tpu_custom_call.1
$region0: #{tpu_custom_call.1}
  #allocation0 [shape = 'u32[]', space=smem, size = 0x4, offset = 0x4, fixed_abs, tag = 'smem constant byte address 0x4 - core index']
  #allocation1 [shape = 'u32[144,128]{1,0:T(1,128)}', space=vmem, size = 0x12000, scoped, tag = 'internal scratch']
  #allocation2 [shape = 'f32[2,8,32]{2,1,0:T(8,128)}', space=vmem, size = 0x2000, scoped, tag = 'scratch operand']
  %s0 = inlined_call_operand.vmem [shape: f32[2,8,2], index: 0, kind: input, shape index: {}]
  %s1 = inlined_call_operand.vmem [shape: f32[2,32], index: 1, kind: input, shape index: {}]
  %s2 = inlined_call_operand.vmem [shape: f32[1,32], index: 2, kind: input, shape index: {}]
  %s3 = inlined_call_operand.vmem [shape: f32[2,32,96], index: 3, kind: input, shape index: {}]
  %s4 = inlined_call_operand.vmem [shape: f32[2,32,32], index: 4, kind: input, shape index: {}]
  %s5 = inlined_call_operand.vmem [shape: f32[2,1,32], index: 5, kind: input, shape index: {}]
  %s6 = inlined_call_operand.vmem [shape: f32[2,1,32], index: 6, kind: input, shape index: {}]
  %s7 = inlined_call_operand.vmem [shape: f32[2,1,32], index: 7, kind: input, shape index: {}]
  %s8 = inlined_call_operand.vmem [shape: f32[2,32,64], index: 8, kind: input, shape index: {}]
  %s9 = inlined_call_operand.vmem [shape: f32[2,1,64], index: 9, kind: input, shape index: {}]
  %s10 = inlined_call_operand.vmem [shape: f32[2,64,32], index: 10, kind: input, shape index: {}]
  %s11 = inlined_call_operand.vmem [shape: f32[2,1,32], index: 11, kind: input, shape index: {}]
  %s12 = inlined_call_operand.vmem [shape: f32[2,1,32], index: 12, kind: input, shape index: {}]
  %s13 = inlined_call_operand.vmem [shape: f32[2,1,32], index: 13, kind: input, shape index: {}]
  %s14 = inlined_call_operand.vmem [shape: f32[2,128,32], index: 14, kind: output, shape index: {}]
  %s15 = sld [smem:[#allocation0]]
  $region66: #{tpu_custom_call.1} parent=0
    _
  %s17 = ssub.s32 1, %s15
  %s18 = scalar_select 0, %s17, %s15
  // Predicated region
  $region2: #{tpu_custom_call.1} parent=0 // pred_check
    _
  $region3: #{tpu_custom_call.1} parent=0 // pred_check_branch
    %20 = sbr.rel (0) target = $region5
  $region4: #{tpu_custom_call.1} parent=0 // pred_region
    _
  $region5: #{tpu_custom_call.1} parent=0 // pred_fallthru
    _
  // Predicated region
  $region6: #{tpu_custom_call.1} parent=0 // pred_check
    _
  $region7: #{tpu_custom_call.1} parent=0 // pred_check_branch
    %22 = sbr.rel (0) target = $region9
  $region8: #{tpu_custom_call.1} parent=0 // pred_region
    _
  $region9: #{tpu_custom_call.1} parent=0 // pred_fallthru
    _
  // Predicated region
  $region10: #{tpu_custom_call.1} parent=0 // pred_check
    _
  $region11: #{tpu_custom_call.1} parent=0 // pred_check_branch
    %24 = sbr.rel (0) target = $region13
  $region12: #{tpu_custom_call.1} parent=0 // pred_region
    _
  $region13: #{tpu_custom_call.1} parent=0 // pred_fallthru
    _
  // Predicated region
  $region14: #{tpu_custom_call.1} parent=0 // pred_check
    _
  $region15: #{tpu_custom_call.1} parent=0 // pred_check_branch
    %26 = sbr.rel (0) target = $region17
  $region16: #{tpu_custom_call.1} parent=0 // pred_region
    _
  $region17: #{tpu_custom_call.1} parent=0 // pred_fallthru
    _
  // Predicated region
  $region18: #{tpu_custom_call.1} parent=0 // pred_check
    _
  $region19: #{tpu_custom_call.1} parent=0 // pred_check_branch
    %28 = sbr.rel (0) target = $region21
  $region20: #{tpu_custom_call.1} parent=0 // pred_region
    _
  $region21: #{tpu_custom_call.1} parent=0 // pred_fallthru
    _
  // Predicated region
  $region22: #{tpu_custom_call.1} parent=0 // pred_check
    _
  $region23: #{tpu_custom_call.1} parent=0 // pred_check_branch
    %30 = sbr.rel (0) target = $region25
  $region24: #{tpu_custom_call.1} parent=0 // pred_region
    _
  $region25: #{tpu_custom_call.1} parent=0 // pred_fallthru
    _
  // Predicated region
  $region26: #{tpu_custom_call.1} parent=0 // pred_check
    _
  $region27: #{tpu_custom_call.1} parent=0 // pred_check_branch
    %32 = sbr.rel (0) target = $region29
  $region28: #{tpu_custom_call.1} parent=0 // pred_region
    _
  $region29: #{tpu_custom_call.1} parent=0 // pred_fallthru
    _
  // Predicated region
  $region30: #{tpu_custom_call.1} parent=0 // pred_check
    _
  $region31: #{tpu_custom_call.1} parent=0 // pred_check_branch
    %34 = sbr.rel (0) target = $region33
  $region32: #{tpu_custom_call.1} parent=0 // pred_region
    _
  $region33: #{tpu_custom_call.1} parent=0 // pred_fallthru
    _
  // Predicated region
  $region34: #{tpu_custom_call.1} parent=0 // pred_check
    _
  $region35: #{tpu_custom_call.1} parent=0 // pred_check_branch
    %36 = sbr.rel (0) target = $region37
  $region36: #{tpu_custom_call.1} parent=0 // pred_region
    _
  $region37: #{tpu_custom_call.1} parent=0 // pred_fallthru
    _
  // Predicated region
  $region38: #{tpu_custom_call.1} parent=0 // pred_check
    _
  $region39: #{tpu_custom_call.1} parent=0 // pred_check_branch
    %38 = sbr.rel (0) target = $region41
  $region40: #{tpu_custom_call.1} parent=0 // pred_region
    _
  $region41: #{tpu_custom_call.1} parent=0 // pred_fallthru
    _
  // Predicated region
  $region42: #{tpu_custom_call.1} parent=0 // pred_check
    _
  $region43: #{tpu_custom_call.1} parent=0 // pred_check_branch
    %40 = sbr.rel (0) target = $region45
  $region44: #{tpu_custom_call.1} parent=0 // pred_region
    _
  $region45: #{tpu_custom_call.1} parent=0 // pred_fallthru
    _
  // Predicated region
  $region46: #{tpu_custom_call.1} parent=0 // pred_check
    _
  $region47: #{tpu_custom_call.1} parent=0 // pred_check_branch
    %42 = sbr.rel (0) target = $region49
  $region48: #{tpu_custom_call.1} parent=0 // pred_region
    _
  $region49: #{tpu_custom_call.1} parent=0 // pred_fallthru
    _
  // Predicated region
  $region50: #{tpu_custom_call.1} parent=0 // pred_check
    _
  $region51: #{tpu_custom_call.1} parent=0 // pred_check_branch
    %44 = sbr.rel (0) target = $region53
  $region52: #{tpu_custom_call.1} parent=0 // pred_region
    _
  $region53: #{tpu_custom_call.1} parent=0 // pred_fallthru
    _
  // Predicated region
  $region54: #{tpu_custom_call.1} parent=0 // pred_check
    _
  $region55: #{tpu_custom_call.1} parent=0 // pred_check_branch
    %46 = sbr.rel (0) target = $region57
  $region56: #{tpu_custom_call.1} parent=0 // pred_region
    _
  $region57: #{tpu_custom_call.1} parent=0 // pred_fallthru
    _
  %v47 = vld [vmem:[%s0] sm:$0xff]
  %v48 = vld [vmem:[%s0 + $0x8] sm:$0xff]
  %v49 = vld [vmem:[%s1] sm:$0x3]
  %51 = vset.pattern.permute.xlu0 0
  %52 = vperm.xlu0 %51, %v47
  %v53 = vpop.permute.xlu0 %52
  %56 = vset.pattern.permute.xlu0 0
  %57 = vperm.xlu0 %56, %v48
  %v58 = vpop.permute.xlu0 %57
  %v60 = vlaneseq
  %v61 = vshrl.u32 %v60, 7
  %v62 = vsub.s32 0, %v61
  %v63 = vrot.slane %v49, %v62
  %v64 = vmul.f32 %v53, %v63
  %v65 = vmul.f32 %v58, %v63
  %66 = vset.pattern.permute.xlu0 1
  %67 = vperm.xlu0 %66, %v47
  %v68 = vpop.permute.xlu0 %67
  %70 = vset.pattern.permute.xlu0 1
  %71 = vperm.xlu0 %70, %v48
  %v72 = vpop.permute.xlu0 %71
  %v74 = vlaneseq
  %v75 = vshrl.u32 %v74, 7
  %v76 = vsub.s32 1, %v75
  %v77 = vrot.slane %v49, %v76
  %v78 = vmul.f32 %v68, %v77
  %v79 = vmul.f32 %v72, %v77
  %v80 = vadd.f32 %v64, %v78
  %v81 = vadd.f32 %v65, %v79
  %v82 = vld [vmem:[%s2] sm:$0x1]
  %v84 = vlaneseq
  %v85 = vshrl.u32 %v84, 7
  %v86 = vsub.s32 0, %v85
  %v87 = vrot.slane %v82, %v86
  %v89 = vadd.f32 %v80, %v87
  %v90 = vadd.f32 %v81, %v87
  %v91 = vld [vmem:[%s3] sm:$0xff]
  %v92 = vld [vmem:[%s3 + $0x8] sm:$0xff]
  %v93 = vld [vmem:[%s3 + $0x10] sm:$0xff]
  %v94 = vld [vmem:[%s3 + $0x18] sm:$0xff]
  %vm95 = vcmask 261120
  %v97 = vsel %vm95, %v89, 0
  %v100 = vsel %vm95, %v90, 0
  %102 = vmatprep.subr.mxu0 0.0
  %103 = vmatpush1.msra.mxu0 0.0
  %104 = vmatprep.subr.mxu0 0.0
  %105 = vmatpush1.msra.mxu0 0.0
  %106 = vmatprep.subr.mxu0 0.0
  %107 = vmatpush1.msra.mxu0 0.0
  %108 = vmatprep.subr.mxu0 0.0
  %109 = vmatpush1.msra.mxu0 0.0
  %110 = vmatprep.subr.mxu0 0.0
  %111 = vmatpush1.msra.mxu0 0.0
  %112 = vmatprep.subr.mxu0 0.0
  %113 = vmatpush1.msra.mxu0 0.0
  %114 = vmatprep.subr.mxu0 0.0
  %115 = vmatpush1.msra.mxu0 0.0
  %116 = vmatprep.subr.mxu0 0.0
  %117 = vmatpush1.msra.mxu0 0.0
  %118 = vmatprep.subr.mxu0 0.0
  %119 = vmatpush1.msra.mxu0 0.0
  %120 = vmatprep.subr.mxu0 0.0
  %121 = vmatpush1.msra.mxu0 0.0
  %122 = vmatprep.subr.mxu0 0.0
  %123 = vmatpush1.msra.mxu0 0.0
  %124 = vmatprep.subr.mxu0 0.0
  %125 = vmatpush1.msra.mxu0 0.0
  %126 = vmatprep.subr.mxu0 0.0
  %127 = vmatpush1.msra.mxu0 %v94
  %128 = vmatprep.subr.mxu0 0.0
  %129 = vmatpush1.msra.mxu0 %v93
  %130 = vmatprep.subr.mxu0 0.0
  %131 = vmatpush1.msra.mxu0 %v92
  %132 = vmatprep.subr.mxu0 0.0
  %133 = vmatpush1.msra.mxu0 %v91
  %134 = vmatprep.subr.mxu0 0.0
  %135 = vmatpush2.msra.mxu0 0.0
  %136 = vmatprep.subr.mxu0 0.0
  %137 = vmatpush2.msra.mxu0 0.0
  %138 = vmatprep.subr.mxu0 0.0
  %139 = vmatpush2.msra.mxu0 0.0
  %140 = vmatprep.subr.mxu0 0.0
  %141 = vmatpush2.msra.mxu0 0.0
  %142 = vmatprep.subr.mxu0 0.0
  %143 = vmatpush2.msra.mxu0 0.0
  %144 = vmatprep.subr.mxu0 0.0
  %145 = vmatpush2.msra.mxu0 0.0
  %146 = vmatprep.subr.mxu0 0.0
  %147 = vmatpush2.msra.mxu0 0.0
  %148 = vmatprep.subr.mxu0 0.0
  %149 = vmatpush2.msra.mxu0 0.0
  %150 = vmatprep.subr.mxu0 0.0
  %151 = vmatpush2.msra.mxu0 0.0
  %152 = vmatprep.subr.mxu0 0.0
  %153 = vmatpush2.msra.mxu0 0.0
  %154 = vmatprep.subr.mxu0 0.0
  %155 = vmatpush2.msra.mxu0 0.0
  %156 = vmatprep.subr.mxu0 0.0
  %157 = vmatpush2.msra.mxu0 0.0
  %158 = vmatprep.subr.mxu0 0.0
  %159 = vmatpush2.msra.mxu0 0.0
  %160 = vmatprep.subr.mxu0 0.0
  %161 = vmatpush2.msra.mxu0 0.0
  %162 = vmatprep.subr.mxu0 0.0
  %163 = vmatpush2.msra.mxu0 0.0
  %164 = vmatprep.subr.mxu0 0.0
  %165 = vmatpush2.msra.mxu0 0.0
  %166 = vmatprep.mubr.f32.mxu0 0.0
  %167 = vmatmul.mubr.f32.gmra.mxu0 %v97
  %v168 = vpop.f32.mrf.mxu0
  %v169 = vadd.f32 0.0, %v168
  %v170 = vpop.f32.mrf.mxu0
  %171 = vmatprep.mubr.f32.mxu0 0.0
  %172 = vmatmul.mubr.f32.gmra.mxu0 %v100
  %v173 = vpop.f32.mrf.mxu0
  %v174 = vadd.f32 0.0, %v173
  %v175 = vpop.f32.mrf.mxu0
  %176 = vdwg.mxu0
  %v177 = vld [vmem:[%s4] sm:$0xff]
  %v178 = vld [vmem:[%s4 + $0x8] sm:$0xff]
  %v179 = vld [vmem:[%s4 + $0x10] sm:$0xff]
  %v180 = vld [vmem:[%s4 + $0x18] sm:$0xff]
  %v181 = vld [vmem:[%s5] sm:$0x1]
  %v182 = vld [vmem:[%s6] sm:$0x1]
  %v183 = vld [vmem:[%s7] sm:$0x1]
  %185 = vrot.lane.b32.xlu0 %v169, 96
  %v186 = vpop.permute.xlu0 %185
  %vm187 = vcmask 64512
  %v188 = vsel %vm187, %v169, 0
  %v190 = vsel %vm187, %v186, 0
  %192 = vmatprep.subr.mxu0 0.0
  %193 = vmatpush1.xpose.msra.mxu0 0.0
  %194 = vmatprep.subr.mxu0 0.0
  %195 = vmatpush1.xpose.msra.mxu0 0.0
  %196 = vmatprep.subr.mxu0 0.0
  %197 = vmatpush1.xpose.msra.mxu0 0.0
  %198 = vmatprep.subr.mxu0 0.0
  %199 = vmatpush1.xpose.msra.mxu0 0.0
  %200 = vmatprep.subr.mxu0 0.0
  %201 = vmatpush1.xpose.msra.mxu0 0.0
  %202 = vmatprep.subr.mxu0 0.0
  %203 = vmatpush1.xpose.msra.mxu0 0.0
  %204 = vmatprep.subr.mxu0 0.0
  %205 = vmatpush1.xpose.msra.mxu0 0.0
  %206 = vmatprep.subr.mxu0 0.0
  %207 = vmatpush1.xpose.msra.mxu0 0.0
  %208 = vmatprep.subr.mxu0 0.0
  %209 = vmatpush1.xpose.msra.mxu0 0.0
  %210 = vmatprep.subr.mxu0 0.0
  %211 = vmatpush1.xpose.msra.mxu0 0.0
  %212 = vmatprep.subr.mxu0 0.0
  %213 = vmatpush1.xpose.msra.mxu0 0.0
  %214 = vmatprep.subr.mxu0 0.0
  %215 = vmatpush1.xpose.msra.mxu0 0.0
  %216 = vmatprep.subr.mxu0 0.0
  %217 = vmatpush1.xpose.msra.mxu0 0.0
  %218 = vmatprep.subr.mxu0 0.0
  %219 = vmatpush1.xpose.msra.mxu0 0.0
  %220 = vmatprep.subr.mxu0 0.0
  %221 = vmatpush1.xpose.msra.mxu0 0.0
  %222 = vmatprep.subr.mxu0 0.0
  %223 = vmatpush1.xpose.msra.mxu0 %v190
  %224 = vmatprep.subr.mxu0 0.0
  %225 = vmatpush2.xpose.msra.mxu0 0.0
  %226 = vmatprep.subr.mxu0 0.0
  %227 = vmatpush2.xpose.msra.mxu0 0.0
  %228 = vmatprep.subr.mxu0 0.0
  %229 = vmatpush2.xpose.msra.mxu0 0.0
  %230 = vmatprep.subr.mxu0 0.0
  %231 = vmatpush2.xpose.msra.mxu0 0.0
  %232 = vmatprep.subr.mxu0 0.0
  %233 = vmatpush2.xpose.msra.mxu0 0.0
  %234 = vmatprep.subr.mxu0 0.0
  %235 = vmatpush2.xpose.msra.mxu0 0.0
  %236 = vmatprep.subr.mxu0 0.0
  %237 = vmatpush2.xpose.msra.mxu0 0.0
  %238 = vmatprep.subr.mxu0 0.0
  %239 = vmatpush2.xpose.msra.mxu0 0.0
  %240 = vmatprep.subr.mxu0 0.0
  %241 = vmatpush2.xpose.msra.mxu0 0.0
  %242 = vmatprep.subr.mxu0 0.0
  %243 = vmatpush2.xpose.msra.mxu0 0.0
  %244 = vmatprep.subr.mxu0 0.0
  %245 = vmatpush2.xpose.msra.mxu0 0.0
  %246 = vmatprep.subr.mxu0 0.0
  %247 = vmatpush2.xpose.msra.mxu0 0.0
  %248 = vmatprep.subr.mxu0 0.0
  %249 = vmatpush2.xpose.msra.mxu0 0.0
  %250 = vmatprep.subr.mxu0 0.0
  %251 = vmatpush2.xpose.msra.mxu0 0.0
  %252 = vmatprep.subr.mxu0 0.0
  %253 = vmatpush2.xpose.msra.mxu0 0.0
  %254 = vmatprep.subr.mxu0 0.0
  %255 = vmatpush2.xpose.msra.mxu0 0.0
  %256 = vmatprep.mubr.f32.mxu0 0.0
  %257 = vmatmul.mubr.f32.gmra.mxu0 %v188
  %v258 = vpop.f32.mrf.mxu0
  %v259 = vadd.f32 0.0, %v258
  %v260 = vpop.f32.mrf.mxu0
  %261 = vdwg.mxu0
  %v262 = vmul.f32 %v259, 0.35355338
  %v263 = vsel %vm187, %v262, -inf
  %264 = vmax.xlane.f32.xlu0 %v263
  %v265 = vpop.xlane.xlu0 %264
  %v266 = vsub.f32 %v262, %v265
  %v267 = vmul.f32 %v266, 1.442695
  %v268 = vpow.pop %v267
  %v269 = vsel %vm187, %v268, 0.0
  %270 = vadd.xlane.f32.xlu0 %v269
  %v271 = vpop.xlane.xlu0 %270
  %v272 = vrcp.pop %v271
  %v273 = vmul.f32 %v268, %v272
  %274 = vrot.lane.b32.xlu0 %v169, 64
  %v275 = vpop.permute.xlu0 %274
  %v278 = vsel %vm187, %v273, 0
  %280 = vmatprep.subr.mxu0 0.0
  %281 = vmatpush1.msra.mxu0 0.0
  %282 = vmatprep.subr.mxu0 0.0
  %283 = vmatpush1.msra.mxu0 0.0
  %284 = vmatprep.subr.mxu0 0.0
  %285 = vmatpush1.msra.mxu0 0.0
  %286 = vmatprep.subr.mxu0 0.0
  %287 = vmatpush1.msra.mxu0 0.0
  %288 = vmatprep.subr.mxu0 0.0
  %289 = vmatpush1.msra.mxu0 0.0
  %290 = vmatprep.subr.mxu0 0.0
  %291 = vmatpush1.msra.mxu0 0.0
  %292 = vmatprep.subr.mxu0 0.0
  %293 = vmatpush1.msra.mxu0 0.0
  %294 = vmatprep.subr.mxu0 0.0
  %295 = vmatpush1.msra.mxu0 0.0
  %296 = vmatprep.subr.mxu0 0.0
  %297 = vmatpush1.msra.mxu0 0.0
  %298 = vmatprep.subr.mxu0 0.0
  %299 = vmatpush1.msra.mxu0 0.0
  %300 = vmatprep.subr.mxu0 0.0
  %301 = vmatpush1.msra.mxu0 0.0
  %302 = vmatprep.subr.mxu0 0.0
  %303 = vmatpush1.msra.mxu0 0.0
  %304 = vmatprep.subr.mxu0 0.0
  %305 = vmatpush1.msra.mxu0 0.0
  %306 = vmatprep.subr.mxu0 0.0
  %307 = vmatpush1.msra.mxu0 0.0
  %308 = vmatprep.subr.mxu0 0.0
  %309 = vmatpush1.msra.mxu0 0.0
  %310 = vmatprep.subr.mxu0 0.0
  %311 = vmatpush1.msra.mxu0 %v275
  %312 = vmatprep.subr.mxu0 0.0
  %313 = vmatpush2.msra.mxu0 0.0
  %314 = vmatprep.subr.mxu0 0.0
  %315 = vmatpush2.msra.mxu0 0.0
  %316 = vmatprep.subr.mxu0 0.0
  %317 = vmatpush2.msra.mxu0 0.0
  %318 = vmatprep.subr.mxu0 0.0
  %319 = vmatpush2.msra.mxu0 0.0
  %320 = vmatprep.subr.mxu0 0.0
  %321 = vmatpush2.msra.mxu0 0.0
  %322 = vmatprep.subr.mxu0 0.0
  %323 = vmatpush2.msra.mxu0 0.0
  %324 = vmatprep.subr.mxu0 0.0
  %325 = vmatpush2.msra.mxu0 0.0
  %326 = vmatprep.subr.mxu0 0.0
  %327 = vmatpush2.msra.mxu0 0.0
  %328 = vmatprep.subr.mxu0 0.0
  %329 = vmatpush2.msra.mxu0 0.0
  %330 = vmatprep.subr.mxu0 0.0
  %331 = vmatpush2.msra.mxu0 0.0
  %332 = vmatprep.subr.mxu0 0.0
  %333 = vmatpush2.msra.mxu0 0.0
  %334 = vmatprep.subr.mxu0 0.0
  %335 = vmatpush2.msra.mxu0 0.0
  %336 = vmatprep.subr.mxu0 0.0
  %337 = vmatpush2.msra.mxu0 0.0
  %338 = vmatprep.subr.mxu0 0.0
  %339 = vmatpush2.msra.mxu0 0.0
  %340 = vmatprep.subr.mxu0 0.0
  %341 = vmatpush2.msra.mxu0 0.0
  %342 = vmatprep.subr.mxu0 0.0
  %343 = vmatpush2.msra.mxu0 0.0
  %344 = vmatprep.mubr.f32.mxu0 0.0
  %345 = vmatmul.mubr.f32.gmra.mxu0 %v278
  %v346 = vpop.f32.mrf.mxu0
  %v347 = vadd.f32 0.0, %v346
  %v348 = vpop.f32.mrf.mxu0
  %349 = vdwg.mxu0
  %350 = vrot.lane.b32.xlu0 %v169, 120
  %v351 = vpop.permute.xlu0 %350
  %352 = vrot.lane.b32.xlu0 %v169, 88
  %v353 = vpop.permute.xlu0 %352
  %v354 = vsel %vm187, %v351, 0
  %v356 = vsel %vm187, %v353, 0
  %358 = vmatprep.subr.mxu0 0.0
  %359 = vmatpush1.xpose.msra.mxu0 0.0
  %360 = vmatprep.subr.mxu0 0.0
  %361 = vmatpush1.xpose.msra.mxu0 0.0
  %362 = vmatprep.subr.mxu0 0.0
  %363 = vmatpush1.xpose.msra.mxu0 0.0
  %364 = vmatprep.subr.mxu0 0.0
  %365 = vmatpush1.xpose.msra.mxu0 0.0
  %366 = vmatprep.subr.mxu0 0.0
  %367 = vmatpush1.xpose.msra.mxu0 0.0
  %368 = vmatprep.subr.mxu0 0.0
  %369 = vmatpush1.xpose.msra.mxu0 0.0
  %370 = vmatprep.subr.mxu0 0.0
  %371 = vmatpush1.xpose.msra.mxu0 0.0
  %372 = vmatprep.subr.mxu0 0.0
  %373 = vmatpush1.xpose.msra.mxu0 0.0
  %374 = vmatprep.subr.mxu0 0.0
  %375 = vmatpush1.xpose.msra.mxu0 0.0
  %376 = vmatprep.subr.mxu0 0.0
  %377 = vmatpush1.xpose.msra.mxu0 0.0
  %378 = vmatprep.subr.mxu0 0.0
  %379 = vmatpush1.xpose.msra.mxu0 0.0
  %380 = vmatprep.subr.mxu0 0.0
  %381 = vmatpush1.xpose.msra.mxu0 0.0
  %382 = vmatprep.subr.mxu0 0.0
  %383 = vmatpush1.xpose.msra.mxu0 0.0
  %384 = vmatprep.subr.mxu0 0.0
  %385 = vmatpush1.xpose.msra.mxu0 0.0
  %386 = vmatprep.subr.mxu0 0.0
  %387 = vmatpush1.xpose.msra.mxu0 0.0
  %388 = vmatprep.subr.mxu0 0.0
  %389 = vmatpush1.xpose.msra.mxu0 %v356
  %390 = vmatprep.subr.mxu0 0.0
  %391 = vmatpush2.xpose.msra.mxu0 0.0
  %392 = vmatprep.subr.mxu0 0.0
  %393 = vmatpush2.xpose.msra.mxu0 0.0
  %394 = vmatprep.subr.mxu0 0.0
  %395 = vmatpush2.xpose.msra.mxu0 0.0
  %396 = vmatprep.subr.mxu0 0.0
  %397 = vmatpush2.xpose.msra.mxu0 0.0
  %398 = vmatprep.subr.mxu0 0.0
  %399 = vmatpush2.xpose.msra.mxu0 0.0
  %400 = vmatprep.subr.mxu0 0.0
  %401 = vmatpush2.xpose.msra.mxu0 0.0
  %402 = vmatprep.subr.mxu0 0.0
  %403 = vmatpush2.xpose.msra.mxu0 0.0
  %404 = vmatprep.subr.mxu0 0.0
  %405 = vmatpush2.xpose.msra.mxu0 0.0
  %406 = vmatprep.subr.mxu0 0.0
  %407 = vmatpush2.xpose.msra.mxu0 0.0
  %408 = vmatprep.subr.mxu0 0.0
  %409 = vmatpush2.xpose.msra.mxu0 0.0
  %410 = vmatprep.subr.mxu0 0.0
  %411 = vmatpush2.xpose.msra.mxu0 0.0
  %412 = vmatprep.subr.mxu0 0.0
  %413 = vmatpush2.xpose.msra.mxu0 0.0
  %414 = vmatprep.subr.mxu0 0.0
  %415 = vmatpush2.xpose.msra.mxu0 0.0
  %416 = vmatprep.subr.mxu0 0.0
  %417 = vmatpush2.xpose.msra.mxu0 0.0
  %418 = vmatprep.subr.mxu0 0.0
  %419 = vmatpush2.xpose.msra.mxu0 0.0
  %420 = vmatprep.subr.mxu0 0.0
  %421 = vmatpush2.xpose.msra.mxu0 0.0
  %422 = vmatprep.mubr.f32.mxu0 0.0
  %423 = vmatmul.mubr.f32.gmra.mxu0 %v354
  %v424 = vpop.f32.mrf.mxu0
  %v425 = vadd.f32 0.0, %v424
  %v426 = vpop.f32.mrf.mxu0
  %427 = vdwg.mxu0
  %v428 = vmul.f32 %v425, 0.35355338
  %v429 = vsel %vm187, %v428, -inf
  %430 = vmax.xlane.f32.xlu0 %v429
  %v431 = vpop.xlane.xlu0 %430
  %v432 = vsub.f32 %v428, %v431
  %v433 = vmul.f32 %v432, 1.442695
  %v434 = vpow.pop %v433
  %v435 = vsel %vm187, %v434, 0.0
  %436 = vadd.xlane.f32.xlu0 %v435
  %v437 = vpop.xlane.xlu0 %436
  %v438 = vrcp.pop %v437
  %v439 = vmul.f32 %v434, %v438
  %440 = vrot.lane.b32.xlu0 %v169, 56
  %v441 = vpop.permute.xlu0 %440
  %v444 = vsel %vm187, %v439, 0
  %446 = vmatprep.subr.mxu0 0.0
  %447 = vmatpush1.msra.mxu0 0.0
  %448 = vmatprep.subr.mxu0 0.0
  %449 = vmatpush1.msra.mxu0 0.0
  %450 = vmatprep.subr.mxu0 0.0
  %451 = vmatpush1.msra.mxu0 0.0
  %452 = vmatprep.subr.mxu0 0.0
  %453 = vmatpush1.msra.mxu0 0.0
  %454 = vmatprep.subr.mxu0 0.0
  %455 = vmatpush1.msra.mxu0 0.0
  %456 = vmatprep.subr.mxu0 0.0
  %457 = vmatpush1.msra.mxu0 0.0
  %458 = vmatprep.subr.mxu0 0.0
  %459 = vmatpush1.msra.mxu0 0.0
  %460 = vmatprep.subr.mxu0 0.0
  %461 = vmatpush1.msra.mxu0 0.0
  %462 = vmatprep.subr.mxu0 0.0
  %463 = vmatpush1.msra.mxu0 0.0
  %464 = vmatprep.subr.mxu0 0.0
  %465 = vmatpush1.msra.mxu0 0.0
  %466 = vmatprep.subr.mxu0 0.0
  %467 = vmatpush1.msra.mxu0 0.0
  %468 = vmatprep.subr.mxu0 0.0
  %469 = vmatpush1.msra.mxu0 0.0
  %470 = vmatprep.subr.mxu0 0.0
  %471 = vmatpush1.msra.mxu0 0.0
  %472 = vmatprep.subr.mxu0 0.0
  %473 = vmatpush1.msra.mxu0 0.0
  %474 = vmatprep.subr.mxu0 0.0
  %475 = vmatpush1.msra.mxu0 0.0
  %476 = vmatprep.subr.mxu0 0.0
  %477 = vmatpush1.msra.mxu0 %v441
  %478 = vmatprep.subr.mxu0 0.0
  %479 = vmatpush2.msra.mxu0 0.0
  %480 = vmatprep.subr.mxu0 0.0
  %481 = vmatpush2.msra.mxu0 0.0
  %482 = vmatprep.subr.mxu0 0.0
  %483 = vmatpush2.msra.mxu0 0.0
  %484 = vmatprep.subr.mxu0 0.0
  %485 = vmatpush2.msra.mxu0 0.0
  %486 = vmatprep.subr.mxu0 0.0
  %487 = vmatpush2.msra.mxu0 0.0
  %488 = vmatprep.subr.mxu0 0.0
  %489 = vmatpush2.msra.mxu0 0.0
  %490 = vmatprep.subr.mxu0 0.0
  %491 = vmatpush2.msra.mxu0 0.0
  %492 = vmatprep.subr.mxu0 0.0
  %493 = vmatpush2.msra.mxu0 0.0
  %494 = vmatprep.subr.mxu0 0.0
  %495 = vmatpush2.msra.mxu0 0.0
  %496 = vmatprep.subr.mxu0 0.0
  %497 = vmatpush2.msra.mxu0 0.0
  %498 = vmatprep.subr.mxu0 0.0
  %499 = vmatpush2.msra.mxu0 0.0
  %500 = vmatprep.subr.mxu0 0.0
  %501 = vmatpush2.msra.mxu0 0.0
  %502 = vmatprep.subr.mxu0 0.0
  %503 = vmatpush2.msra.mxu0 0.0
  %504 = vmatprep.subr.mxu0 0.0
  %505 = vmatpush2.msra.mxu0 0.0
  %506 = vmatprep.subr.mxu0 0.0
  %507 = vmatpush2.msra.mxu0 0.0
  %508 = vmatprep.subr.mxu0 0.0
  %509 = vmatpush2.msra.mxu0 0.0
  %510 = vmatprep.mubr.f32.mxu0 0.0
  %511 = vmatmul.mubr.f32.gmra.mxu0 %v444
  %v512 = vpop.f32.mrf.mxu0
  %v513 = vadd.f32 0.0, %v512
  %v514 = vpop.f32.mrf.mxu0
  %515 = vdwg.mxu0
  %v517 = vsel %vm187, %v513, 0
  %519 = vmatprep.subr.mxu0 0.0
  %520 = vmatpush1.msra.mxu0 0.0
  %521 = vmatprep.subr.mxu0 0.0
  %522 = vmatpush1.msra.mxu0 0.0
  %523 = vmatprep.subr.mxu0 0.0
  %524 = vmatpush1.msra.mxu0 0.0
  %525 = vmatprep.subr.mxu0 0.0
  %526 = vmatpush1.msra.mxu0 0.0
  %527 = vmatprep.subr.mxu0 0.0
  %528 = vmatpush1.msra.mxu0 0.0
  %529 = vmatprep.subr.mxu0 0.0
  %530 = vmatpush1.msra.mxu0 0.0
  %531 = vmatprep.subr.mxu0 0.0
  %532 = vmatpush1.msra.mxu0 0.0
  %533 = vmatprep.subr.mxu0 0.0
  %534 = vmatpush1.msra.mxu0 0.0
  %535 = vmatprep.subr.mxu0 0.0
  %536 = vmatpush1.msra.mxu0 0.0
  %537 = vmatprep.subr.mxu0 0.0
  %538 = vmatpush1.msra.mxu0 0.0
  %539 = vmatprep.subr.mxu0 0.0
  %540 = vmatpush1.msra.mxu0 0.0
  %541 = vmatprep.subr.mxu0 0.0
  %542 = vmatpush1.msra.mxu0 0.0
  %543 = vmatprep.subr.mxu0 0.0
  %544 = vmatpush1.msra.mxu0 0.0
  %545 = vmatprep.subr.mxu0 0.0
  %546 = vmatpush1.msra.mxu0 0.0
  %547 = vmatprep.subr.mxu0 0.0
  %548 = vmatpush1.msra.mxu0 0.0
  %549 = vmatprep.subr.mxu0 0.0
  %550 = vmatpush1.msra.mxu0 %v178
  %551 = vmatprep.subr.mxu0 0.0
  %552 = vmatpush2.msra.mxu0 0.0
  %553 = vmatprep.subr.mxu0 0.0
  %554 = vmatpush2.msra.mxu0 0.0
  %555 = vmatprep.subr.mxu0 0.0
  %556 = vmatpush2.msra.mxu0 0.0
  %557 = vmatprep.subr.mxu0 0.0
  %558 = vmatpush2.msra.mxu0 0.0
  %559 = vmatprep.subr.mxu0 0.0
  %560 = vmatpush2.msra.mxu0 0.0
  %561 = vmatprep.subr.mxu0 0.0
  %562 = vmatpush2.msra.mxu0 0.0
  %563 = vmatprep.subr.mxu0 0.0
  %564 = vmatpush2.msra.mxu0 0.0
  %565 = vmatprep.subr.mxu0 0.0
  %566 = vmatpush2.msra.mxu0 0.0
  %567 = vmatprep.subr.mxu0 0.0
  %568 = vmatpush2.msra.mxu0 0.0
  %569 = vmatprep.subr.mxu0 0.0
  %570 = vmatpush2.msra.mxu0 0.0
  %571 = vmatprep.subr.mxu0 0.0
  %572 = vmatpush2.msra.mxu0 0.0
  %573 = vmatprep.subr.mxu0 0.0
  %574 = vmatpush2.msra.mxu0 0.0
  %575 = vmatprep.subr.mxu0 0.0
  %576 = vmatpush2.msra.mxu0 0.0
  %577 = vmatprep.subr.mxu0 0.0
  %578 = vmatpush2.msra.mxu0 0.0
  %579 = vmatprep.subr.mxu0 0.0
  %580 = vmatpush2.msra.mxu0 0.0
  %581 = vmatprep.subr.mxu0 0.0
  %582 = vmatpush2.msra.mxu0 0.0
  %583 = vmatprep.mubr.f32.mxu0 0.0
  %584 = vmatmul.mubr.f32.gmra.mxu0 %v517
  %v585 = vpop.f32.mrf.mxu0
  %v586 = vadd.f32 0.0, %v585
  %v587 = vpop.f32.mrf.mxu0
  %588 = vdwg.mxu0
  %v590 = vsel %vm187, %v347, 0
  %592 = vmatprep.subr.mxu0 0.0
  %593 = vmatpush1.msra.mxu0 0.0
  %594 = vmatprep.subr.mxu0 0.0
  %595 = vmatpush1.msra.mxu0 0.0
  %596 = vmatprep.subr.mxu0 0.0
  %597 = vmatpush1.msra.mxu0 0.0
  %598 = vmatprep.subr.mxu0 0.0
  %599 = vmatpush1.msra.mxu0 0.0
  %600 = vmatprep.subr.mxu0 0.0
  %601 = vmatpush1.msra.mxu0 0.0
  %602 = vmatprep.subr.mxu0 0.0
  %603 = vmatpush1.msra.mxu0 0.0
  %604 = vmatprep.subr.mxu0 0.0
  %605 = vmatpush1.msra.mxu0 0.0
  %606 = vmatprep.subr.mxu0 0.0
  %607 = vmatpush1.msra.mxu0 0.0
  %608 = vmatprep.subr.mxu0 0.0
  %609 = vmatpush1.msra.mxu0 0.0
  %610 = vmatprep.subr.mxu0 0.0
  %611 = vmatpush1.msra.mxu0 0.0
  %612 = vmatprep.subr.mxu0 0.0
  %613 = vmatpush1.msra.mxu0 0.0
  %614 = vmatprep.subr.mxu0 0.0
  %615 = vmatpush1.msra.mxu0 0.0
  %616 = vmatprep.subr.mxu0 0.0
  %617 = vmatpush1.msra.mxu0 0.0
  %618 = vmatprep.subr.mxu0 0.0
  %619 = vmatpush1.msra.mxu0 0.0
  %620 = vmatprep.subr.mxu0 0.0
  %621 = vmatpush1.msra.mxu0 0.0
  %622 = vmatprep.subr.mxu0 0.0
  %623 = vmatpush1.msra.mxu0 %v177
  %624 = vmatprep.subr.mxu0 0.0
  %625 = vmatpush2.msra.mxu0 0.0
  %626 = vmatprep.subr.mxu0 0.0
  %627 = vmatpush2.msra.mxu0 0.0
  %628 = vmatprep.subr.mxu0 0.0
  %629 = vmatpush2.msra.mxu0 0.0
  %630 = vmatprep.subr.mxu0 0.0
  %631 = vmatpush2.msra.mxu0 0.0
  %632 = vmatprep.subr.mxu0 0.0
  %633 = vmatpush2.msra.mxu0 0.0
  %634 = vmatprep.subr.mxu0 0.0
  %635 = vmatpush2.msra.mxu0 0.0
  %636 = vmatprep.subr.mxu0 0.0
  %637 = vmatpush2.msra.mxu0 0.0
  %638 = vmatprep.subr.mxu0 0.0
  %639 = vmatpush2.msra.mxu0 0.0
  %640 = vmatprep.subr.mxu0 0.0
  %641 = vmatpush2.msra.mxu0 0.0
  %642 = vmatprep.subr.mxu0 0.0
  %643 = vmatpush2.msra.mxu0 0.0
  %644 = vmatprep.subr.mxu0 0.0
  %645 = vmatpush2.msra.mxu0 0.0
  %646 = vmatprep.subr.mxu0 0.0
  %647 = vmatpush2.msra.mxu0 0.0
  %648 = vmatprep.subr.mxu0 0.0
  %649 = vmatpush2.msra.mxu0 0.0
  %650 = vmatprep.subr.mxu0 0.0
  %651 = vmatpush2.msra.mxu0 0.0
  %652 = vmatprep.subr.mxu0 0.0
  %653 = vmatpush2.msra.mxu0 0.0
  %654 = vmatprep.subr.mxu0 0.0
  %655 = vmatpush2.msra.mxu0 0.0
  %656 = vmatprep.mubr.f32.mxu0 0.0
  %657 = vmatmul.mubr.f32.gmra.mxu0 %v590
  %v658 = vpop.f32.mrf.mxu0
  %v659 = vadd.f32 %v586, %v658
  %v660 = vpop.f32.mrf.mxu0
  %661 = vdwg.mxu0
  %662 = vrot.lane.b32.xlu0 %v169, 112
  %v663 = vpop.permute.xlu0 %662
  %664 = vrot.lane.b32.xlu0 %v169, 80
  %v665 = vpop.permute.xlu0 %664
  %v666 = vsel %vm187, %v663, 0
  %v668 = vsel %vm187, %v665, 0
  %670 = vmatprep.subr.mxu0 0.0
  %671 = vmatpush1.xpose.msra.mxu0 0.0
  %672 = vmatprep.subr.mxu0 0.0
  %673 = vmatpush1.xpose.msra.mxu0 0.0
  %674 = vmatprep.subr.mxu0 0.0
  %675 = vmatpush1.xpose.msra.mxu0 0.0
  %676 = vmatprep.subr.mxu0 0.0
  %677 = vmatpush1.xpose.msra.mxu0 0.0
  %678 = vmatprep.subr.mxu0 0.0
  %679 = vmatpush1.xpose.msra.mxu0 0.0
  %680 = vmatprep.subr.mxu0 0.0
  %681 = vmatpush1.xpose.msra.mxu0 0.0
  %682 = vmatprep.subr.mxu0 0.0
  %683 = vmatpush1.xpose.msra.mxu0 0.0
  %684 = vmatprep.subr.mxu0 0.0
  %685 = vmatpush1.xpose.msra.mxu0 0.0
  %686 = vmatprep.subr.mxu0 0.0
  %687 = vmatpush1.xpose.msra.mxu0 0.0
  %688 = vmatprep.subr.mxu0 0.0
  %689 = vmatpush1.xpose.msra.mxu0 0.0
  %690 = vmatprep.subr.mxu0 0.0
  %691 = vmatpush1.xpose.msra.mxu0 0.0
  %692 = vmatprep.subr.mxu0 0.0
  %693 = vmatpush1.xpose.msra.mxu0 0.0
  %694 = vmatprep.subr.mxu0 0.0
  %695 = vmatpush1.xpose.msra.mxu0 0.0
  %696 = vmatprep.subr.mxu0 0.0
  %697 = vmatpush1.xpose.msra.mxu0 0.0
  %698 = vmatprep.subr.mxu0 0.0
  %699 = vmatpush1.xpose.msra.mxu0 0.0
  %700 = vmatprep.subr.mxu0 0.0
  %701 = vmatpush1.xpose.msra.mxu0 %v668
  %702 = vmatprep.subr.mxu0 0.0
  %703 = vmatpush2.xpose.msra.mxu0 0.0
  %704 = vmatprep.subr.mxu0 0.0
  %705 = vmatpush2.xpose.msra.mxu0 0.0
  %706 = vmatprep.subr.mxu0 0.0
  %707 = vmatpush2.xpose.msra.mxu0 0.0
  %708 = vmatprep.subr.mxu0 0.0
  %709 = vmatpush2.xpose.msra.mxu0 0.0
  %710 = vmatprep.subr.mxu0 0.0
  %711 = vmatpush2.xpose.msra.mxu0 0.0
  %712 = vmatprep.subr.mxu0 0.0
  %713 = vmatpush2.xpose.msra.mxu0 0.0
  %714 = vmatprep.subr.mxu0 0.0
  %715 = vmatpush2.xpose.msra.mxu0 0.0
  %716 = vmatprep.subr.mxu0 0.0
  %717 = vmatpush2.xpose.msra.mxu0 0.0
  %718 = vmatprep.subr.mxu0 0.0
  %719 = vmatpush2.xpose.msra.mxu0 0.0
  %720 = vmatprep.subr.mxu0 0.0
  %721 = vmatpush2.xpose.msra.mxu0 0.0
  %722 = vmatprep.subr.mxu0 0.0
  %723 = vmatpush2.xpose.msra.mxu0 0.0
  %724 = vmatprep.subr.mxu0 0.0
  %725 = vmatpush2.xpose.msra.mxu0 0.0
  %726 = vmatprep.subr.mxu0 0.0
  %727 = vmatpush2.xpose.msra.mxu0 0.0
  %728 = vmatprep.subr.mxu0 0.0
  %729 = vmatpush2.xpose.msra.mxu0 0.0
  %730 = vmatprep.subr.mxu0 0.0
  %731 = vmatpush2.xpose.msra.mxu0 0.0
  %732 = vmatprep.subr.mxu0 0.0
  %733 = vmatpush2.xpose.msra.mxu0 0.0
  %734 = vmatprep.mubr.f32.mxu0 0.0
  %735 = vmatmul.mubr.f32.gmra.mxu0 %v666
  %v736 = vpop.f32.mrf.mxu0
  %v737 = vadd.f32 0.0, %v736
  %v738 = vpop.f32.mrf.mxu0
  %739 = vdwg.mxu0
  %v740 = vmul.f32 %v737, 0.35355338
  %v741 = vsel %vm187, %v740, -inf
  %742 = vmax.xlane.f32.xlu0 %v741
  %v743 = vpop.xlane.xlu0 %742
  %v744 = vsub.f32 %v740, %v743
  %v745 = vmul.f32 %v744, 1.442695
  %v746 = vpow.pop %v745
  %v747 = vsel %vm187, %v746, 0.0
  %748 = vadd.xlane.f32.xlu0 %v747
  %v749 = vpop.xlane.xlu0 %748
  %v750 = vrcp.pop %v749
  %v751 = vmul.f32 %v746, %v750
  %752 = vrot.lane.b32.xlu0 %v169, 48
  %v753 = vpop.permute.xlu0 %752
  %v756 = vsel %vm187, %v751, 0
  %758 = vmatprep.subr.mxu0 0.0
  %759 = vmatpush1.msra.mxu0 0.0
  %760 = vmatprep.subr.mxu0 0.0
  %761 = vmatpush1.msra.mxu0 0.0
  %762 = vmatprep.subr.mxu0 0.0
  %763 = vmatpush1.msra.mxu0 0.0
  %764 = vmatprep.subr.mxu0 0.0
  %765 = vmatpush1.msra.mxu0 0.0
  %766 = vmatprep.subr.mxu0 0.0
  %767 = vmatpush1.msra.mxu0 0.0
  %768 = vmatprep.subr.mxu0 0.0
  %769 = vmatpush1.msra.mxu0 0.0
  %770 = vmatprep.subr.mxu0 0.0
  %771 = vmatpush1.msra.mxu0 0.0
  %772 = vmatprep.subr.mxu0 0.0
  %773 = vmatpush1.msra.mxu0 0.0
  %774 = vmatprep.subr.mxu0 0.0
  %775 = vmatpush1.msra.mxu0 0.0
  %776 = vmatprep.subr.mxu0 0.0
  %777 = vmatpush1.msra.mxu0 0.0
  %778 = vmatprep.subr.mxu0 0.0
  %779 = vmatpush1.msra.mxu0 0.0
  %780 = vmatprep.subr.mxu0 0.0
  %781 = vmatpush1.msra.mxu0 0.0
  %782 = vmatprep.subr.mxu0 0.0
  %783 = vmatpush1.msra.mxu0 0.0
  %784 = vmatprep.subr.mxu0 0.0
  %785 = vmatpush1.msra.mxu0 0.0
  %786 = vmatprep.subr.mxu0 0.0
  %787 = vmatpush1.msra.mxu0 0.0
  %788 = vmatprep.subr.mxu0 0.0
  %789 = vmatpush1.msra.mxu0 %v753
  %790 = vmatprep.subr.mxu0 0.0
  %791 = vmatpush2.msra.mxu0 0.0
  %792 = vmatprep.subr.mxu0 0.0
  %793 = vmatpush2.msra.mxu0 0.0
  %794 = vmatprep.subr.mxu0 0.0
  %795 = vmatpush2.msra.mxu0 0.0
  %796 = vmatprep.subr.mxu0 0.0
  %797 = vmatpush2.msra.mxu0 0.0
  %798 = vmatprep.subr.mxu0 0.0
  %799 = vmatpush2.msra.mxu0 0.0
  %800 = vmatprep.subr.mxu0 0.0
  %801 = vmatpush2.msra.mxu0 0.0
  %802 = vmatprep.subr.mxu0 0.0
  %803 = vmatpush2.msra.mxu0 0.0
  %804 = vmatprep.subr.mxu0 0.0
  %805 = vmatpush2.msra.mxu0 0.0
  %806 = vmatprep.subr.mxu0 0.0
  %807 = vmatpush2.msra.mxu0 0.0
  %808 = vmatprep.subr.mxu0 0.0
  %809 = vmatpush2.msra.mxu0 0.0
  %810 = vmatprep.subr.mxu0 0.0
  %811 = vmatpush2.msra.mxu0 0.0
  %812 = vmatprep.subr.mxu0 0.0
  %813 = vmatpush2.msra.mxu0 0.0
  %814 = vmatprep.subr.mxu0 0.0
  %815 = vmatpush2.msra.mxu0 0.0
  %816 = vmatprep.subr.mxu0 0.0
  %817 = vmatpush2.msra.mxu0 0.0
  %818 = vmatprep.subr.mxu0 0.0
  %819 = vmatpush2.msra.mxu0 0.0
  %820 = vmatprep.subr.mxu0 0.0
  %821 = vmatpush2.msra.mxu0 0.0
  %822 = vmatprep.mubr.f32.mxu0 0.0
  %823 = vmatmul.mubr.f32.gmra.mxu0 %v756
  %v824 = vpop.f32.mrf.mxu0
  %v825 = vadd.f32 0.0, %v824
  %v826 = vpop.f32.mrf.mxu0
  %827 = vdwg.mxu0
  %v829 = vsel %vm187, %v825, 0
  %831 = vmatprep.subr.mxu0 0.0
  %832 = vmatpush1.msra.mxu0 0.0
  %833 = vmatprep.subr.mxu0 0.0
  %834 = vmatpush1.msra.mxu0 0.0
  %835 = vmatprep.subr.mxu0 0.0
  %836 = vmatpush1.msra.mxu0 0.0
  %837 = vmatprep.subr.mxu0 0.0
  %838 = vmatpush1.msra.mxu0 0.0
  %839 = vmatprep.subr.mxu0 0.0
  %840 = vmatpush1.msra.mxu0 0.0
  %841 = vmatprep.subr.mxu0 0.0
  %842 = vmatpush1.msra.mxu0 0.0
  %843 = vmatprep.subr.mxu0 0.0
  %844 = vmatpush1.msra.mxu0 0.0
  %845 = vmatprep.subr.mxu0 0.0
  %846 = vmatpush1.msra.mxu0 0.0
  %847 = vmatprep.subr.mxu0 0.0
  %848 = vmatpush1.msra.mxu0 0.0
  %849 = vmatprep.subr.mxu0 0.0
  %850 = vmatpush1.msra.mxu0 0.0
  %851 = vmatprep.subr.mxu0 0.0
  %852 = vmatpush1.msra.mxu0 0.0
  %853 = vmatprep.subr.mxu0 0.0
  %854 = vmatpush1.msra.mxu0 0.0
  %855 = vmatprep.subr.mxu0 0.0
  %856 = vmatpush1.msra.mxu0 0.0
  %857 = vmatprep.subr.mxu0 0.0
  %858 = vmatpush1.msra.mxu0 0.0
  %859 = vmatprep.subr.mxu0 0.0
  %860 = vmatpush1.msra.mxu0 0.0
  %861 = vmatprep.subr.mxu0 0.0
  %862 = vmatpush1.msra.mxu0 %v179
  %863 = vmatprep.subr.mxu0 0.0
  %864 = vmatpush2.msra.mxu0 0.0
  %865 = vmatprep.subr.mxu0 0.0
  %866 = vmatpush2.msra.mxu0 0.0
  %867 = vmatprep.subr.mxu0 0.0
  %868 = vmatpush2.msra.mxu0 0.0
  %869 = vmatprep.subr.mxu0 0.0
  %870 = vmatpush2.msra.mxu0 0.0
  %871 = vmatprep.subr.mxu0 0.0
  %872 = vmatpush2.msra.mxu0 0.0
  %873 = vmatprep.subr.mxu0 0.0
  %874 = vmatpush2.msra.mxu0 0.0
  %875 = vmatprep.subr.mxu0 0.0
  %876 = vmatpush2.msra.mxu0 0.0
  %877 = vmatprep.subr.mxu0 0.0
  %878 = vmatpush2.msra.mxu0 0.0
  %879 = vmatprep.subr.mxu0 0.0
  %880 = vmatpush2.msra.mxu0 0.0
  %881 = vmatprep.subr.mxu0 0.0
  %882 = vmatpush2.msra.mxu0 0.0
  %883 = vmatprep.subr.mxu0 0.0
  %884 = vmatpush2.msra.mxu0 0.0
  %885 = vmatprep.subr.mxu0 0.0
  %886 = vmatpush2.msra.mxu0 0.0
  %887 = vmatprep.subr.mxu0 0.0
  %888 = vmatpush2.msra.mxu0 0.0
  %889 = vmatprep.subr.mxu0 0.0
  %890 = vmatpush2.msra.mxu0 0.0
  %891 = vmatprep.subr.mxu0 0.0
  %892 = vmatpush2.msra.mxu0 0.0
  %893 = vmatprep.subr.mxu0 0.0
  %894 = vmatpush2.msra.mxu0 0.0
  %895 = vmatprep.mubr.f32.mxu0 0.0
  %896 = vmatmul.mubr.f32.gmra.mxu0 %v829
  %v897 = vpop.f32.mrf.mxu0
  %v898 = vadd.f32 0.0, %v897
  %v899 = vpop.f32.mrf.mxu0
  %900 = vdwg.mxu0
  %v901 = vadd.f32 %v659, %v898
  %902 = vrot.lane.b32.xlu0 %v169, 104
  %v903 = vpop.permute.xlu0 %902
  %904 = vrot.lane.b32.xlu0 %v169, 72
  %v905 = vpop.permute.xlu0 %904
  %v906 = vsel %vm187, %v903, 0
  %v908 = vsel %vm187, %v905, 0
  %910 = vmatprep.subr.mxu0 0.0
  %911 = vmatpush1.xpose.msra.mxu0 0.0
  %912 = vmatprep.subr.mxu0 0.0
  %913 = vmatpush1.xpose.msra.mxu0 0.0
  %914 = vmatprep.subr.mxu0 0.0
  %915 = vmatpush1.xpose.msra.mxu0 0.0
  %916 = vmatprep.subr.mxu0 0.0
  %917 = vmatpush1.xpose.msra.mxu0 0.0
  %918 = vmatprep.subr.mxu0 0.0
  %919 = vmatpush1.xpose.msra.mxu0 0.0
  %920 = vmatprep.subr.mxu0 0.0
  %921 = vmatpush1.xpose.msra.mxu0 0.0
  %922 = vmatprep.subr.mxu0 0.0
  %923 = vmatpush1.xpose.msra.mxu0 0.0
  %924 = vmatprep.subr.mxu0 0.0
  %925 = vmatpush1.xpose.msra.mxu0 0.0
  %926 = vmatprep.subr.mxu0 0.0
  %927 = vmatpush1.xpose.msra.mxu0 0.0
  %928 = vmatprep.subr.mxu0 0.0
  %929 = vmatpush1.xpose.msra.mxu0 0.0
  %930 = vmatprep.subr.mxu0 0.0
  %931 = vmatpush1.xpose.msra.mxu0 0.0
  %932 = vmatprep.subr.mxu0 0.0
  %933 = vmatpush1.xpose.msra.mxu0 0.0
  %934 = vmatprep.subr.mxu0 0.0
  %935 = vmatpush1.xpose.msra.mxu0 0.0
  %936 = vmatprep.subr.mxu0 0.0
  %937 = vmatpush1.xpose.msra.mxu0 0.0
  %938 = vmatprep.subr.mxu0 0.0
  %939 = vmatpush1.xpose.msra.mxu0 0.0
  %940 = vmatprep.subr.mxu0 0.0
  %941 = vmatpush1.xpose.msra.mxu0 %v908
  %942 = vmatprep.subr.mxu0 0.0
  %943 = vmatpush2.xpose.msra.mxu0 0.0
  %944 = vmatprep.subr.mxu0 0.0
  %945 = vmatpush2.xpose.msra.mxu0 0.0
  %946 = vmatprep.subr.mxu0 0.0
  %947 = vmatpush2.xpose.msra.mxu0 0.0
  %948 = vmatprep.subr.mxu0 0.0
  %949 = vmatpush2.xpose.msra.mxu0 0.0
  %950 = vmatprep.subr.mxu0 0.0
  %951 = vmatpush2.xpose.msra.mxu0 0.0
  %952 = vmatprep.subr.mxu0 0.0
  %953 = vmatpush2.xpose.msra.mxu0 0.0
  %954 = vmatprep.subr.mxu0 0.0
  %955 = vmatpush2.xpose.msra.mxu0 0.0
  %956 = vmatprep.subr.mxu0 0.0
  %957 = vmatpush2.xpose.msra.mxu0 0.0
  %958 = vmatprep.subr.mxu0 0.0
  %959 = vmatpush2.xpose.msra.mxu0 0.0
  %960 = vmatprep.subr.mxu0 0.0
  %961 = vmatpush2.xpose.msra.mxu0 0.0
  %962 = vmatprep.subr.mxu0 0.0
  %963 = vmatpush2.xpose.msra.mxu0 0.0
  %964 = vmatprep.subr.mxu0 0.0
  %965 = vmatpush2.xpose.msra.mxu0 0.0
  %966 = vmatprep.subr.mxu0 0.0
  %967 = vmatpush2.xpose.msra.mxu0 0.0
  %968 = vmatprep.subr.mxu0 0.0
  %969 = vmatpush2.xpose.msra.mxu0 0.0
  %970 = vmatprep.subr.mxu0 0.0
  %971 = vmatpush2.xpose.msra.mxu0 0.0
  %972 = vmatprep.subr.mxu0 0.0
  %973 = vmatpush2.xpose.msra.mxu0 0.0
  %974 = vmatprep.mubr.f32.mxu0 0.0
  %975 = vmatmul.mubr.f32.gmra.mxu0 %v906
  %v976 = vpop.f32.mrf.mxu0
  %v977 = vadd.f32 0.0, %v976
  %v978 = vpop.f32.mrf.mxu0
  %979 = vdwg.mxu0
  %v980 = vmul.f32 %v977, 0.35355338
  %v981 = vsel %vm187, %v980, -inf
  %982 = vmax.xlane.f32.xlu0 %v981
  %v983 = vpop.xlane.xlu0 %982
  %v984 = vsub.f32 %v980, %v983
  %v985 = vmul.f32 %v984, 1.442695
  %v986 = vpow.pop %v985
  %v987 = vsel %vm187, %v986, 0.0
  %988 = vadd.xlane.f32.xlu0 %v987
  %v989 = vpop.xlane.xlu0 %988
  %v990 = vrcp.pop %v989
  %v991 = vmul.f32 %v986, %v990
  %992 = vrot.lane.b32.xlu0 %v169, 40
  %v993 = vpop.permute.xlu0 %992
  %v996 = vsel %vm187, %v991, 0
  %998 = vmatprep.subr.mxu0 0.0
  %999 = vmatpush1.msra.mxu0 0.0
  %1000 = vmatprep.subr.mxu0 0.0
  %1001 = vmatpush1.msra.mxu0 0.0
  %1002 = vmatprep.subr.mxu0 0.0
  %1003 = vmatpush1.msra.mxu0 0.0
  %1004 = vmatprep.subr.mxu0 0.0
  %1005 = vmatpush1.msra.mxu0 0.0
  %1006 = vmatprep.subr.mxu0 0.0
  %1007 = vmatpush1.msra.mxu0 0.0
  %1008 = vmatprep.subr.mxu0 0.0
  %1009 = vmatpush1.msra.mxu0 0.0
  %1010 = vmatprep.subr.mxu0 0.0
  %1011 = vmatpush1.msra.mxu0 0.0
  %1012 = vmatprep.subr.mxu0 0.0
  %1013 = vmatpush1.msra.mxu0 0.0
  %1014 = vmatprep.subr.mxu0 0.0
  %1015 = vmatpush1.msra.mxu0 0.0
  %1016 = vmatprep.subr.mxu0 0.0
  %1017 = vmatpush1.msra.mxu0 0.0
  %1018 = vmatprep.subr.mxu0 0.0
  %1019 = vmatpush1.msra.mxu0 0.0
  %1020 = vmatprep.subr.mxu0 0.0
  %1021 = vmatpush1.msra.mxu0 0.0
  %1022 = vmatprep.subr.mxu0 0.0
  %1023 = vmatpush1.msra.mxu0 0.0
  %1024 = vmatprep.subr.mxu0 0.0
  %1025 = vmatpush1.msra.mxu0 0.0
  %1026 = vmatprep.subr.mxu0 0.0
  %1027 = vmatpush1.msra.mxu0 0.0
  %1028 = vmatprep.subr.mxu0 0.0
  %1029 = vmatpush1.msra.mxu0 %v993
  %1030 = vmatprep.subr.mxu0 0.0
  %1031 = vmatpush2.msra.mxu0 0.0
  %1032 = vmatprep.subr.mxu0 0.0
  %1033 = vmatpush2.msra.mxu0 0.0
  %1034 = vmatprep.subr.mxu0 0.0
  %1035 = vmatpush2.msra.mxu0 0.0
  %1036 = vmatprep.subr.mxu0 0.0
  %1037 = vmatpush2.msra.mxu0 0.0
  %1038 = vmatprep.subr.mxu0 0.0
  %1039 = vmatpush2.msra.mxu0 0.0
  %1040 = vmatprep.subr.mxu0 0.0
  %1041 = vmatpush2.msra.mxu0 0.0
  %1042 = vmatprep.subr.mxu0 0.0
  %1043 = vmatpush2.msra.mxu0 0.0
  %1044 = vmatprep.subr.mxu0 0.0
  %1045 = vmatpush2.msra.mxu0 0.0
  %1046 = vmatprep.subr.mxu0 0.0
  %1047 = vmatpush2.msra.mxu0 0.0
  %1048 = vmatprep.subr.mxu0 0.0
  %1049 = vmatpush2.msra.mxu0 0.0
  %1050 = vmatprep.subr.mxu0 0.0
  %1051 = vmatpush2.msra.mxu0 0.0
  %1052 = vmatprep.subr.mxu0 0.0
  %1053 = vmatpush2.msra.mxu0 0.0
  %1054 = vmatprep.subr.mxu0 0.0
  %1055 = vmatpush2.msra.mxu0 0.0
  %1056 = vmatprep.subr.mxu0 0.0
  %1057 = vmatpush2.msra.mxu0 0.0
  %1058 = vmatprep.subr.mxu0 0.0
  %1059 = vmatpush2.msra.mxu0 0.0
  %1060 = vmatprep.subr.mxu0 0.0
  %1061 = vmatpush2.msra.mxu0 0.0
  %1062 = vmatprep.mubr.f32.mxu0 0.0
  %1063 = vmatmul.mubr.f32.gmra.mxu0 %v996
  %v1064 = vpop.f32.mrf.mxu0
  %v1065 = vadd.f32 0.0, %v1064
  %v1066 = vpop.f32.mrf.mxu0
  %1067 = vdwg.mxu0
  %v1069 = vsel %vm187, %v1065, 0
  %1071 = vmatprep.subr.mxu0 0.0
  %1072 = vmatpush1.msra.mxu0 0.0
  %1073 = vmatprep.subr.mxu0 0.0
  %1074 = vmatpush1.msra.mxu0 0.0
  %1075 = vmatprep.subr.mxu0 0.0
  %1076 = vmatpush1.msra.mxu0 0.0
  %1077 = vmatprep.subr.mxu0 0.0
  %1078 = vmatpush1.msra.mxu0 0.0
  %1079 = vmatprep.subr.mxu0 0.0
  %1080 = vmatpush1.msra.mxu0 0.0
  %1081 = vmatprep.subr.mxu0 0.0
  %1082 = vmatpush1.msra.mxu0 0.0
  %1083 = vmatprep.subr.mxu0 0.0
  %1084 = vmatpush1.msra.mxu0 0.0
  %1085 = vmatprep.subr.mxu0 0.0
  %1086 = vmatpush1.msra.mxu0 0.0
  %1087 = vmatprep.subr.mxu0 0.0
  %1088 = vmatpush1.msra.mxu0 0.0
  %1089 = vmatprep.subr.mxu0 0.0
  %1090 = vmatpush1.msra.mxu0 0.0
  %1091 = vmatprep.subr.mxu0 0.0
  %1092 = vmatpush1.msra.mxu0 0.0
  %1093 = vmatprep.subr.mxu0 0.0
  %1094 = vmatpush1.msra.mxu0 0.0
  %1095 = vmatprep.subr.mxu0 0.0
  %1096 = vmatpush1.msra.mxu0 0.0
  %1097 = vmatprep.subr.mxu0 0.0
  %1098 = vmatpush1.msra.mxu0 0.0
  %1099 = vmatprep.subr.mxu0 0.0
  %1100 = vmatpush1.msra.mxu0 0.0
  %1101 = vmatprep.subr.mxu0 0.0
  %1102 = vmatpush1.msra.mxu0 %v180
  %1103 = vmatprep.subr.mxu0 0.0
  %1104 = vmatpush2.msra.mxu0 0.0
  %1105 = vmatprep.subr.mxu0 0.0
  %1106 = vmatpush2.msra.mxu0 0.0
  %1107 = vmatprep.subr.mxu0 0.0
  %1108 = vmatpush2.msra.mxu0 0.0
  %1109 = vmatprep.subr.mxu0 0.0
  %1110 = vmatpush2.msra.mxu0 0.0
  %1111 = vmatprep.subr.mxu0 0.0
  %1112 = vmatpush2.msra.mxu0 0.0
  %1113 = vmatprep.subr.mxu0 0.0
  %1114 = vmatpush2.msra.mxu0 0.0
  %1115 = vmatprep.subr.mxu0 0.0
  %1116 = vmatpush2.msra.mxu0 0.0
  %1117 = vmatprep.subr.mxu0 0.0
  %1118 = vmatpush2.msra.mxu0 0.0
  %1119 = vmatprep.subr.mxu0 0.0
  %1120 = vmatpush2.msra.mxu0 0.0
  %1121 = vmatprep.subr.mxu0 0.0
  %1122 = vmatpush2.msra.mxu0 0.0
  %1123 = vmatprep.subr.mxu0 0.0
  %1124 = vmatpush2.msra.mxu0 0.0
  %1125 = vmatprep.subr.mxu0 0.0
  %1126 = vmatpush2.msra.mxu0 0.0
  %1127 = vmatprep.subr.mxu0 0.0
  %1128 = vmatpush2.msra.mxu0 0.0
  %1129 = vmatprep.subr.mxu0 0.0
  %1130 = vmatpush2.msra.mxu0 0.0
  %1131 = vmatprep.subr.mxu0 0.0
  %1132 = vmatpush2.msra.mxu0 0.0
  %1133 = vmatprep.subr.mxu0 0.0
  %1134 = vmatpush2.msra.mxu0 0.0
  %1135 = vmatprep.mubr.f32.mxu0 0.0
  %1136 = vmatmul.mubr.f32.gmra.mxu0 %v1069
  %v1137 = vpop.f32.mrf.mxu0
  %v1138 = vadd.f32 0.0, %v1137
  %v1139 = vpop.f32.mrf.mxu0
  %1140 = vdwg.mxu0
  %v1141 = vadd.f32 %v901, %v1138
  %v1143 = vlaneseq
  %v1144 = vshrl.u32 %v1143, 7
  %v1145 = vsub.s32 0, %v1144
  %v1146 = vrot.slane %v181, %v1145
  %v1148 = vadd.f32 %v1141, %v1146
  %v1149 = vadd.f32 %v89, %v1148
  %v1150 = vsel %vm95, %v1149, 0.0
  %v1151 = vrot.slane %v1150, 4
  %v1152 = vadd.f32 %v1150, %v1151
  %v1153 = vrot.slane %v1152, 2
  %v1154 = vadd.f32 %v1152, %v1153
  %v1155 = vrot.slane %v1154, 1
  %v1156 = vadd.f32 %v1154, %v1155
  %v1157 = vrcp.pop 8.0
  %v1158 = vmul.f32 %v1156, %v1157
  %v1159 = vmul.f32 %v1149, %v1149
  %v1160 = vsel %vm95, %v1159, 0.0
  %v1161 = vrot.slane %v1160, 4
  %v1162 = vadd.f32 %v1160, %v1161
  %v1163 = vrot.slane %v1162, 2
  %v1164 = vadd.f32 %v1162, %v1163
  %v1165 = vrot.slane %v1164, 1
  %v1166 = vadd.f32 %v1164, %v1165
  %v1167 = vmul.f32 %v1166, %v1157
  %v1168 = vmul.f32 %v1158, %v1158
  %v1169 = vsub.f32 %v1167, %v1168
  %v1170 = vsub.f32 %v1149, %v1158
  %v1171 = vadd.f32 %v1169, 1e-05
  %v1172 = vrsqrt.pop %v1171
  %v1173 = vmul.f32 %v1170, %v1172
  %v1175 = vlaneseq
  %v1176 = vshrl.u32 %v1175, 7
  %v1177 = vsub.s32 0, %v1176
  %v1178 = vrot.slane %v182, %v1177
  %v1180 = vmul.f32 %v1173, %v1178
  %v1182 = vlaneseq
  %v1183 = vshrl.u32 %v1182, 7
  %v1184 = vsub.s32 0, %v1183
  %v1185 = vrot.slane %v183, %v1184
  %v1187 = vadd.f32 %v1180, %v1185
  %1188 = vst.msk [vmem:[#allocation2] sm:$0xff] %vm95, %v1187
  %1190 = vrot.lane.b32.xlu0 %v174, 96
  %v1191 = vpop.permute.xlu0 %1190
  %v1192 = vsel %vm187, %v174, 0
  %v1194 = vsel %vm187, %v1191, 0
  %1196 = vmatprep.subr.mxu0 0.0
  %1197 = vmatpush1.xpose.msra.mxu0 0.0
  %1198 = vmatprep.subr.mxu0 0.0
  %1199 = vmatpush1.xpose.msra.mxu0 0.0
  %1200 = vmatprep.subr.mxu0 0.0
  %1201 = vmatpush1.xpose.msra.mxu0 0.0
  %1202 = vmatprep.subr.mxu0 0.0
  %1203 = vmatpush1.xpose.msra.mxu0 0.0
  %1204 = vmatprep.subr.mxu0 0.0
  %1205 = vmatpush1.xpose.msra.mxu0 0.0
  %1206 = vmatprep.subr.mxu0 0.0
  %1207 = vmatpush1.xpose.msra.mxu0 0.0
  %1208 = vmatprep.subr.mxu0 0.0
  %1209 = vmatpush1.xpose.msra.mxu0 0.0
  %1210 = vmatprep.subr.mxu0 0.0
  %1211 = vmatpush1.xpose.msra.mxu0 0.0
  %1212 = vmatprep.subr.mxu0 0.0
  %1213 = vmatpush1.xpose.msra.mxu0 0.0
  %1214 = vmatprep.subr.mxu0 0.0
  %1215 = vmatpush1.xpose.msra.mxu0 0.0
  %1216 = vmatprep.subr.mxu0 0.0
  %1217 = vmatpush1.xpose.msra.mxu0 0.0
  %1218 = vmatprep.subr.mxu0 0.0
  %1219 = vmatpush1.xpose.msra.mxu0 0.0
  %1220 = vmatprep.subr.mxu0 0.0
  %1221 = vmatpush1.xpose.msra.mxu0 0.0
  %1222 = vmatprep.subr.mxu0 0.0
  %1223 = vmatpush1.xpose.msra.mxu0 0.0
  %1224 = vmatprep.subr.mxu0 0.0
  %1225 = vmatpush1.xpose.msra.mxu0 0.0
  %1226 = vmatprep.subr.mxu0 0.0
  %1227 = vmatpush1.xpose.msra.mxu0 %v1194
  %1228 = vmatprep.subr.mxu0 0.0
  %1229 = vmatpush2.xpose.msra.mxu0 0.0
  %1230 = vmatprep.subr.mxu0 0.0
  %1231 = vmatpush2.xpose.msra.mxu0 0.0
  %1232 = vmatprep.subr.mxu0 0.0
  %1233 = vmatpush2.xpose.msra.mxu0 0.0
  %1234 = vmatprep.subr.mxu0 0.0
  %1235 = vmatpush2.xpose.msra.mxu0 0.0
  %1236 = vmatprep.subr.mxu0 0.0
  %1237 = vmatpush2.xpose.msra.mxu0 0.0
  %1238 = vmatprep.subr.mxu0 0.0
  %1239 = vmatpush2.xpose.msra.mxu0 0.0
  %1240 = vmatprep.subr.mxu0 0.0
  %1241 = vmatpush2.xpose.msra.mxu0 0.0
  %1242 = vmatprep.subr.mxu0 0.0
  %1243 = vmatpush2.xpose.msra.mxu0 0.0
  %1244 = vmatprep.subr.mxu0 0.0
  %1245 = vmatpush2.xpose.msra.mxu0 0.0
  %1246 = vmatprep.subr.mxu0 0.0
  %1247 = vmatpush2.xpose.msra.mxu0 0.0
  %1248 = vmatprep.subr.mxu0 0.0
  %1249 = vmatpush2.xpose.msra.mxu0 0.0
  %1250 = vmatprep.subr.mxu0 0.0
  %1251 = vmatpush2.xpose.msra.mxu0 0.0
  %1252 = vmatprep.subr.mxu0 0.0
  %1253 = vmatpush2.xpose.msra.mxu0 0.0
  %1254 = vmatprep.subr.mxu0 0.0
  %1255 = vmatpush2.xpose.msra.mxu0 0.0
  %1256 = vmatprep.subr.mxu0 0.0
  %1257 = vmatpush2.xpose.msra.mxu0 0.0
  %1258 = vmatprep.subr.mxu0 0.0
  %1259 = vmatpush2.xpose.msra.mxu0 0.0
  %1260 = vmatprep.mubr.f32.mxu0 0.0
  %1261 = vmatmul.mubr.f32.gmra.mxu0 %v1192
  %v1262 = vpop.f32.mrf.mxu0
  %v1263 = vadd.f32 0.0, %v1262
  %v1264 = vpop.f32.mrf.mxu0
  %1265 = vdwg.mxu0
  %v1266 = vmul.f32 %v1263, 0.35355338
  %v1267 = vsel %vm187, %v1266, -inf
  %1268 = vmax.xlane.f32.xlu0 %v1267
  %v1269 = vpop.xlane.xlu0 %1268
  %v1270 = vsub.f32 %v1266, %v1269
  %v1271 = vmul.f32 %v1270, 1.442695
  %v1272 = vpow.pop %v1271
  %v1273 = vsel %vm187, %v1272, 0.0
  %1274 = vadd.xlane.f32.xlu0 %v1273
  %v1275 = vpop.xlane.xlu0 %1274
  %v1276 = vrcp.pop %v1275
  %v1277 = vmul.f32 %v1272, %v1276
  %1278 = vrot.lane.b32.xlu0 %v174, 64
  %v1279 = vpop.permute.xlu0 %1278
  %v1282 = vsel %vm187, %v1277, 0
  %1284 = vmatprep.subr.mxu0 0.0
  %1285 = vmatpush1.msra.mxu0 0.0
  %1286 = vmatprep.subr.mxu0 0.0
  %1287 = vmatpush1.msra.mxu0 0.0
  %1288 = vmatprep.subr.mxu0 0.0
  %1289 = vmatpush1.msra.mxu0 0.0
  %1290 = vmatprep.subr.mxu0 0.0
  %1291 = vmatpush1.msra.mxu0 0.0
  %1292 = vmatprep.subr.mxu0 0.0
  %1293 = vmatpush1.msra.mxu0 0.0
  %1294 = vmatprep.subr.mxu0 0.0
  %1295 = vmatpush1.msra.mxu0 0.0
  %1296 = vmatprep.subr.mxu0 0.0
  %1297 = vmatpush1.msra.mxu0 0.0
  %1298 = vmatprep.subr.mxu0 0.0
  %1299 = vmatpush1.msra.mxu0 0.0
  %1300 = vmatprep.subr.mxu0 0.0
  %1301 = vmatpush1.msra.mxu0 0.0
  %1302 = vmatprep.subr.mxu0 0.0
  %1303 = vmatpush1.msra.mxu0 0.0
  %1304 = vmatprep.subr.mxu0 0.0
  %1305 = vmatpush1.msra.mxu0 0.0
  %1306 = vmatprep.subr.mxu0 0.0
  %1307 = vmatpush1.msra.mxu0 0.0
  %1308 = vmatprep.subr.mxu0 0.0
  %1309 = vmatpush1.msra.mxu0 0.0
  %1310 = vmatprep.subr.mxu0 0.0
  %1311 = vmatpush1.msra.mxu0 0.0
  %1312 = vmatprep.subr.mxu0 0.0
  %1313 = vmatpush1.msra.mxu0 0.0
  %1314 = vmatprep.subr.mxu0 0.0
  %1315 = vmatpush1.msra.mxu0 %v1279
  %1316 = vmatprep.subr.mxu0 0.0
  %1317 = vmatpush2.msra.mxu0 0.0
  %1318 = vmatprep.subr.mxu0 0.0
  %1319 = vmatpush2.msra.mxu0 0.0
  %1320 = vmatprep.subr.mxu0 0.0
  %1321 = vmatpush2.msra.mxu0 0.0
  %1322 = vmatprep.subr.mxu0 0.0
  %1323 = vmatpush2.msra.mxu0 0.0
  %1324 = vmatprep.subr.mxu0 0.0
  %1325 = vmatpush2.msra.mxu0 0.0
  %1326 = vmatprep.subr.mxu0 0.0
  %1327 = vmatpush2.msra.mxu0 0.0
  %1328 = vmatprep.subr.mxu0 0.0
  %1329 = vmatpush2.msra.mxu0 0.0
  %1330 = vmatprep.subr.mxu0 0.0
  %1331 = vmatpush2.msra.mxu0 0.0
  %1332 = vmatprep.subr.mxu0 0.0
  %1333 = vmatpush2.msra.mxu0 0.0
  %1334 = vmatprep.subr.mxu0 0.0
  %1335 = vmatpush2.msra.mxu0 0.0
  %1336 = vmatprep.subr.mxu0 0.0
  %1337 = vmatpush2.msra.mxu0 0.0
  %1338 = vmatprep.subr.mxu0 0.0
  %1339 = vmatpush2.msra.mxu0 0.0
  %1340 = vmatprep.subr.mxu0 0.0
  %1341 = vmatpush2.msra.mxu0 0.0
  %1342 = vmatprep.subr.mxu0 0.0
  %1343 = vmatpush2.msra.mxu0 0.0
  %1344 = vmatprep.subr.mxu0 0.0
  %1345 = vmatpush2.msra.mxu0 0.0
  %1346 = vmatprep.subr.mxu0 0.0
  %1347 = vmatpush2.msra.mxu0 0.0
  %1348 = vmatprep.mubr.f32.mxu0 0.0
  %1349 = vmatmul.mubr.f32.gmra.mxu0 %v1282
  %v1350 = vpop.f32.mrf.mxu0
  %v1351 = vadd.f32 0.0, %v1350
  %v1352 = vpop.f32.mrf.mxu0
  %1353 = vdwg.mxu0
  %1354 = vrot.lane.b32.xlu0 %v174, 120
  %v1355 = vpop.permute.xlu0 %1354
  %1356 = vrot.lane.b32.xlu0 %v174, 88
  %v1357 = vpop.permute.xlu0 %1356
  %v1358 = vsel %vm187, %v1355, 0
  %v1360 = vsel %vm187, %v1357, 0
  %1362 = vmatprep.subr.mxu0 0.0
  %1363 = vmatpush1.xpose.msra.mxu0 0.0
  %1364 = vmatprep.subr.mxu0 0.0
  %1365 = vmatpush1.xpose.msra.mxu0 0.0
  %1366 = vmatprep.subr.mxu0 0.0
  %1367 = vmatpush1.xpose.msra.mxu0 0.0
  %1368 = vmatprep.subr.mxu0 0.0
  %1369 = vmatpush1.xpose.msra.mxu0 0.0
  %1370 = vmatprep.subr.mxu0 0.0
  %1371 = vmatpush1.xpose.msra.mxu0 0.0
  %1372 = vmatprep.subr.mxu0 0.0
  %1373 = vmatpush1.xpose.msra.mxu0 0.0
  %1374 = vmatprep.subr.mxu0 0.0
  %1375 = vmatpush1.xpose.msra.mxu0 0.0
  %1376 = vmatprep.subr.mxu0 0.0
  %1377 = vmatpush1.xpose.msra.mxu0 0.0
  %1378 = vmatprep.subr.mxu0 0.0
  %1379 = vmatpush1.xpose.msra.mxu0 0.0
  %1380 = vmatprep.subr.mxu0 0.0
  %1381 = vmatpush1.xpose.msra.mxu0 0.0
  %1382 = vmatprep.subr.mxu0 0.0
  %1383 = vmatpush1.xpose.msra.mxu0 0.0
  %1384 = vmatprep.subr.mxu0 0.0
  %1385 = vmatpush1.xpose.msra.mxu0 0.0
  %1386 = vmatprep.subr.mxu0 0.0
  %1387 = vmatpush1.xpose.msra.mxu0 0.0
  %1388 = vmatprep.subr.mxu0 0.0
  %1389 = vmatpush1.xpose.msra.mxu0 0.0
  %1390 = vmatprep.subr.mxu0 0.0
  %1391 = vmatpush1.xpose.msra.mxu0 0.0
  %1392 = vmatprep.subr.mxu0 0.0
  %1393 = vmatpush1.xpose.msra.mxu0 %v1360
  %1394 = vmatprep.subr.mxu0 0.0
  %1395 = vmatpush2.xpose.msra.mxu0 0.0
  %1396 = vmatprep.subr.mxu0 0.0
  %1397 = vmatpush2.xpose.msra.mxu0 0.0
  %1398 = vmatprep.subr.mxu0 0.0
  %1399 = vmatpush2.xpose.msra.mxu0 0.0
  %1400 = vmatprep.subr.mxu0 0.0
  %1401 = vmatpush2.xpose.msra.mxu0 0.0
  %1402 = vmatprep.subr.mxu0 0.0
  %1403 = vmatpush2.xpose.msra.mxu0 0.0
  %1404 = vmatprep.subr.mxu0 0.0
  %1405 = vmatpush2.xpose.msra.mxu0 0.0
  %1406 = vmatprep.subr.mxu0 0.0
  %1407 = vmatpush2.xpose.msra.mxu0 0.0
  %1408 = vmatprep.subr.mxu0 0.0
  %1409 = vmatpush2.xpose.msra.mxu0 0.0
  %1410 = vmatprep.subr.mxu0 0.0
  %1411 = vmatpush2.xpose.msra.mxu0 0.0
  %1412 = vmatprep.subr.mxu0 0.0
  %1413 = vmatpush2.xpose.msra.mxu0 0.0
  %1414 = vmatprep.subr.mxu0 0.0
  %1415 = vmatpush2.xpose.msra.mxu0 0.0
  %1416 = vmatprep.subr.mxu0 0.0
  %1417 = vmatpush2.xpose.msra.mxu0 0.0
  %1418 = vmatprep.subr.mxu0 0.0
  %1419 = vmatpush2.xpose.msra.mxu0 0.0
  %1420 = vmatprep.subr.mxu0 0.0
  %1421 = vmatpush2.xpose.msra.mxu0 0.0
  %1422 = vmatprep.subr.mxu0 0.0
  %1423 = vmatpush2.xpose.msra.mxu0 0.0
  %1424 = vmatprep.subr.mxu0 0.0
  %1425 = vmatpush2.xpose.msra.mxu0 0.0
  %1426 = vmatprep.mubr.f32.mxu0 0.0
  %1427 = vmatmul.mubr.f32.gmra.mxu0 %v1358
  %v1428 = vpop.f32.mrf.mxu0
  %v1429 = vadd.f32 0.0, %v1428
  %v1430 = vpop.f32.mrf.mxu0
  %1431 = vdwg.mxu0
  %v1432 = vmul.f32 %v1429, 0.35355338
  %v1433 = vsel %vm187, %v1432, -inf
  %1434 = vmax.xlane.f32.xlu0 %v1433
  %v1435 = vpop.xlane.xlu0 %1434
  %v1436 = vsub.f32 %v1432, %v1435
  %v1437 = vmul.f32 %v1436, 1.442695
  %v1438 = vpow.pop %v1437
  %v1439 = vsel %vm187, %v1438, 0.0
  %1440 = vadd.xlane.f32.xlu0 %v1439
  %v1441 = vpop.xlane.xlu0 %1440
  %v1442 = vrcp.pop %v1441
  %v1443 = vmul.f32 %v1438, %v1442
  %1444 = vrot.lane.b32.xlu0 %v174, 56
  %v1445 = vpop.permute.xlu0 %1444
  %v1448 = vsel %vm187, %v1443, 0
  %1450 = vmatprep.subr.mxu0 0.0
  %1451 = vmatpush1.msra.mxu0 0.0
  %1452 = vmatprep.subr.mxu0 0.0
  %1453 = vmatpush1.msra.mxu0 0.0
  %1454 = vmatprep.subr.mxu0 0.0
  %1455 = vmatpush1.msra.mxu0 0.0
  %1456 = vmatprep.subr.mxu0 0.0
  %1457 = vmatpush1.msra.mxu0 0.0
  %1458 = vmatprep.subr.mxu0 0.0
  %1459 = vmatpush1.msra.mxu0 0.0
  %1460 = vmatprep.subr.mxu0 0.0
  %1461 = vmatpush1.msra.mxu0 0.0
  %1462 = vmatprep.subr.mxu0 0.0
  %1463 = vmatpush1.msra.mxu0 0.0
  %1464 = vmatprep.subr.mxu0 0.0
  %1465 = vmatpush1.msra.mxu0 0.0
  %1466 = vmatprep.subr.mxu0 0.0
  %1467 = vmatpush1.msra.mxu0 0.0
  %1468 = vmatprep.subr.mxu0 0.0
  %1469 = vmatpush1.msra.mxu0 0.0
  %1470 = vmatprep.subr.mxu0 0.0
  %1471 = vmatpush1.msra.mxu0 0.0
  %1472 = vmatprep.subr.mxu0 0.0
  %1473 = vmatpush1.msra.mxu0 0.0
  %1474 = vmatprep.subr.mxu0 0.0
  %1475 = vmatpush1.msra.mxu0 0.0
  %1476 = vmatprep.subr.mxu0 0.0
  %1477 = vmatpush1.msra.mxu0 0.0
  %1478 = vmatprep.subr.mxu0 0.0
  %1479 = vmatpush1.msra.mxu0 0.0
  %1480 = vmatprep.subr.mxu0 0.0
  %1481 = vmatpush1.msra.mxu0 %v1445
  %1482 = vmatprep.subr.mxu0 0.0
  %1483 = vmatpush2.msra.mxu0 0.0
  %1484 = vmatprep.subr.mxu0 0.0
  %1485 = vmatpush2.msra.mxu0 0.0
  %1486 = vmatprep.subr.mxu0 0.0
  %1487 = vmatpush2.msra.mxu0 0.0
  %1488 = vmatprep.subr.mxu0 0.0
  %1489 = vmatpush2.msra.mxu0 0.0
  %1490 = vmatprep.subr.mxu0 0.0
  %1491 = vmatpush2.msra.mxu0 0.0
  %1492 = vmatprep.subr.mxu0 0.0
  %1493 = vmatpush2.msra.mxu0 0.0
  %1494 = vmatprep.subr.mxu0 0.0
  %1495 = vmatpush2.msra.mxu0 0.0
  %1496 = vmatprep.subr.mxu0 0.0
  %1497 = vmatpush2.msra.mxu0 0.0
  %1498 = vmatprep.subr.mxu0 0.0
  %1499 = vmatpush2.msra.mxu0 0.0
  %1500 = vmatprep.subr.mxu0 0.0
  %1501 = vmatpush2.msra.mxu0 0.0
  %1502 = vmatprep.subr.mxu0 0.0
  %1503 = vmatpush2.msra.mxu0 0.0
  %1504 = vmatprep.subr.mxu0 0.0
  %1505 = vmatpush2.msra.mxu0 0.0
  %1506 = vmatprep.subr.mxu0 0.0
  %1507 = vmatpush2.msra.mxu0 0.0
  %1508 = vmatprep.subr.mxu0 0.0
  %1509 = vmatpush2.msra.mxu0 0.0
  %1510 = vmatprep.subr.mxu0 0.0
  %1511 = vmatpush2.msra.mxu0 0.0
  %1512 = vmatprep.subr.mxu0 0.0
  %1513 = vmatpush2.msra.mxu0 0.0
  %1514 = vmatprep.mubr.f32.mxu0 0.0
  %1515 = vmatmul.mubr.f32.gmra.mxu0 %v1448
  %v1516 = vpop.f32.mrf.mxu0
  %v1517 = vadd.f32 0.0, %v1516
  %v1518 = vpop.f32.mrf.mxu0
  %1519 = vdwg.mxu0
  %v1521 = vsel %vm187, %v1517, 0
  %1523 = vmatprep.subr.mxu0 0.0
  %1524 = vmatpush1.msra.mxu0 0.0
  %1525 = vmatprep.subr.mxu0 0.0
  %1526 = vmatpush1.msra.mxu0 0.0
  %1527 = vmatprep.subr.mxu0 0.0
  %1528 = vmatpush1.msra.mxu0 0.0
  %1529 = vmatprep.subr.mxu0 0.0
  %1530 = vmatpush1.msra.mxu0 0.0
  %1531 = vmatprep.subr.mxu0 0.0
  %1532 = vmatpush1.msra.mxu0 0.0
  %1533 = vmatprep.subr.mxu0 0.0
  %1534 = vmatpush1.msra.mxu0 0.0
  %1535 = vmatprep.subr.mxu0 0.0
  %1536 = vmatpush1.msra.mxu0 0.0
  %1537 = vmatprep.subr.mxu0 0.0
  %1538 = vmatpush1.msra.mxu0 0.0
  %1539 = vmatprep.subr.mxu0 0.0
  %1540 = vmatpush1.msra.mxu0 0.0
  %1541 = vmatprep.subr.mxu0 0.0
  %1542 = vmatpush1.msra.mxu0 0.0
  %1543 = vmatprep.subr.mxu0 0.0
  %1544 = vmatpush1.msra.mxu0 0.0
  %1545 = vmatprep.subr.mxu0 0.0
  %1546 = vmatpush1.msra.mxu0 0.0
  %1547 = vmatprep.subr.mxu0 0.0
  %1548 = vmatpush1.msra.mxu0 0.0
  %1549 = vmatprep.subr.mxu0 0.0
  %1550 = vmatpush1.msra.mxu0 0.0
  %1551 = vmatprep.subr.mxu0 0.0
  %1552 = vmatpush1.msra.mxu0 0.0
  %1553 = vmatprep.subr.mxu0 0.0
  %1554 = vmatpush1.msra.mxu0 %v178
  %1555 = vmatprep.subr.mxu0 0.0
  %1556 = vmatpush2.msra.mxu0 0.0
  %1557 = vmatprep.subr.mxu0 0.0
  %1558 = vmatpush2.msra.mxu0 0.0
  %1559 = vmatprep.subr.mxu0 0.0
  %1560 = vmatpush2.msra.mxu0 0.0
  %1561 = vmatprep.subr.mxu0 0.0
  %1562 = vmatpush2.msra.mxu0 0.0
  %1563 = vmatprep.subr.mxu0 0.0
  %1564 = vmatpush2.msra.mxu0 0.0
  %1565 = vmatprep.subr.mxu0 0.0
  %1566 = vmatpush2.msra.mxu0 0.0
  %1567 = vmatprep.subr.mxu0 0.0
  %1568 = vmatpush2.msra.mxu0 0.0
  %1569 = vmatprep.subr.mxu0 0.0
  %1570 = vmatpush2.msra.mxu0 0.0
  %1571 = vmatprep.subr.mxu0 0.0
  %1572 = vmatpush2.msra.mxu0 0.0
  %1573 = vmatprep.subr.mxu0 0.0
  %1574 = vmatpush2.msra.mxu0 0.0
  %1575 = vmatprep.subr.mxu0 0.0
  %1576 = vmatpush2.msra.mxu0 0.0
  %1577 = vmatprep.subr.mxu0 0.0
  %1578 = vmatpush2.msra.mxu0 0.0
  %1579 = vmatprep.subr.mxu0 0.0
  %1580 = vmatpush2.msra.mxu0 0.0
  %1581 = vmatprep.subr.mxu0 0.0
  %1582 = vmatpush2.msra.mxu0 0.0
  %1583 = vmatprep.subr.mxu0 0.0
  %1584 = vmatpush2.msra.mxu0 0.0
  %1585 = vmatprep.subr.mxu0 0.0
  %1586 = vmatpush2.msra.mxu0 0.0
  %1587 = vmatprep.mubr.f32.mxu0 0.0
  %1588 = vmatmul.mubr.f32.gmra.mxu0 %v1521
  %v1589 = vpop.f32.mrf.mxu0
  %v1590 = vadd.f32 0.0, %v1589
  %v1591 = vpop.f32.mrf.mxu0
  %1592 = vdwg.mxu0
  %v1594 = vsel %vm187, %v1351, 0
  %1596 = vmatprep.subr.mxu0 0.0
  %1597 = vmatpush1.msra.mxu0 0.0
  %1598 = vmatprep.subr.mxu0 0.0
  %1599 = vmatpush1.msra.mxu0 0.0
  %1600 = vmatprep.subr.mxu0 0.0
  %1601 = vmatpush1.msra.mxu0 0.0
  %1602 = vmatprep.subr.mxu0 0.0
  %1603 = vmatpush1.msra.mxu0 0.0
  %1604 = vmatprep.subr.mxu0 0.0
  %1605 = vmatpush1.msra.mxu0 0.0
  %1606 = vmatprep.subr.mxu0 0.0
  %1607 = vmatpush1.msra.mxu0 0.0
  %1608 = vmatprep.subr.mxu0 0.0
  %1609 = vmatpush1.msra.mxu0 0.0
  %1610 = vmatprep.subr.mxu0 0.0
  %1611 = vmatpush1.msra.mxu0 0.0
  %1612 = vmatprep.subr.mxu0 0.0
  %1613 = vmatpush1.msra.mxu0 0.0
  %1614 = vmatprep.subr.mxu0 0.0
  %1615 = vmatpush1.msra.mxu0 0.0
  %1616 = vmatprep.subr.mxu0 0.0
  %1617 = vmatpush1.msra.mxu0 0.0
  %1618 = vmatprep.subr.mxu0 0.0
  %1619 = vmatpush1.msra.mxu0 0.0
  %1620 = vmatprep.subr.mxu0 0.0
  %1621 = vmatpush1.msra.mxu0 0.0
  %1622 = vmatprep.subr.mxu0 0.0
  %1623 = vmatpush1.msra.mxu0 0.0
  %1624 = vmatprep.subr.mxu0 0.0
  %1625 = vmatpush1.msra.mxu0 0.0
  %1626 = vmatprep.subr.mxu0 0.0
  %1627 = vmatpush1.msra.mxu0 %v177
  %1628 = vmatprep.subr.mxu0 0.0
  %1629 = vmatpush2.msra.mxu0 0.0
  %1630 = vmatprep.subr.mxu0 0.0
  %1631 = vmatpush2.msra.mxu0 0.0
  %1632 = vmatprep.subr.mxu0 0.0
  %1633 = vmatpush2.msra.mxu0 0.0
  %1634 = vmatprep.subr.mxu0 0.0
  %1635 = vmatpush2.msra.mxu0 0.0
  %1636 = vmatprep.subr.mxu0 0.0
  %1637 = vmatpush2.msra.mxu0 0.0
  %1638 = vmatprep.subr.mxu0 0.0
  %1639 = vmatpush2.msra.mxu0 0.0
  %1640 = vmatprep.subr.mxu0 0.0
  %1641 = vmatpush2.msra.mxu0 0.0
  %1642 = vmatprep.subr.mxu0 0.0
  %1643 = vmatpush2.msra.mxu0 0.0
  %1644 = vmatprep.subr.mxu0 0.0
  %1645 = vmatpush2.msra.mxu0 0.0
  %1646 = vmatprep.subr.mxu0 0.0
  %1647 = vmatpush2.msra.mxu0 0.0
  %1648 = vmatprep.subr.mxu0 0.0
  %1649 = vmatpush2.msra.mxu0 0.0
  %1650 = vmatprep.subr.mxu0 0.0
  %1651 = vmatpush2.msra.mxu0 0.0
  %1652 = vmatprep.subr.mxu0 0.0
  %1653 = vmatpush2.msra.mxu0 0.0
  %1654 = vmatprep.subr.mxu0 0.0
  %1655 = vmatpush2.msra.mxu0 0.0
  %1656 = vmatprep.subr.mxu0 0.0
  %1657 = vmatpush2.msra.mxu0 0.0
  %1658 = vmatprep.subr.mxu0 0.0
  %1659 = vmatpush2.msra.mxu0 0.0
  %1660 = vmatprep.mubr.f32.mxu0 0.0
  %1661 = vmatmul.mubr.f32.gmra.mxu0 %v1594
  %v1662 = vpop.f32.mrf.mxu0
  %v1663 = vadd.f32 %v1590, %v1662
  %v1664 = vpop.f32.mrf.mxu0
  %1665 = vdwg.mxu0
  %1666 = vrot.lane.b32.xlu0 %v174, 112
  %v1667 = vpop.permute.xlu0 %1666
  %1668 = vrot.lane.b32.xlu0 %v174, 80
  %v1669 = vpop.permute.xlu0 %1668
  %v1670 = vsel %vm187, %v1667, 0
  %v1672 = vsel %vm187, %v1669, 0
  %1674 = vmatprep.subr.mxu0 0.0
  %1675 = vmatpush1.xpose.msra.mxu0 0.0
  %1676 = vmatprep.subr.mxu0 0.0
  %1677 = vmatpush1.xpose.msra.mxu0 0.0
  %1678 = vmatprep.subr.mxu0 0.0
  %1679 = vmatpush1.xpose.msra.mxu0 0.0
  %1680 = vmatprep.subr.mxu0 0.0
  %1681 = vmatpush1.xpose.msra.mxu0 0.0
  %1682 = vmatprep.subr.mxu0 0.0
  %1683 = vmatpush1.xpose.msra.mxu0 0.0
  %1684 = vmatprep.subr.mxu0 0.0
  %1685 = vmatpush1.xpose.msra.mxu0 0.0
  %1686 = vmatprep.subr.mxu0 0.0
  %1687 = vmatpush1.xpose.msra.mxu0 0.0
  %1688 = vmatprep.subr.mxu0 0.0
  %1689 = vmatpush1.xpose.msra.mxu0 0.0
  %1690 = vmatprep.subr.mxu0 0.0
  %1691 = vmatpush1.xpose.msra.mxu0 0.0
  %1692 = vmatprep.subr.mxu0 0.0
  %1693 = vmatpush1.xpose.msra.mxu0 0.0
  %1694 = vmatprep.subr.mxu0 0.0
  %1695 = vmatpush1.xpose.msra.mxu0 0.0
  %1696 = vmatprep.subr.mxu0 0.0
  %1697 = vmatpush1.xpose.msra.mxu0 0.0
  %1698 = vmatprep.subr.mxu0 0.0
  %1699 = vmatpush1.xpose.msra.mxu0 0.0
  %1700 = vmatprep.subr.mxu0 0.0
  %1701 = vmatpush1.xpose.msra.mxu0 0.0
  %1702 = vmatprep.subr.mxu0 0.0
  %1703 = vmatpush1.xpose.msra.mxu0 0.0
  %1704 = vmatprep.subr.mxu0 0.0
  %1705 = vmatpush1.xpose.msra.mxu0 %v1672
  %1706 = vmatprep.subr.mxu0 0.0
  %1707 = vmatpush2.xpose.msra.mxu0 0.0
  %1708 = vmatprep.subr.mxu0 0.0
  %1709 = vmatpush2.xpose.msra.mxu0 0.0
  %1710 = vmatprep.subr.mxu0 0.0
  %1711 = vmatpush2.xpose.msra.mxu0 0.0
  %1712 = vmatprep.subr.mxu0 0.0
  %1713 = vmatpush2.xpose.msra.mxu0 0.0
  %1714 = vmatprep.subr.mxu0 0.0
  %1715 = vmatpush2.xpose.msra.mxu0 0.0
  %1716 = vmatprep.subr.mxu0 0.0
  %1717 = vmatpush2.xpose.msra.mxu0 0.0
  %1718 = vmatprep.subr.mxu0 0.0
  %1719 = vmatpush2.xpose.msra.mxu0 0.0
  %1720 = vmatprep.subr.mxu0 0.0
  %1721 = vmatpush2.xpose.msra.mxu0 0.0
  %1722 = vmatprep.subr.mxu0 0.0
  %1723 = vmatpush2.xpose.msra.mxu0 0.0
  %1724 = vmatprep.subr.mxu0 0.0
  %1725 = vmatpush2.xpose.msra.mxu0 0.0
  %1726 = vmatprep.subr.mxu0 0.0
  %1727 = vmatpush2.xpose.msra.mxu0 0.0
  %1728 = vmatprep.subr.mxu0 0.0
  %1729 = vmatpush2.xpose.msra.mxu0 0.0
  %1730 = vmatprep.subr.mxu0 0.0
  %1731 = vmatpush2.xpose.msra.mxu0 0.0
  %1732 = vmatprep.subr.mxu0 0.0
  %1733 = vmatpush2.xpose.msra.mxu0 0.0
  %1734 = vmatprep.subr.mxu0 0.0
  %1735 = vmatpush2.xpose.msra.mxu0 0.0
  %1736 = vmatprep.subr.mxu0 0.0
  %1737 = vmatpush2.xpose.msra.mxu0 0.0
  %1738 = vmatprep.mubr.f32.mxu0 0.0
  %1739 = vmatmul.mubr.f32.gmra.mxu0 %v1670
  %v1740 = vpop.f32.mrf.mxu0
  %v1741 = vadd.f32 0.0, %v1740
  %v1742 = vpop.f32.mrf.mxu0
  %1743 = vdwg.mxu0
  %v1744 = vmul.f32 %v1741, 0.35355338
  %v1745 = vsel %vm187, %v1744, -inf
  %1746 = vmax.xlane.f32.xlu0 %v1745
  %v1747 = vpop.xlane.xlu0 %1746
  %v1748 = vsub.f32 %v1744, %v1747
  %v1749 = vmul.f32 %v1748, 1.442695
  %v1750 = vpow.pop %v1749
  %v1751 = vsel %vm187, %v1750, 0.0
  %1752 = vadd.xlane.f32.xlu0 %v1751
  %v1753 = vpop.xlane.xlu0 %1752
  %v1754 = vrcp.pop %v1753
  %v1755 = vmul.f32 %v1750, %v1754
  %1756 = vrot.lane.b32.xlu0 %v174, 48
  %v1757 = vpop.permute.xlu0 %1756
  %v1760 = vsel %vm187, %v1755, 0
  %1762 = vmatprep.subr.mxu0 0.0
  %1763 = vmatpush1.msra.mxu0 0.0
  %1764 = vmatprep.subr.mxu0 0.0
  %1765 = vmatpush1.msra.mxu0 0.0
  %1766 = vmatprep.subr.mxu0 0.0
  %1767 = vmatpush1.msra.mxu0 0.0
  %1768 = vmatprep.subr.mxu0 0.0
  %1769 = vmatpush1.msra.mxu0 0.0
  %1770 = vmatprep.subr.mxu0 0.0
  %1771 = vmatpush1.msra.mxu0 0.0
  %1772 = vmatprep.subr.mxu0 0.0
  %1773 = vmatpush1.msra.mxu0 0.0
  %1774 = vmatprep.subr.mxu0 0.0
  %1775 = vmatpush1.msra.mxu0 0.0
  %1776 = vmatprep.subr.mxu0 0.0
  %1777 = vmatpush1.msra.mxu0 0.0
  %1778 = vmatprep.subr.mxu0 0.0
  %1779 = vmatpush1.msra.mxu0 0.0
  %1780 = vmatprep.subr.mxu0 0.0
  %1781 = vmatpush1.msra.mxu0 0.0
  %1782 = vmatprep.subr.mxu0 0.0
  %1783 = vmatpush1.msra.mxu0 0.0
  %1784 = vmatprep.subr.mxu0 0.0
  %1785 = vmatpush1.msra.mxu0 0.0
  %1786 = vmatprep.subr.mxu0 0.0
  %1787 = vmatpush1.msra.mxu0 0.0
  %1788 = vmatprep.subr.mxu0 0.0
  %1789 = vmatpush1.msra.mxu0 0.0
  %1790 = vmatprep.subr.mxu0 0.0
  %1791 = vmatpush1.msra.mxu0 0.0
  %1792 = vmatprep.subr.mxu0 0.0
  %1793 = vmatpush1.msra.mxu0 %v1757
  %1794 = vmatprep.subr.mxu0 0.0
  %1795 = vmatpush2.msra.mxu0 0.0
  %1796 = vmatprep.subr.mxu0 0.0
  %1797 = vmatpush2.msra.mxu0 0.0
  %1798 = vmatprep.subr.mxu0 0.0
  %1799 = vmatpush2.msra.mxu0 0.0
  %1800 = vmatprep.subr.mxu0 0.0
  %1801 = vmatpush2.msra.mxu0 0.0
  %1802 = vmatprep.subr.mxu0 0.0
  %1803 = vmatpush2.msra.mxu0 0.0
  %1804 = vmatprep.subr.mxu0 0.0
  %1805 = vmatpush2.msra.mxu0 0.0
  %1806 = vmatprep.subr.mxu0 0.0
  %1807 = vmatpush2.msra.mxu0 0.0
  %1808 = vmatprep.subr.mxu0 0.0
  %1809 = vmatpush2.msra.mxu0 0.0
  %1810 = vmatprep.subr.mxu0 0.0
  %1811 = vmatpush2.msra.mxu0 0.0
  %1812 = vmatprep.subr.mxu0 0.0
  %1813 = vmatpush2.msra.mxu0 0.0
  %1814 = vmatprep.subr.mxu0 0.0
  %1815 = vmatpush2.msra.mxu0 0.0
  %1816 = vmatprep.subr.mxu0 0.0
  %1817 = vmatpush2.msra.mxu0 0.0
  %1818 = vmatprep.subr.mxu0 0.0
  %1819 = vmatpush2.msra.mxu0 0.0
  %1820 = vmatprep.subr.mxu0 0.0
  %1821 = vmatpush2.msra.mxu0 0.0
  %1822 = vmatprep.subr.mxu0 0.0
  %1823 = vmatpush2.msra.mxu0 0.0
  %1824 = vmatprep.subr.mxu0 0.0
  %1825 = vmatpush2.msra.mxu0 0.0
  %1826 = vmatprep.mubr.f32.mxu0 0.0
  %1827 = vmatmul.mubr.f32.gmra.mxu0 %v1760
  %v1828 = vpop.f32.mrf.mxu0
  %v1829 = vadd.f32 0.0, %v1828
  %v1830 = vpop.f32.mrf.mxu0
  %1831 = vdwg.mxu0
  %v1833 = vsel %vm187, %v1829, 0
  %1835 = vmatprep.subr.mxu0 0.0
  %1836 = vmatpush1.msra.mxu0 0.0
  %1837 = vmatprep.subr.mxu0 0.0
  %1838 = vmatpush1.msra.mxu0 0.0
  %1839 = vmatprep.subr.mxu0 0.0
  %1840 = vmatpush1.msra.mxu0 0.0
  %1841 = vmatprep.subr.mxu0 0.0
  %1842 = vmatpush1.msra.mxu0 0.0
  %1843 = vmatprep.subr.mxu0 0.0
  %1844 = vmatpush1.msra.mxu0 0.0
  %1845 = vmatprep.subr.mxu0 0.0
  %1846 = vmatpush1.msra.mxu0 0.0
  %1847 = vmatprep.subr.mxu0 0.0
  %1848 = vmatpush1.msra.mxu0 0.0
  %1849 = vmatprep.subr.mxu0 0.0
  %1850 = vmatpush1.msra.mxu0 0.0
  %1851 = vmatprep.subr.mxu0 0.0
  %1852 = vmatpush1.msra.mxu0 0.0
  %1853 = vmatprep.subr.mxu0 0.0
  %1854 = vmatpush1.msra.mxu0 0.0
  %1855 = vmatprep.subr.mxu0 0.0
  %1856 = vmatpush1.msra.mxu0 0.0
  %1857 = vmatprep.subr.mxu0 0.0
  %1858 = vmatpush1.msra.mxu0 0.0
  %1859 = vmatprep.subr.mxu0 0.0
  %1860 = vmatpush1.msra.mxu0 0.0
  %1861 = vmatprep.subr.mxu0 0.0
  %1862 = vmatpush1.msra.mxu0 0.0
  %1863 = vmatprep.subr.mxu0 0.0
  %1864 = vmatpush1.msra.mxu0 0.0
  %1865 = vmatprep.subr.mxu0 0.0
  %1866 = vmatpush1.msra.mxu0 %v179
  %1867 = vmatprep.subr.mxu0 0.0
  %1868 = vmatpush2.msra.mxu0 0.0
  %1869 = vmatprep.subr.mxu0 0.0
  %1870 = vmatpush2.msra.mxu0 0.0
  %1871 = vmatprep.subr.mxu0 0.0
  %1872 = vmatpush2.msra.mxu0 0.0
  %1873 = vmatprep.subr.mxu0 0.0
  %1874 = vmatpush2.msra.mxu0 0.0
  %1875 = vmatprep.subr.mxu0 0.0
  %1876 = vmatpush2.msra.mxu0 0.0
  %1877 = vmatprep.subr.mxu0 0.0
  %1878 = vmatpush2.msra.mxu0 0.0
  %1879 = vmatprep.subr.mxu0 0.0
  %1880 = vmatpush2.msra.mxu0 0.0
  %1881 = vmatprep.subr.mxu0 0.0
  %1882 = vmatpush2.msra.mxu0 0.0
  %1883 = vmatprep.subr.mxu0 0.0
  %1884 = vmatpush2.msra.mxu0 0.0
  %1885 = vmatprep.subr.mxu0 0.0
  %1886 = vmatpush2.msra.mxu0 0.0
  %1887 = vmatprep.subr.mxu0 0.0
  %1888 = vmatpush2.msra.mxu0 0.0
  %1889 = vmatprep.subr.mxu0 0.0
  %1890 = vmatpush2.msra.mxu0 0.0
  %1891 = vmatprep.subr.mxu0 0.0
  %1892 = vmatpush2.msra.mxu0 0.0
  %1893 = vmatprep.subr.mxu0 0.0
  %1894 = vmatpush2.msra.mxu0 0.0
  %1895 = vmatprep.subr.mxu0 0.0
  %1896 = vmatpush2.msra.mxu0 0.0
  %1897 = vmatprep.subr.mxu0 0.0
  %1898 = vmatpush2.msra.mxu0 0.0
  %1899 = vmatprep.mubr.f32.mxu0 0.0
  %1900 = vmatmul.mubr.f32.gmra.mxu0 %v1833
  %v1901 = vpop.f32.mrf.mxu0
  %v1902 = vadd.f32 0.0, %v1901
  %v1903 = vpop.f32.mrf.mxu0
  %1904 = vdwg.mxu0
  %v1905 = vadd.f32 %v1663, %v1902
  %1906 = vrot.lane.b32.xlu0 %v174, 104
  %v1907 = vpop.permute.xlu0 %1906
  %1908 = vrot.lane.b32.xlu0 %v174, 72
  %v1909 = vpop.permute.xlu0 %1908
  %v1910 = vsel %vm187, %v1907, 0
  %v1912 = vsel %vm187, %v1909, 0
  %1914 = vmatprep.subr.mxu0 0.0
  %1915 = vmatpush1.xpose.msra.mxu0 0.0
  %1916 = vmatprep.subr.mxu0 0.0
  %1917 = vmatpush1.xpose.msra.mxu0 0.0
  %1918 = vmatprep.subr.mxu0 0.0
  %1919 = vmatpush1.xpose.msra.mxu0 0.0
  %1920 = vmatprep.subr.mxu0 0.0
  %1921 = vmatpush1.xpose.msra.mxu0 0.0
  %1922 = vmatprep.subr.mxu0 0.0
  %1923 = vmatpush1.xpose.msra.mxu0 0.0
  %1924 = vmatprep.subr.mxu0 0.0
  %1925 = vmatpush1.xpose.msra.mxu0 0.0
  %1926 = vmatprep.subr.mxu0 0.0
  %1927 = vmatpush1.xpose.msra.mxu0 0.0
  %1928 = vmatprep.subr.mxu0 0.0
  %1929 = vmatpush1.xpose.msra.mxu0 0.0
  %1930 = vmatprep.subr.mxu0 0.0
  %1931 = vmatpush1.xpose.msra.mxu0 0.0
  %1932 = vmatprep.subr.mxu0 0.0
  %1933 = vmatpush1.xpose.msra.mxu0 0.0
  %1934 = vmatprep.subr.mxu0 0.0
  %1935 = vmatpush1.xpose.msra.mxu0 0.0
  %1936 = vmatprep.subr.mxu0 0.0
  %1937 = vmatpush1.xpose.msra.mxu0 0.0
  %1938 = vmatprep.subr.mxu0 0.0
  %1939 = vmatpush1.xpose.msra.mxu0 0.0
  %1940 = vmatprep.subr.mxu0 0.0
  %1941 = vmatpush1.xpose.msra.mxu0 0.0
  %1942 = vmatprep.subr.mxu0 0.0
  %1943 = vmatpush1.xpose.msra.mxu0 0.0
  %1944 = vmatprep.subr.mxu0 0.0
  %1945 = vmatpush1.xpose.msra.mxu0 %v1912
  %1946 = vmatprep.subr.mxu0 0.0
  %1947 = vmatpush2.xpose.msra.mxu0 0.0
  %1948 = vmatprep.subr.mxu0 0.0
  %1949 = vmatpush2.xpose.msra.mxu0 0.0
  %1950 = vmatprep.subr.mxu0 0.0
  %1951 = vmatpush2.xpose.msra.mxu0 0.0
  %1952 = vmatprep.subr.mxu0 0.0
  %1953 = vmatpush2.xpose.msra.mxu0 0.0
  %1954 = vmatprep.subr.mxu0 0.0
  %1955 = vmatpush2.xpose.msra.mxu0 0.0
  %1956 = vmatprep.subr.mxu0 0.0
  %1957 = vmatpush2.xpose.msra.mxu0 0.0
  %1958 = vmatprep.subr.mxu0 0.0
  %1959 = vmatpush2.xpose.msra.mxu0 0.0
  %1960 = vmatprep.subr.mxu0 0.0
  %1961 = vmatpush2.xpose.msra.mxu0 0.0
  %1962 = vmatprep.subr.mxu0 0.0
  %1963 = vmatpush2.xpose.msra.mxu0 0.0
  %1964 = vmatprep.subr.mxu0 0.0
  %1965 = vmatpush2.xpose.msra.mxu0 0.0
  %1966 = vmatprep.subr.mxu0 0.0
  %1967 = vmatpush2.xpose.msra.mxu0 0.0
  %1968 = vmatprep.subr.mxu0 0.0
  %1969 = vmatpush2.xpose.msra.mxu0 0.0
  %1970 = vmatprep.subr.mxu0 0.0
  %1971 = vmatpush2.xpose.msra.mxu0 0.0
  %1972 = vmatprep.subr.mxu0 0.0
  %1973 = vmatpush2.xpose.msra.mxu0 0.0
  %1974 = vmatprep.subr.mxu0 0.0
  %1975 = vmatpush2.xpose.msra.mxu0 0.0
  %1976 = vmatprep.subr.mxu0 0.0
  %1977 = vmatpush2.xpose.msra.mxu0 0.0
  %1978 = vmatprep.mubr.f32.mxu0 0.0
  %1979 = vmatmul.mubr.f32.gmra.mxu0 %v1910
  %v1980 = vpop.f32.mrf.mxu0
  %v1981 = vadd.f32 0.0, %v1980
  %v1982 = vpop.f32.mrf.mxu0
  %1983 = vdwg.mxu0
  %v1984 = vmul.f32 %v1981, 0.35355338
  %v1985 = vsel %vm187, %v1984, -inf
  %1986 = vmax.xlane.f32.xlu0 %v1985
  %v1987 = vpop.xlane.xlu0 %1986
  %v1988 = vsub.f32 %v1984, %v1987
  %v1989 = vmul.f32 %v1988, 1.442695
  %v1990 = vpow.pop %v1989
  %v1991 = vsel %vm187, %v1990, 0.0
  %1992 = vadd.xlane.f32.xlu0 %v1991
  %v1993 = vpop.xlane.xlu0 %1992
  %v1994 = vrcp.pop %v1993
  %v1995 = vmul.f32 %v1990, %v1994
  %1996 = vrot.lane.b32.xlu0 %v174, 40
  %v1997 = vpop.permute.xlu0 %1996
  %v2000 = vsel %vm187, %v1995, 0
  %2002 = vmatprep.subr.mxu0 0.0
  %2003 = vmatpush1.msra.mxu0 0.0
  %2004 = vmatprep.subr.mxu0 0.0
  %2005 = vmatpush1.msra.mxu0 0.0
  %2006 = vmatprep.subr.mxu0 0.0
  %2007 = vmatpush1.msra.mxu0 0.0
  %2008 = vmatprep.subr.mxu0 0.0
  %2009 = vmatpush1.msra.mxu0 0.0
  %2010 = vmatprep.subr.mxu0 0.0
  %2011 = vmatpush1.msra.mxu0 0.0
  %2012 = vmatprep.subr.mxu0 0.0
  %2013 = vmatpush1.msra.mxu0 0.0
  %2014 = vmatprep.subr.mxu0 0.0
  %2015 = vmatpush1.msra.mxu0 0.0
  %2016 = vmatprep.subr.mxu0 0.0
  %2017 = vmatpush1.msra.mxu0 0.0
  %2018 = vmatprep.subr.mxu0 0.0
  %2019 = vmatpush1.msra.mxu0 0.0
  %2020 = vmatprep.subr.mxu0 0.0
  %2021 = vmatpush1.msra.mxu0 0.0
  %2022 = vmatprep.subr.mxu0 0.0
  %2023 = vmatpush1.msra.mxu0 0.0
  %2024 = vmatprep.subr.mxu0 0.0
  %2025 = vmatpush1.msra.mxu0 0.0
  %2026 = vmatprep.subr.mxu0 0.0
  %2027 = vmatpush1.msra.mxu0 0.0
  %2028 = vmatprep.subr.mxu0 0.0
  %2029 = vmatpush1.msra.mxu0 0.0
  %2030 = vmatprep.subr.mxu0 0.0
  %2031 = vmatpush1.msra.mxu0 0.0
  %2032 = vmatprep.subr.mxu0 0.0
  %2033 = vmatpush1.msra.mxu0 %v1997
  %2034 = vmatprep.subr.mxu0 0.0
  %2035 = vmatpush2.msra.mxu0 0.0
  %2036 = vmatprep.subr.mxu0 0.0
  %2037 = vmatpush2.msra.mxu0 0.0
  %2038 = vmatprep.subr.mxu0 0.0
  %2039 = vmatpush2.msra.mxu0 0.0
  %2040 = vmatprep.subr.mxu0 0.0
  %2041 = vmatpush2.msra.mxu0 0.0
  %2042 = vmatprep.subr.mxu0 0.0
  %2043 = vmatpush2.msra.mxu0 0.0
  %2044 = vmatprep.subr.mxu0 0.0
  %2045 = vmatpush2.msra.mxu0 0.0
  %2046 = vmatprep.subr.mxu0 0.0
  %2047 = vmatpush2.msra.mxu0 0.0
  %2048 = vmatprep.subr.mxu0 0.0
  %2049 = vmatpush2.msra.mxu0 0.0
  %2050 = vmatprep.subr.mxu0 0.0
  %2051 = vmatpush2.msra.mxu0 0.0
  %2052 = vmatprep.subr.mxu0 0.0
  %2053 = vmatpush2.msra.mxu0 0.0
  %2054 = vmatprep.subr.mxu0 0.0
  %2055 = vmatpush2.msra.mxu0 0.0
  %2056 = vmatprep.subr.mxu0 0.0
  %2057 = vmatpush2.msra.mxu0 0.0
  %2058 = vmatprep.subr.mxu0 0.0
  %2059 = vmatpush2.msra.mxu0 0.0
  %2060 = vmatprep.subr.mxu0 0.0
  %2061 = vmatpush2.msra.mxu0 0.0
  %2062 = vmatprep.subr.mxu0 0.0
  %2063 = vmatpush2.msra.mxu0 0.0
  %2064 = vmatprep.subr.mxu0 0.0
  %2065 = vmatpush2.msra.mxu0 0.0
  %2066 = vmatprep.mubr.f32.mxu0 0.0
  %2067 = vmatmul.mubr.f32.gmra.mxu0 %v2000
  %v2068 = vpop.f32.mrf.mxu0
  %v2069 = vadd.f32 0.0, %v2068
  %v2070 = vpop.f32.mrf.mxu0
  %2071 = vdwg.mxu0
  %v2073 = vsel %vm187, %v2069, 0
  %2075 = vmatprep.subr.mxu0 0.0
  %2076 = vmatpush1.msra.mxu0 0.0
  %2077 = vmatprep.subr.mxu0 0.0
  %2078 = vmatpush1.msra.mxu0 0.0
  %2079 = vmatprep.subr.mxu0 0.0
  %2080 = vmatpush1.msra.mxu0 0.0
  %2081 = vmatprep.subr.mxu0 0.0
  %2082 = vmatpush1.msra.mxu0 0.0
  %2083 = vmatprep.subr.mxu0 0.0
  %2084 = vmatpush1.msra.mxu0 0.0
  %2085 = vmatprep.subr.mxu0 0.0
  %2086 = vmatpush1.msra.mxu0 0.0
  %2087 = vmatprep.subr.mxu0 0.0
  %2088 = vmatpush1.msra.mxu0 0.0
  %2089 = vmatprep.subr.mxu0 0.0
  %2090 = vmatpush1.msra.mxu0 0.0
  %2091 = vmatprep.subr.mxu0 0.0
  %2092 = vmatpush1.msra.mxu0 0.0
  %2093 = vmatprep.subr.mxu0 0.0
  %2094 = vmatpush1.msra.mxu0 0.0
  %2095 = vmatprep.subr.mxu0 0.0
  %2096 = vmatpush1.msra.mxu0 0.0
  %2097 = vmatprep.subr.mxu0 0.0
  %2098 = vmatpush1.msra.mxu0 0.0
  %2099 = vmatprep.subr.mxu0 0.0
  %2100 = vmatpush1.msra.mxu0 0.0
  %2101 = vmatprep.subr.mxu0 0.0
  %2102 = vmatpush1.msra.mxu0 0.0
  %2103 = vmatprep.subr.mxu0 0.0
  %2104 = vmatpush1.msra.mxu0 0.0
  %2105 = vmatprep.subr.mxu0 0.0
  %2106 = vmatpush1.msra.mxu0 %v180
  %2107 = vmatprep.subr.mxu0 0.0
  %2108 = vmatpush2.msra.mxu0 0.0
  %2109 = vmatprep.subr.mxu0 0.0
  %2110 = vmatpush2.msra.mxu0 0.0
  %2111 = vmatprep.subr.mxu0 0.0
  %2112 = vmatpush2.msra.mxu0 0.0
  %2113 = vmatprep.subr.mxu0 0.0
  %2114 = vmatpush2.msra.mxu0 0.0
  %2115 = vmatprep.subr.mxu0 0.0
  %2116 = vmatpush2.msra.mxu0 0.0
  %2117 = vmatprep.subr.mxu0 0.0
  %2118 = vmatpush2.msra.mxu0 0.0
  %2119 = vmatprep.subr.mxu0 0.0
  %2120 = vmatpush2.msra.mxu0 0.0
  %2121 = vmatprep.subr.mxu0 0.0
  %2122 = vmatpush2.msra.mxu0 0.0
  %2123 = vmatprep.subr.mxu0 0.0
  %2124 = vmatpush2.msra.mxu0 0.0
  %2125 = vmatprep.subr.mxu0 0.0
  %2126 = vmatpush2.msra.mxu0 0.0
  %2127 = vmatprep.subr.mxu0 0.0
  %2128 = vmatpush2.msra.mxu0 0.0
  %2129 = vmatprep.subr.mxu0 0.0
  %2130 = vmatpush2.msra.mxu0 0.0
  %2131 = vmatprep.subr.mxu0 0.0
  %2132 = vmatpush2.msra.mxu0 0.0
  %2133 = vmatprep.subr.mxu0 0.0
  %2134 = vmatpush2.msra.mxu0 0.0
  %2135 = vmatprep.subr.mxu0 0.0
  %2136 = vmatpush2.msra.mxu0 0.0
  %2137 = vmatprep.subr.mxu0 0.0
  %2138 = vmatpush2.msra.mxu0 0.0
  %2139 = vmatprep.mubr.f32.mxu0 0.0
  %2140 = vmatmul.mubr.f32.gmra.mxu0 %v2073
  %v2141 = vpop.f32.mrf.mxu0
  %v2142 = vadd.f32 0.0, %v2141
  %v2143 = vpop.f32.mrf.mxu0
  %2144 = vdwg.mxu0
  %v2145 = vadd.f32 %v1905, %v2142
  %v2146 = vadd.f32 %v2145, %v1146
  %v2147 = vadd.f32 %v90, %v2146
  %v2148 = vsel %vm95, %v2147, 0.0
  %v2149 = vrot.slane %v2148, 4
  %v2150 = vadd.f32 %v2148, %v2149
  %v2151 = vrot.slane %v2150, 2
  %v2152 = vadd.f32 %v2150, %v2151
  %v2153 = vrot.slane %v2152, 1
  %v2154 = vadd.f32 %v2152, %v2153
  %v2155 = vmul.f32 %v2154, %v1157
  %v2156 = vmul.f32 %v2147, %v2147
  %v2157 = vsel %vm95, %v2156, 0.0
  %v2158 = vrot.slane %v2157, 4
  %v2159 = vadd.f32 %v2157, %v2158
  %v2160 = vrot.slane %v2159, 2
  %v2161 = vadd.f32 %v2159, %v2160
  %v2162 = vrot.slane %v2161, 1
  %v2163 = vadd.f32 %v2161, %v2162
  %v2164 = vmul.f32 %v2163, %v1157
  %v2165 = vmul.f32 %v2155, %v2155
  %v2166 = vsub.f32 %v2164, %v2165
  %v2167 = vsub.f32 %v2147, %v2155
  %v2168 = vadd.f32 %v2166, 1e-05
  %v2169 = vrsqrt.pop %v2168
  %v2170 = vmul.f32 %v2167, %v2169
  %v2171 = vmul.f32 %v2170, %v1178
  %v2172 = vadd.f32 %v2171, %v1185
  %s2173 = scalar_lea.vmem [#allocation2], 8
  %2174 = vst.msk [vmem:[%s2173] sm:$0xff] %vm95, %v2172
  %v2175 = vld [vmem:[#allocation2] sm:$0xff]
  %v2176 = vld [vmem:[#allocation2 + $0x8] sm:$0xff]
  %v2177 = vld [vmem:[%s8] sm:$0xff]
  %v2178 = vld [vmem:[%s8 + $0x8] sm:$0xff]
  %v2179 = vld [vmem:[%s8 + $0x10] sm:$0xff]
  %v2180 = vld [vmem:[%s8 + $0x18] sm:$0xff]
  %v2182 = vsel %vm95, %v2175, 0
  %v2185 = vsel %vm95, %v2176, 0
  %2187 = vmatprep.subr.mxu0 0.0
  %2188 = vmatpush1.msra.mxu0 0.0
  %2189 = vmatprep.subr.mxu0 0.0
  %2190 = vmatpush1.msra.mxu0 0.0
  %2191 = vmatprep.subr.mxu0 0.0
  %2192 = vmatpush1.msra.mxu0 0.0
  %2193 = vmatprep.subr.mxu0 0.0
  %2194 = vmatpush1.msra.mxu0 0.0
  %2195 = vmatprep.subr.mxu0 0.0
  %2196 = vmatpush1.msra.mxu0 0.0
  %2197 = vmatprep.subr.mxu0 0.0
  %2198 = vmatpush1.msra.mxu0 0.0
  %2199 = vmatprep.subr.mxu0 0.0
  %2200 = vmatpush1.msra.mxu0 0.0
  %2201 = vmatprep.subr.mxu0 0.0
  %2202 = vmatpush1.msra.mxu0 0.0
  %2203 = vmatprep.subr.mxu0 0.0
  %2204 = vmatpush1.msra.mxu0 0.0
  %2205 = vmatprep.subr.mxu0 0.0
  %2206 = vmatpush1.msra.mxu0 0.0
  %2207 = vmatprep.subr.mxu0 0.0
  %2208 = vmatpush1.msra.mxu0 0.0
  %2209 = vmatprep.subr.mxu0 0.0
  %2210 = vmatpush1.msra.mxu0 0.0
  %2211 = vmatprep.subr.mxu0 0.0
  %2212 = vmatpush1.msra.mxu0 %v2180
  %2213 = vmatprep.subr.mxu0 0.0
  %2214 = vmatpush1.msra.mxu0 %v2179
  %2215 = vmatprep.subr.mxu0 0.0
  %2216 = vmatpush1.msra.mxu0 %v2178
  %2217 = vmatprep.subr.mxu0 0.0
  %2218 = vmatpush1.msra.mxu0 %v2177
  %2219 = vmatprep.subr.mxu0 0.0
  %2220 = vmatpush2.msra.mxu0 0.0
  %2221 = vmatprep.subr.mxu0 0.0
  %2222 = vmatpush2.msra.mxu0 0.0
  %2223 = vmatprep.subr.mxu0 0.0
  %2224 = vmatpush2.msra.mxu0 0.0
  %2225 = vmatprep.subr.mxu0 0.0
  %2226 = vmatpush2.msra.mxu0 0.0
  %2227 = vmatprep.subr.mxu0 0.0
  %2228 = vmatpush2.msra.mxu0 0.0
  %2229 = vmatprep.subr.mxu0 0.0
  %2230 = vmatpush2.msra.mxu0 0.0
  %2231 = vmatprep.subr.mxu0 0.0
  %2232 = vmatpush2.msra.mxu0 0.0
  %2233 = vmatprep.subr.mxu0 0.0
  %2234 = vmatpush2.msra.mxu0 0.0
  %2235 = vmatprep.subr.mxu0 0.0
  %2236 = vmatpush2.msra.mxu0 0.0
  %2237 = vmatprep.subr.mxu0 0.0
  %2238 = vmatpush2.msra.mxu0 0.0
  %2239 = vmatprep.subr.mxu0 0.0
  %2240 = vmatpush2.msra.mxu0 0.0
  %2241 = vmatprep.subr.mxu0 0.0
  %2242 = vmatpush2.msra.mxu0 0.0
  %2243 = vmatprep.subr.mxu0 0.0
  %2244 = vmatpush2.msra.mxu0 0.0
  %2245 = vmatprep.subr.mxu0 0.0
  %2246 = vmatpush2.msra.mxu0 0.0
  %2247 = vmatprep.subr.mxu0 0.0
  %2248 = vmatpush2.msra.mxu0 0.0
  %2249 = vmatprep.subr.mxu0 0.0
  %2250 = vmatpush2.msra.mxu0 0.0
  %2251 = vmatprep.mubr.f32.mxu0 0.0
  %2252 = vmatmul.mubr.f32.gmra.mxu0 %v2182
  %v2253 = vpop.f32.mrf.mxu0
  %v2254 = vadd.f32 0.0, %v2253
  %v2255 = vpop.f32.mrf.mxu0
  %2256 = vmatprep.mubr.f32.mxu0 0.0
  %2257 = vmatmul.mubr.f32.gmra.mxu0 %v2185
  %v2258 = vpop.f32.mrf.mxu0
  %v2259 = vadd.f32 0.0, %v2258
  %v2260 = vpop.f32.mrf.mxu0
  %2261 = vdwg.mxu0
  %v2262 = vld [vmem:[%s9] sm:$0x1]
  %v2264 = vlaneseq
  %v2265 = vshrl.u32 %v2264, 7
  %v2266 = vsub.s32 0, %v2265
  %v2267 = vrot.slane %v2262, %v2266
  %v2269 = vadd.f32 %v2254, %v2267
  %v2270 = vadd.f32 %v2259, %v2267
  %v2271 = vmax.f32 %v2269, 0.0
  %v2272 = vmax.f32 %v2270, 0.0
  %v2273 = vld [vmem:[%s10] sm:$0xff]
  %v2274 = vld [vmem:[%s10 + $0x8] sm:$0xff]
  %v2275 = vld [vmem:[%s10 + $0x10] sm:$0xff]
  %v2276 = vld [vmem:[%s10 + $0x18] sm:$0xff]
  %v2277 = vld [vmem:[%s10 + $0x20] sm:$0xff]
  %v2278 = vld [vmem:[%s10 + $0x28] sm:$0xff]
  %v2279 = vld [vmem:[%s10 + $0x30] sm:$0xff]
  %v2280 = vld [vmem:[%s10 + $0x38] sm:$0xff]
  %vm2281 = vcmask 523264
  %v2283 = vsel %vm2281, %v2271, 0
  %v2286 = vsel %vm2281, %v2272, 0
  %2288 = vmatprep.subr.mxu0 0.0
  %2289 = vmatpush1.msra.mxu0 0.0
  %2290 = vmatprep.subr.mxu0 0.0
  %2291 = vmatpush1.msra.mxu0 0.0
  %2292 = vmatprep.subr.mxu0 0.0
  %2293 = vmatpush1.msra.mxu0 0.0
  %2294 = vmatprep.subr.mxu0 0.0
  %2295 = vmatpush1.msra.mxu0 0.0
  %2296 = vmatprep.subr.mxu0 0.0
  %2297 = vmatpush1.msra.mxu0 0.0
  %2298 = vmatprep.subr.mxu0 0.0
  %2299 = vmatpush1.msra.mxu0 0.0
  %2300 = vmatprep.subr.mxu0 0.0
  %2301 = vmatpush1.msra.mxu0 0.0
  %2302 = vmatprep.subr.mxu0 0.0
  %2303 = vmatpush1.msra.mxu0 0.0
  %2304 = vmatprep.subr.mxu0 0.0
  %2305 = vmatpush1.msra.mxu0 %v2280
  %2306 = vmatprep.subr.mxu0 0.0
  %2307 = vmatpush1.msra.mxu0 %v2279
  %2308 = vmatprep.subr.mxu0 0.0
  %2309 = vmatpush1.msra.mxu0 %v2278
  %2310 = vmatprep.subr.mxu0 0.0
  %2311 = vmatpush1.msra.mxu0 %v2277
  %2312 = vmatprep.subr.mxu0 0.0
  %2313 = vmatpush1.msra.mxu0 %v2276
  %2314 = vmatprep.subr.mxu0 0.0
  %2315 = vmatpush1.msra.mxu0 %v2275
  %2316 = vmatprep.subr.mxu0 0.0
  %2317 = vmatpush1.msra.mxu0 %v2274
  %2318 = vmatprep.subr.mxu0 0.0
  %2319 = vmatpush1.msra.mxu0 %v2273
  %2320 = vmatprep.subr.mxu0 0.0
  %2321 = vmatpush2.msra.mxu0 0.0
  %2322 = vmatprep.subr.mxu0 0.0
  %2323 = vmatpush2.msra.mxu0 0.0
  %2324 = vmatprep.subr.mxu0 0.0
  %2325 = vmatpush2.msra.mxu0 0.0
  %2326 = vmatprep.subr.mxu0 0.0
  %2327 = vmatpush2.msra.mxu0 0.0
  %2328 = vmatprep.subr.mxu0 0.0
  %2329 = vmatpush2.msra.mxu0 0.0
  %2330 = vmatprep.subr.mxu0 0.0
  %2331 = vmatpush2.msra.mxu0 0.0
  %2332 = vmatprep.subr.mxu0 0.0
  %2333 = vmatpush2.msra.mxu0 0.0
  %2334 = vmatprep.subr.mxu0 0.0
  %2335 = vmatpush2.msra.mxu0 0.0
  %2336 = vmatprep.subr.mxu0 0.0
  %2337 = vmatpush2.msra.mxu0 0.0
  %2338 = vmatprep.subr.mxu0 0.0
  %2339 = vmatpush2.msra.mxu0 0.0
  %2340 = vmatprep.subr.mxu0 0.0
  %2341 = vmatpush2.msra.mxu0 0.0
  %2342 = vmatprep.subr.mxu0 0.0
  %2343 = vmatpush2.msra.mxu0 0.0
  %2344 = vmatprep.subr.mxu0 0.0
  %2345 = vmatpush2.msra.mxu0 0.0
  %2346 = vmatprep.subr.mxu0 0.0
  %2347 = vmatpush2.msra.mxu0 0.0
  %2348 = vmatprep.subr.mxu0 0.0
  %2349 = vmatpush2.msra.mxu0 0.0
  %2350 = vmatprep.subr.mxu0 0.0
  %2351 = vmatpush2.msra.mxu0 0.0
  %2352 = vmatprep.mubr.f32.mxu0 0.0
  %2353 = vmatmul.mubr.f32.gmra.mxu0 %v2283
  %v2354 = vpop.f32.mrf.mxu0
  %v2355 = vadd.f32 0.0, %v2354
  %v2356 = vpop.f32.mrf.mxu0
  %2357 = vmatprep.mubr.f32.mxu0 0.0
  %2358 = vmatmul.mubr.f32.gmra.mxu0 %v2286
  %v2359 = vpop.f32.mrf.mxu0
  %v2360 = vadd.f32 0.0, %v2359
  %v2361 = vpop.f32.mrf.mxu0
  %2362 = vdwg.mxu0
  %v2363 = vld [vmem:[%s11] sm:$0x1]
  %v2365 = vlaneseq
  %v2366 = vshrl.u32 %v2365, 7
  %v2367 = vsub.s32 0, %v2366
  %v2368 = vrot.slane %v2363, %v2367
  %v2370 = vadd.f32 %v2355, %v2368
  %v2371 = vadd.f32 %v2360, %v2368
  %v2372 = vadd.f32 %v2175, %v2370
  %v2373 = vadd.f32 %v2176, %v2371
  %v2374 = vld [vmem:[%s12] sm:$0x1]
  %v2375 = vld [vmem:[%s13] sm:$0x1]
  %v2376 = vsel %vm95, %v2372, 0.0
  %v2377 = vrot.slane %v2376, 4
  %v2378 = vadd.f32 %v2376, %v2377
  %v2379 = vrot.slane %v2378, 2
  %v2380 = vadd.f32 %v2378, %v2379
  %v2381 = vrot.slane %v2380, 1
  %v2382 = vadd.f32 %v2380, %v2381
  %v2383 = vsel %vm95, %v2373, 0.0
  %v2384 = vrot.slane %v2383, 4
  %v2385 = vadd.f32 %v2383, %v2384
  %v2386 = vrot.slane %v2385, 2
  %v2387 = vadd.f32 %v2385, %v2386
  %v2388 = vrot.slane %v2387, 1
  %v2389 = vadd.f32 %v2387, %v2388
  %v2390 = vmul.f32 %v2382, %v1157
  %v2391 = vmul.f32 %v2389, %v1157
  %v2392 = vmul.f32 %v2372, %v2372
  %v2393 = vmul.f32 %v2373, %v2373
  %v2394 = vsel %vm95, %v2392, 0.0
  %v2395 = vrot.slane %v2394, 4
  %v2396 = vadd.f32 %v2394, %v2395
  %v2397 = vrot.slane %v2396, 2
  %v2398 = vadd.f32 %v2396, %v2397
  %v2399 = vrot.slane %v2398, 1
  %v2400 = vadd.f32 %v2398, %v2399
  %v2401 = vsel %vm95, %v2393, 0.0
  %v2402 = vrot.slane %v2401, 4
  %v2403 = vadd.f32 %v2401, %v2402
  %v2404 = vrot.slane %v2403, 2
  %v2405 = vadd.f32 %v2403, %v2404
  %v2406 = vrot.slane %v2405, 1
  %v2407 = vadd.f32 %v2405, %v2406
  %v2408 = vmul.f32 %v2400, %v1157
  %v2409 = vmul.f32 %v2407, %v1157
  %v2410 = vmul.f32 %v2390, %v2390
  %v2411 = vmul.f32 %v2391, %v2391
  %v2412 = vsub.f32 %v2408, %v2410
  %v2413 = vsub.f32 %v2409, %v2411
  %v2414 = vsub.f32 %v2372, %v2390
  %v2415 = vsub.f32 %v2373, %v2391
  %v2416 = vadd.f32 %v2412, 1e-05
  %v2417 = vadd.f32 %v2413, 1e-05
  %v2418 = vrsqrt.pop %v2416
  %v2419 = vrsqrt.pop %v2417
  %v2420 = vmul.f32 %v2414, %v2418
  %v2421 = vmul.f32 %v2415, %v2419
  %v2423 = vlaneseq
  %v2424 = vshrl.u32 %v2423, 7
  %v2425 = vsub.s32 0, %v2424
  %v2426 = vrot.slane %v2374, %v2425
  %v2428 = vmul.f32 %v2420, %v2426
  %v2429 = vmul.f32 %v2421, %v2426
  %v2431 = vlaneseq
  %v2432 = vshrl.u32 %v2431, 7
  %v2433 = vsub.s32 0, %v2432
  %v2434 = vrot.slane %v2375, %v2433
  %v2436 = vadd.f32 %v2428, %v2434
  %v2437 = vadd.f32 %v2429, %v2434
  %s2438 = scalar_lea.vmem %s3, 32
  %v2439 = vld [vmem:[%s2438] sm:$0xff]
  %v2440 = vld [vmem:[%s2438 + $0x8] sm:$0xff]
  %v2441 = vld [vmem:[%s2438 + $0x10] sm:$0xff]
  %v2442 = vld [vmem:[%s2438 + $0x18] sm:$0xff]
  %v2444 = vsel %vm95, %v2436, 0
  %v2447 = vsel %vm95, %v2437, 0
  %2449 = vmatprep.subr.mxu0 0.0
  %2450 = vmatpush1.msra.mxu0 0.0
  %2451 = vmatprep.subr.mxu0 0.0
  %2452 = vmatpush1.msra.mxu0 0.0
  %2453 = vmatprep.subr.mxu0 0.0
  %2454 = vmatpush1.msra.mxu0 0.0
  %2455 = vmatprep.subr.mxu0 0.0
  %2456 = vmatpush1.msra.mxu0 0.0
  %2457 = vmatprep.subr.mxu0 0.0
  %2458 = vmatpush1.msra.mxu0 0.0
  %2459 = vmatprep.subr.mxu0 0.0
  %2460 = vmatpush1.msra.mxu0 0.0
  %2461 = vmatprep.subr.mxu0 0.0
  %2462 = vmatpush1.msra.mxu0 0.0
  %2463 = vmatprep.subr.mxu0 0.0
  %2464 = vmatpush1.msra.mxu0 0.0
  %2465 = vmatprep.subr.mxu0 0.0
  %2466 = vmatpush1.msra.mxu0 0.0
  %2467 = vmatprep.subr.mxu0 0.0
  %2468 = vmatpush1.msra.mxu0 0.0
  %2469 = vmatprep.subr.mxu0 0.0
  %2470 = vmatpush1.msra.mxu0 0.0
  %2471 = vmatprep.subr.mxu0 0.0
  %2472 = vmatpush1.msra.mxu0 0.0
  %2473 = vmatprep.subr.mxu0 0.0
  %2474 = vmatpush1.msra.mxu0 %v2442
  %2475 = vmatprep.subr.mxu0 0.0
  %2476 = vmatpush1.msra.mxu0 %v2441
  %2477 = vmatprep.subr.mxu0 0.0
  %2478 = vmatpush1.msra.mxu0 %v2440
  %2479 = vmatprep.subr.mxu0 0.0
  %2480 = vmatpush1.msra.mxu0 %v2439
  %2481 = vmatprep.subr.mxu0 0.0
  %2482 = vmatpush2.msra.mxu0 0.0
  %2483 = vmatprep.subr.mxu0 0.0
  %2484 = vmatpush2.msra.mxu0 0.0
  %2485 = vmatprep.subr.mxu0 0.0
  %2486 = vmatpush2.msra.mxu0 0.0
  %2487 = vmatprep.subr.mxu0 0.0
  %2488 = vmatpush2.msra.mxu0 0.0
  %2489 = vmatprep.subr.mxu0 0.0
  %2490 = vmatpush2.msra.mxu0 0.0
  %2491 = vmatprep.subr.mxu0 0.0
  %2492 = vmatpush2.msra.mxu0 0.0
  %2493 = vmatprep.subr.mxu0 0.0
  %2494 = vmatpush2.msra.mxu0 0.0
  %2495 = vmatprep.subr.mxu0 0.0
  %2496 = vmatpush2.msra.mxu0 0.0
  %2497 = vmatprep.subr.mxu0 0.0
  %2498 = vmatpush2.msra.mxu0 0.0
  %2499 = vmatprep.subr.mxu0 0.0
  %2500 = vmatpush2.msra.mxu0 0.0
  %2501 = vmatprep.subr.mxu0 0.0
  %2502 = vmatpush2.msra.mxu0 0.0
  %2503 = vmatprep.subr.mxu0 0.0
  %2504 = vmatpush2.msra.mxu0 0.0
  %2505 = vmatprep.subr.mxu0 0.0
  %2506 = vmatpush2.msra.mxu0 0.0
  %2507 = vmatprep.subr.mxu0 0.0
  %2508 = vmatpush2.msra.mxu0 0.0
  %2509 = vmatprep.subr.mxu0 0.0
  %2510 = vmatpush2.msra.mxu0 0.0
  %2511 = vmatprep.subr.mxu0 0.0
  %2512 = vmatpush2.msra.mxu0 0.0
  %2513 = vmatprep.mubr.f32.mxu0 0.0
  %2514 = vmatmul.mubr.f32.gmra.mxu0 %v2444
  %v2515 = vpop.f32.mrf.mxu0
  %v2516 = vadd.f32 0.0, %v2515
  %v2517 = vpop.f32.mrf.mxu0
  %2518 = vmatprep.mubr.f32.mxu0 0.0
  %2519 = vmatmul.mubr.f32.gmra.mxu0 %v2447
  %v2520 = vpop.f32.mrf.mxu0
  %v2521 = vadd.f32 0.0, %v2520
  %v2522 = vpop.f32.mrf.mxu0
  %2523 = vdwg.mxu0
  %s2524 = scalar_lea.vmem %s4, 32
  %v2525 = vld [vmem:[%s2524] sm:$0xff]
  %v2526 = vld [vmem:[%s2524 + $0x8] sm:$0xff]
  %v2527 = vld [vmem:[%s2524 + $0x10] sm:$0xff]
  %v2528 = vld [vmem:[%s2524 + $0x18] sm:$0xff]
  %s2529 = scalar_lea.vmem %s5, 1
  %v2530 = vld [vmem:[%s2529] sm:$0x1]
  %s2531 = scalar_lea.vmem %s6, 1
  %v2532 = vld [vmem:[%s2531] sm:$0x1]
  %s2533 = scalar_lea.vmem %s7, 1
  %v2534 = vld [vmem:[%s2533] sm:$0x1]
  %2536 = vrot.lane.b32.xlu0 %v2516, 96
  %v2537 = vpop.permute.xlu0 %2536
  %v2538 = vsel %vm187, %v2516, 0
  %v2540 = vsel %vm187, %v2537, 0
  %2542 = vmatprep.subr.mxu0 0.0
  %2543 = vmatpush1.xpose.msra.mxu0 0.0
  %2544 = vmatprep.subr.mxu0 0.0
  %2545 = vmatpush1.xpose.msra.mxu0 0.0
  %2546 = vmatprep.subr.mxu0 0.0
  %2547 = vmatpush1.xpose.msra.mxu0 0.0
  %2548 = vmatprep.subr.mxu0 0.0
  %2549 = vmatpush1.xpose.msra.mxu0 0.0
  %2550 = vmatprep.subr.mxu0 0.0
  %2551 = vmatpush1.xpose.msra.mxu0 0.0
  %2552 = vmatprep.subr.mxu0 0.0
  %2553 = vmatpush1.xpose.msra.mxu0 0.0
  %2554 = vmatprep.subr.mxu0 0.0
  %2555 = vmatpush1.xpose.msra.mxu0 0.0
  %2556 = vmatprep.subr.mxu0 0.0
  %2557 = vmatpush1.xpose.msra.mxu0 0.0
  %2558 = vmatprep.subr.mxu0 0.0
  %2559 = vmatpush1.xpose.msra.mxu0 0.0
  %2560 = vmatprep.subr.mxu0 0.0
  %2561 = vmatpush1.xpose.msra.mxu0 0.0
  %2562 = vmatprep.subr.mxu0 0.0
  %2563 = vmatpush1.xpose.msra.mxu0 0.0
  %2564 = vmatprep.subr.mxu0 0.0
  %2565 = vmatpush1.xpose.msra.mxu0 0.0
  %2566 = vmatprep.subr.mxu0 0.0
  %2567 = vmatpush1.xpose.msra.mxu0 0.0
  %2568 = vmatprep.subr.mxu0 0.0
  %2569 = vmatpush1.xpose.msra.mxu0 0.0
  %2570 = vmatprep.subr.mxu0 0.0
  %2571 = vmatpush1.xpose.msra.mxu0 0.0
  %2572 = vmatprep.subr.mxu0 0.0
  %2573 = vmatpush1.xpose.msra.mxu0 %v2540
  %2574 = vmatprep.subr.mxu0 0.0
  %2575 = vmatpush2.xpose.msra.mxu0 0.0
  %2576 = vmatprep.subr.mxu0 0.0
  %2577 = vmatpush2.xpose.msra.mxu0 0.0
  %2578 = vmatprep.subr.mxu0 0.0
  %2579 = vmatpush2.xpose.msra.mxu0 0.0
  %2580 = vmatprep.subr.mxu0 0.0
  %2581 = vmatpush2.xpose.msra.mxu0 0.0
  %2582 = vmatprep.subr.mxu0 0.0
  %2583 = vmatpush2.xpose.msra.mxu0 0.0
  %2584 = vmatprep.subr.mxu0 0.0
  %2585 = vmatpush2.xpose.msra.mxu0 0.0
  %2586 = vmatprep.subr.mxu0 0.0
  %2587 = vmatpush2.xpose.msra.mxu0 0.0
  %2588 = vmatprep.subr.mxu0 0.0
  %2589 = vmatpush2.xpose.msra.mxu0 0.0
  %2590 = vmatprep.subr.mxu0 0.0
  %2591 = vmatpush2.xpose.msra.mxu0 0.0
  %2592 = vmatprep.subr.mxu0 0.0
  %2593 = vmatpush2.xpose.msra.mxu0 0.0
  %2594 = vmatprep.subr.mxu0 0.0
  %2595 = vmatpush2.xpose.msra.mxu0 0.0
  %2596 = vmatprep.subr.mxu0 0.0
  %2597 = vmatpush2.xpose.msra.mxu0 0.0
  %2598 = vmatprep.subr.mxu0 0.0
  %2599 = vmatpush2.xpose.msra.mxu0 0.0
  %2600 = vmatprep.subr.mxu0 0.0
  %2601 = vmatpush2.xpose.msra.mxu0 0.0
  %2602 = vmatprep.subr.mxu0 0.0
  %2603 = vmatpush2.xpose.msra.mxu0 0.0
  %2604 = vmatprep.subr.mxu0 0.0
  %2605 = vmatpush2.xpose.msra.mxu0 0.0
  %2606 = vmatprep.mubr.f32.mxu0 0.0
  %2607 = vmatmul.mubr.f32.gmra.mxu0 %v2538
  %v2608 = vpop.f32.mrf.mxu0
  %v2609 = vadd.f32 0.0, %v2608
  %v2610 = vpop.f32.mrf.mxu0
  %2611 = vdwg.mxu0
  %v2612 = vmul.f32 %v2609, 0.35355338
  %v2613 = vsel %vm187, %v2612, -inf
  %2614 = vmax.xlane.f32.xlu0 %v2613
  %v2615 = vpop.xlane.xlu0 %2614
  %v2616 = vsub.f32 %v2612, %v2615
  %v2617 = vmul.f32 %v2616, 1.442695
  %v2618 = vpow.pop %v2617
  %v2619 = vsel %vm187, %v2618, 0.0
  %2620 = vadd.xlane.f32.xlu0 %v2619
  %v2621 = vpop.xlane.xlu0 %2620
  %v2622 = vrcp.pop %v2621
  %v2623 = vmul.f32 %v2618, %v2622
  %2624 = vrot.lane.b32.xlu0 %v2516, 64
  %v2625 = vpop.permute.xlu0 %2624
  %v2628 = vsel %vm187, %v2623, 0
  %2630 = vmatprep.subr.mxu0 0.0
  %2631 = vmatpush1.msra.mxu0 0.0
  %2632 = vmatprep.subr.mxu0 0.0
  %2633 = vmatpush1.msra.mxu0 0.0
  %2634 = vmatprep.subr.mxu0 0.0
  %2635 = vmatpush1.msra.mxu0 0.0
  %2636 = vmatprep.subr.mxu0 0.0
  %2637 = vmatpush1.msra.mxu0 0.0
  %2638 = vmatprep.subr.mxu0 0.0
  %2639 = vmatpush1.msra.mxu0 0.0
  %2640 = vmatprep.subr.mxu0 0.0
  %2641 = vmatpush1.msra.mxu0 0.0
  %2642 = vmatprep.subr.mxu0 0.0
  %2643 = vmatpush1.msra.mxu0 0.0
  %2644 = vmatprep.subr.mxu0 0.0
  %2645 = vmatpush1.msra.mxu0 0.0
  %2646 = vmatprep.subr.mxu0 0.0
  %2647 = vmatpush1.msra.mxu0 0.0
  %2648 = vmatprep.subr.mxu0 0.0
  %2649 = vmatpush1.msra.mxu0 0.0
  %2650 = vmatprep.subr.mxu0 0.0
  %2651 = vmatpush1.msra.mxu0 0.0
  %2652 = vmatprep.subr.mxu0 0.0
  %2653 = vmatpush1.msra.mxu0 0.0
  %2654 = vmatprep.subr.mxu0 0.0
  %2655 = vmatpush1.msra.mxu0 0.0
  %2656 = vmatprep.subr.mxu0 0.0
  %2657 = vmatpush1.msra.mxu0 0.0
  %2658 = vmatprep.subr.mxu0 0.0
  %2659 = vmatpush1.msra.mxu0 0.0
  %2660 = vmatprep.subr.mxu0 0.0
  %2661 = vmatpush1.msra.mxu0 %v2625
  %2662 = vmatprep.subr.mxu0 0.0
  %2663 = vmatpush2.msra.mxu0 0.0
  %2664 = vmatprep.subr.mxu0 0.0
  %2665 = vmatpush2.msra.mxu0 0.0
  %2666 = vmatprep.subr.mxu0 0.0
  %2667 = vmatpush2.msra.mxu0 0.0
  %2668 = vmatprep.subr.mxu0 0.0
  %2669 = vmatpush2.msra.mxu0 0.0
  %2670 = vmatprep.subr.mxu0 0.0
  %2671 = vmatpush2.msra.mxu0 0.0
  %2672 = vmatprep.subr.mxu0 0.0
  %2673 = vmatpush2.msra.mxu0 0.0
  %2674 = vmatprep.subr.mxu0 0.0
  %2675 = vmatpush2.msra.mxu0 0.0
  %2676 = vmatprep.subr.mxu0 0.0
  %2677 = vmatpush2.msra.mxu0 0.0
  %2678 = vmatprep.subr.mxu0 0.0
  %2679 = vmatpush2.msra.mxu0 0.0
  %2680 = vmatprep.subr.mxu0 0.0
  %2681 = vmatpush2.msra.mxu0 0.0
  %2682 = vmatprep.subr.mxu0 0.0
  %2683 = vmatpush2.msra.mxu0 0.0
  %2684 = vmatprep.subr.mxu0 0.0
  %2685 = vmatpush2.msra.mxu0 0.0
  %2686 = vmatprep.subr.mxu0 0.0
  %2687 = vmatpush2.msra.mxu0 0.0
  %2688 = vmatprep.subr.mxu0 0.0
  %2689 = vmatpush2.msra.mxu0 0.0
  %2690 = vmatprep.subr.mxu0 0.0
  %2691 = vmatpush2.msra.mxu0 0.0
  %2692 = vmatprep.subr.mxu0 0.0
  %2693 = vmatpush2.msra.mxu0 0.0
  %2694 = vmatprep.mubr.f32.mxu0 0.0
  %2695 = vmatmul.mubr.f32.gmra.mxu0 %v2628
  %v2696 = vpop.f32.mrf.mxu0
  %v2697 = vadd.f32 0.0, %v2696
  %v2698 = vpop.f32.mrf.mxu0
  %2699 = vdwg.mxu0
  %2700 = vrot.lane.b32.xlu0 %v2516, 120
  %v2701 = vpop.permute.xlu0 %2700
  %2702 = vrot.lane.b32.xlu0 %v2516, 88
  %v2703 = vpop.permute.xlu0 %2702
  %v2704 = vsel %vm187, %v2701, 0
  %v2706 = vsel %vm187, %v2703, 0
  %2708 = vmatprep.subr.mxu0 0.0
  %2709 = vmatpush1.xpose.msra.mxu0 0.0
  %2710 = vmatprep.subr.mxu0 0.0
  %2711 = vmatpush1.xpose.msra.mxu0 0.0
  %2712 = vmatprep.subr.mxu0 0.0
  %2713 = vmatpush1.xpose.msra.mxu0 0.0
  %2714 = vmatprep.subr.mxu0 0.0
  %2715 = vmatpush1.xpose.msra.mxu0 0.0
  %2716 = vmatprep.subr.mxu0 0.0
  %2717 = vmatpush1.xpose.msra.mxu0 0.0
  %2718 = vmatprep.subr.mxu0 0.0
  %2719 = vmatpush1.xpose.msra.mxu0 0.0
  %2720 = vmatprep.subr.mxu0 0.0
  %2721 = vmatpush1.xpose.msra.mxu0 0.0
  %2722 = vmatprep.subr.mxu0 0.0
  %2723 = vmatpush1.xpose.msra.mxu0 0.0
  %2724 = vmatprep.subr.mxu0 0.0
  %2725 = vmatpush1.xpose.msra.mxu0 0.0
  %2726 = vmatprep.subr.mxu0 0.0
  %2727 = vmatpush1.xpose.msra.mxu0 0.0
  %2728 = vmatprep.subr.mxu0 0.0
  %2729 = vmatpush1.xpose.msra.mxu0 0.0
  %2730 = vmatprep.subr.mxu0 0.0
  %2731 = vmatpush1.xpose.msra.mxu0 0.0
  %2732 = vmatprep.subr.mxu0 0.0
  %2733 = vmatpush1.xpose.msra.mxu0 0.0
  %2734 = vmatprep.subr.mxu0 0.0
  %2735 = vmatpush1.xpose.msra.mxu0 0.0
  %2736 = vmatprep.subr.mxu0 0.0
  %2737 = vmatpush1.xpose.msra.mxu0 0.0
  %2738 = vmatprep.subr.mxu0 0.0
  %2739 = vmatpush1.xpose.msra.mxu0 %v2706
  %2740 = vmatprep.subr.mxu0 0.0
  %2741 = vmatpush2.xpose.msra.mxu0 0.0
  %2742 = vmatprep.subr.mxu0 0.0
  %2743 = vmatpush2.xpose.msra.mxu0 0.0
  %2744 = vmatprep.subr.mxu0 0.0
  %2745 = vmatpush2.xpose.msra.mxu0 0.0
  %2746 = vmatprep.subr.mxu0 0.0
  %2747 = vmatpush2.xpose.msra.mxu0 0.0
  %2748 = vmatprep.subr.mxu0 0.0
  %2749 = vmatpush2.xpose.msra.mxu0 0.0
  %2750 = vmatprep.subr.mxu0 0.0
  %2751 = vmatpush2.xpose.msra.mxu0 0.0
  %2752 = vmatprep.subr.mxu0 0.0
  %2753 = vmatpush2.xpose.msra.mxu0 0.0
  %2754 = vmatprep.subr.mxu0 0.0
  %2755 = vmatpush2.xpose.msra.mxu0 0.0
  %2756 = vmatprep.subr.mxu0 0.0
  %2757 = vmatpush2.xpose.msra.mxu0 0.0
  %2758 = vmatprep.subr.mxu0 0.0
  %2759 = vmatpush2.xpose.msra.mxu0 0.0
  %2760 = vmatprep.subr.mxu0 0.0
  %2761 = vmatpush2.xpose.msra.mxu0 0.0
  %2762 = vmatprep.subr.mxu0 0.0
  %2763 = vmatpush2.xpose.msra.mxu0 0.0
  %2764 = vmatprep.subr.mxu0 0.0
  %2765 = vmatpush2.xpose.msra.mxu0 0.0
  %2766 = vmatprep.subr.mxu0 0.0
  %2767 = vmatpush2.xpose.msra.mxu0 0.0
  %2768 = vmatprep.subr.mxu0 0.0
  %2769 = vmatpush2.xpose.msra.mxu0 0.0
  %2770 = vmatprep.subr.mxu0 0.0
  %2771 = vmatpush2.xpose.msra.mxu0 0.0
  %2772 = vmatprep.mubr.f32.mxu0 0.0
  %2773 = vmatmul.mubr.f32.gmra.mxu0 %v2704
  %v2774 = vpop.f32.mrf.mxu0
  %v2775 = vadd.f32 0.0, %v2774
  %v2776 = vpop.f32.mrf.mxu0
  %2777 = vdwg.mxu0
  %v2778 = vmul.f32 %v2775, 0.35355338
  %v2779 = vsel %vm187, %v2778, -inf
  %2780 = vmax.xlane.f32.xlu0 %v2779
  %v2781 = vpop.xlane.xlu0 %2780
  %v2782 = vsub.f32 %v2778, %v2781
  %v2783 = vmul.f32 %v2782, 1.442695
  %v2784 = vpow.pop %v2783
  %v2785 = vsel %vm187, %v2784, 0.0
  %2786 = vadd.xlane.f32.xlu0 %v2785
  %v2787 = vpop.xlane.xlu0 %2786
  %v2788 = vrcp.pop %v2787
  %v2789 = vmul.f32 %v2784, %v2788
  %2790 = vrot.lane.b32.xlu0 %v2516, 56
  %v2791 = vpop.permute.xlu0 %2790
  %v2794 = vsel %vm187, %v2789, 0
  %2796 = vmatprep.subr.mxu0 0.0
  %2797 = vmatpush1.msra.mxu0 0.0
  %2798 = vmatprep.subr.mxu0 0.0
  %2799 = vmatpush1.msra.mxu0 0.0
  %2800 = vmatprep.subr.mxu0 0.0
  %2801 = vmatpush1.msra.mxu0 0.0
  %2802 = vmatprep.subr.mxu0 0.0
  %2803 = vmatpush1.msra.mxu0 0.0
  %2804 = vmatprep.subr.mxu0 0.0
  %2805 = vmatpush1.msra.mxu0 0.0
  %2806 = vmatprep.subr.mxu0 0.0
  %2807 = vmatpush1.msra.mxu0 0.0
  %2808 = vmatprep.subr.mxu0 0.0
  %2809 = vmatpush1.msra.mxu0 0.0
  %2810 = vmatprep.subr.mxu0 0.0
  %2811 = vmatpush1.msra.mxu0 0.0
  %2812 = vmatprep.subr.mxu0 0.0
  %2813 = vmatpush1.msra.mxu0 0.0
  %2814 = vmatprep.subr.mxu0 0.0
  %2815 = vmatpush1.msra.mxu0 0.0
  %2816 = vmatprep.subr.mxu0 0.0
  %2817 = vmatpush1.msra.mxu0 0.0
  %2818 = vmatprep.subr.mxu0 0.0
  %2819 = vmatpush1.msra.mxu0 0.0
  %2820 = vmatprep.subr.mxu0 0.0
  %2821 = vmatpush1.msra.mxu0 0.0
  %2822 = vmatprep.subr.mxu0 0.0
  %2823 = vmatpush1.msra.mxu0 0.0
  %2824 = vmatprep.subr.mxu0 0.0
  %2825 = vmatpush1.msra.mxu0 0.0
  %2826 = vmatprep.subr.mxu0 0.0
  %2827 = vmatpush1.msra.mxu0 %v2791
  %2828 = vmatprep.subr.mxu0 0.0
  %2829 = vmatpush2.msra.mxu0 0.0
  %2830 = vmatprep.subr.mxu0 0.0
  %2831 = vmatpush2.msra.mxu0 0.0
  %2832 = vmatprep.subr.mxu0 0.0
  %2833 = vmatpush2.msra.mxu0 0.0
  %2834 = vmatprep.subr.mxu0 0.0
  %2835 = vmatpush2.msra.mxu0 0.0
  %2836 = vmatprep.subr.mxu0 0.0
  %2837 = vmatpush2.msra.mxu0 0.0
  %2838 = vmatprep.subr.mxu0 0.0
  %2839 = vmatpush2.msra.mxu0 0.0
  %2840 = vmatprep.subr.mxu0 0.0
  %2841 = vmatpush2.msra.mxu0 0.0
  %2842 = vmatprep.subr.mxu0 0.0
  %2843 = vmatpush2.msra.mxu0 0.0
  %2844 = vmatprep.subr.mxu0 0.0
  %2845 = vmatpush2.msra.mxu0 0.0
  %2846 = vmatprep.subr.mxu0 0.0
  %2847 = vmatpush2.msra.mxu0 0.0
  %2848 = vmatprep.subr.mxu0 0.0
  %2849 = vmatpush2.msra.mxu0 0.0
  %2850 = vmatprep.subr.mxu0 0.0
  %2851 = vmatpush2.msra.mxu0 0.0
  %2852 = vmatprep.subr.mxu0 0.0
  %2853 = vmatpush2.msra.mxu0 0.0
  %2854 = vmatprep.subr.mxu0 0.0
  %2855 = vmatpush2.msra.mxu0 0.0
  %2856 = vmatprep.subr.mxu0 0.0
  %2857 = vmatpush2.msra.mxu0 0.0
  %2858 = vmatprep.subr.mxu0 0.0
  %2859 = vmatpush2.msra.mxu0 0.0
  %2860 = vmatprep.mubr.f32.mxu0 0.0
  %2861 = vmatmul.mubr.f32.gmra.mxu0 %v2794
  %v2862 = vpop.f32.mrf.mxu0
  %v2863 = vadd.f32 0.0, %v2862
  %v2864 = vpop.f32.mrf.mxu0
  %2865 = vdwg.mxu0
  %v2867 = vsel %vm187, %v2863, 0
  %2869 = vmatprep.subr.mxu0 0.0
  %2870 = vmatpush1.msra.mxu0 0.0
  %2871 = vmatprep.subr.mxu0 0.0
  %2872 = vmatpush1.msra.mxu0 0.0
  %2873 = vmatprep.subr.mxu0 0.0
  %2874 = vmatpush1.msra.mxu0 0.0
  %2875 = vmatprep.subr.mxu0 0.0
  %2876 = vmatpush1.msra.mxu0 0.0
  %2877 = vmatprep.subr.mxu0 0.0
  %2878 = vmatpush1.msra.mxu0 0.0
  %2879 = vmatprep.subr.mxu0 0.0
  %2880 = vmatpush1.msra.mxu0 0.0
  %2881 = vmatprep.subr.mxu0 0.0
  %2882 = vmatpush1.msra.mxu0 0.0
  %2883 = vmatprep.subr.mxu0 0.0
  %2884 = vmatpush1.msra.mxu0 0.0
  %2885 = vmatprep.subr.mxu0 0.0
  %2886 = vmatpush1.msra.mxu0 0.0
  %2887 = vmatprep.subr.mxu0 0.0
  %2888 = vmatpush1.msra.mxu0 0.0
  %2889 = vmatprep.subr.mxu0 0.0
  %2890 = vmatpush1.msra.mxu0 0.0
  %2891 = vmatprep.subr.mxu0 0.0
  %2892 = vmatpush1.msra.mxu0 0.0
  %2893 = vmatprep.subr.mxu0 0.0
  %2894 = vmatpush1.msra.mxu0 0.0
  %2895 = vmatprep.subr.mxu0 0.0
  %2896 = vmatpush1.msra.mxu0 0.0
  %2897 = vmatprep.subr.mxu0 0.0
  %2898 = vmatpush1.msra.mxu0 0.0
  %2899 = vmatprep.subr.mxu0 0.0
  %2900 = vmatpush1.msra.mxu0 %v2526
  %2901 = vmatprep.subr.mxu0 0.0
  %2902 = vmatpush2.msra.mxu0 0.0
  %2903 = vmatprep.subr.mxu0 0.0
  %2904 = vmatpush2.msra.mxu0 0.0
  %2905 = vmatprep.subr.mxu0 0.0
  %2906 = vmatpush2.msra.mxu0 0.0
  %2907 = vmatprep.subr.mxu0 0.0
  %2908 = vmatpush2.msra.mxu0 0.0
  %2909 = vmatprep.subr.mxu0 0.0
  %2910 = vmatpush2.msra.mxu0 0.0
  %2911 = vmatprep.subr.mxu0 0.0
  %2912 = vmatpush2.msra.mxu0 0.0
  %2913 = vmatprep.subr.mxu0 0.0
  %2914 = vmatpush2.msra.mxu0 0.0
  %2915 = vmatprep.subr.mxu0 0.0
  %2916 = vmatpush2.msra.mxu0 0.0
  %2917 = vmatprep.subr.mxu0 0.0
  %2918 = vmatpush2.msra.mxu0 0.0
  %2919 = vmatprep.subr.mxu0 0.0
  %2920 = vmatpush2.msra.mxu0 0.0
  %2921 = vmatprep.subr.mxu0 0.0
  %2922 = vmatpush2.msra.mxu0 0.0
  %2923 = vmatprep.subr.mxu0 0.0
  %2924 = vmatpush2.msra.mxu0 0.0
  %2925 = vmatprep.subr.mxu0 0.0
  %2926 = vmatpush2.msra.mxu0 0.0
  %2927 = vmatprep.subr.mxu0 0.0
  %2928 = vmatpush2.msra.mxu0 0.0
  %2929 = vmatprep.subr.mxu0 0.0
  %2930 = vmatpush2.msra.mxu0 0.0
  %2931 = vmatprep.subr.mxu0 0.0
  %2932 = vmatpush2.msra.mxu0 0.0
  %2933 = vmatprep.mubr.f32.mxu0 0.0
  %2934 = vmatmul.mubr.f32.gmra.mxu0 %v2867
  %v2935 = vpop.f32.mrf.mxu0
  %v2936 = vadd.f32 0.0, %v2935
  %v2937 = vpop.f32.mrf.mxu0
  %2938 = vdwg.mxu0
  %v2940 = vsel %vm187, %v2697, 0
  %2942 = vmatprep.subr.mxu0 0.0
  %2943 = vmatpush1.msra.mxu0 0.0
  %2944 = vmatprep.subr.mxu0 0.0
  %2945 = vmatpush1.msra.mxu0 0.0
  %2946 = vmatprep.subr.mxu0 0.0
  %2947 = vmatpush1.msra.mxu0 0.0
  %2948 = vmatprep.subr.mxu0 0.0
  %2949 = vmatpush1.msra.mxu0 0.0
  %2950 = vmatprep.subr.mxu0 0.0
  %2951 = vmatpush1.msra.mxu0 0.0
  %2952 = vmatprep.subr.mxu0 0.0
  %2953 = vmatpush1.msra.mxu0 0.0
  %2954 = vmatprep.subr.mxu0 0.0
  %2955 = vmatpush1.msra.mxu0 0.0
  %2956 = vmatprep.subr.mxu0 0.0
  %2957 = vmatpush1.msra.mxu0 0.0
  %2958 = vmatprep.subr.mxu0 0.0
  %2959 = vmatpush1.msra.mxu0 0.0
  %2960 = vmatprep.subr.mxu0 0.0
  %2961 = vmatpush1.msra.mxu0 0.0
  %2962 = vmatprep.subr.mxu0 0.0
  %2963 = vmatpush1.msra.mxu0 0.0
  %2964 = vmatprep.subr.mxu0 0.0
  %2965 = vmatpush1.msra.mxu0 0.0
  %2966 = vmatprep.subr.mxu0 0.0
  %2967 = vmatpush1.msra.mxu0 0.0
  %2968 = vmatprep.subr.mxu0 0.0
  %2969 = vmatpush1.msra.mxu0 0.0
  %2970 = vmatprep.subr.mxu0 0.0
  %2971 = vmatpush1.msra.mxu0 0.0
  %2972 = vmatprep.subr.mxu0 0.0
  %2973 = vmatpush1.msra.mxu0 %v2525
  %2974 = vmatprep.subr.mxu0 0.0
  %2975 = vmatpush2.msra.mxu0 0.0
  %2976 = vmatprep.subr.mxu0 0.0
  %2977 = vmatpush2.msra.mxu0 0.0
  %2978 = vmatprep.subr.mxu0 0.0
  %2979 = vmatpush2.msra.mxu0 0.0
  %2980 = vmatprep.subr.mxu0 0.0
  %2981 = vmatpush2.msra.mxu0 0.0
  %2982 = vmatprep.subr.mxu0 0.0
  %2983 = vmatpush2.msra.mxu0 0.0
  %2984 = vmatprep.subr.mxu0 0.0
  %2985 = vmatpush2.msra.mxu0 0.0
  %2986 = vmatprep.subr.mxu0 0.0
  %2987 = vmatpush2.msra.mxu0 0.0
  %2988 = vmatprep.subr.mxu0 0.0
  %2989 = vmatpush2.msra.mxu0 0.0
  %2990 = vmatprep.subr.mxu0 0.0
  %2991 = vmatpush2.msra.mxu0 0.0
  %2992 = vmatprep.subr.mxu0 0.0
  %2993 = vmatpush2.msra.mxu0 0.0
  %2994 = vmatprep.subr.mxu0 0.0
  %2995 = vmatpush2.msra.mxu0 0.0
  %2996 = vmatprep.subr.mxu0 0.0
  %2997 = vmatpush2.msra.mxu0 0.0
  %2998 = vmatprep.subr.mxu0 0.0
  %2999 = vmatpush2.msra.mxu0 0.0
  %3000 = vmatprep.subr.mxu0 0.0
  %3001 = vmatpush2.msra.mxu0 0.0
  %3002 = vmatprep.subr.mxu0 0.0
  %3003 = vmatpush2.msra.mxu0 0.0
  %3004 = vmatprep.subr.mxu0 0.0
  %3005 = vmatpush2.msra.mxu0 0.0
  %3006 = vmatprep.mubr.f32.mxu0 0.0
  %3007 = vmatmul.mubr.f32.gmra.mxu0 %v2940
  %v3008 = vpop.f32.mrf.mxu0
  %v3009 = vadd.f32 %v2936, %v3008
  %v3010 = vpop.f32.mrf.mxu0
  %3011 = vdwg.mxu0
  %3012 = vrot.lane.b32.xlu0 %v2516, 112
  %v3013 = vpop.permute.xlu0 %3012
  %3014 = vrot.lane.b32.xlu0 %v2516, 80
  %v3015 = vpop.permute.xlu0 %3014
  %v3016 = vsel %vm187, %v3013, 0
  %v3018 = vsel %vm187, %v3015, 0
  %3020 = vmatprep.subr.mxu0 0.0
  %3021 = vmatpush1.xpose.msra.mxu0 0.0
  %3022 = vmatprep.subr.mxu0 0.0
  %3023 = vmatpush1.xpose.msra.mxu0 0.0
  %3024 = vmatprep.subr.mxu0 0.0
  %3025 = vmatpush1.xpose.msra.mxu0 0.0
  %3026 = vmatprep.subr.mxu0 0.0
  %3027 = vmatpush1.xpose.msra.mxu0 0.0
  %3028 = vmatprep.subr.mxu0 0.0
  %3029 = vmatpush1.xpose.msra.mxu0 0.0
  %3030 = vmatprep.subr.mxu0 0.0
  %3031 = vmatpush1.xpose.msra.mxu0 0.0
  %3032 = vmatprep.subr.mxu0 0.0
  %3033 = vmatpush1.xpose.msra.mxu0 0.0
  %3034 = vmatprep.subr.mxu0 0.0
  %3035 = vmatpush1.xpose.msra.mxu0 0.0
  %3036 = vmatprep.subr.mxu0 0.0
  %3037 = vmatpush1.xpose.msra.mxu0 0.0
  %3038 = vmatprep.subr.mxu0 0.0
  %3039 = vmatpush1.xpose.msra.mxu0 0.0
  %3040 = vmatprep.subr.mxu0 0.0
  %3041 = vmatpush1.xpose.msra.mxu0 0.0
  %3042 = vmatprep.subr.mxu0 0.0
  %3043 = vmatpush1.xpose.msra.mxu0 0.0
  %3044 = vmatprep.subr.mxu0 0.0
  %3045 = vmatpush1.xpose.msra.mxu0 0.0
  %3046 = vmatprep.subr.mxu0 0.0
  %3047 = vmatpush1.xpose.msra.mxu0 0.0
  %3048 = vmatprep.subr.mxu0 0.0
  %3049 = vmatpush1.xpose.msra.mxu0 0.0
  %3050 = vmatprep.subr.mxu0 0.0
  %3051 = vmatpush1.xpose.msra.mxu0 %v3018
  %3052 = vmatprep.subr.mxu0 0.0
  %3053 = vmatpush2.xpose.msra.mxu0 0.0
  %3054 = vmatprep.subr.mxu0 0.0
  %3055 = vmatpush2.xpose.msra.mxu0 0.0
  %3056 = vmatprep.subr.mxu0 0.0
  %3057 = vmatpush2.xpose.msra.mxu0 0.0
  %3058 = vmatprep.subr.mxu0 0.0
  %3059 = vmatpush2.xpose.msra.mxu0 0.0
  %3060 = vmatprep.subr.mxu0 0.0
  %3061 = vmatpush2.xpose.msra.mxu0 0.0
  %3062 = vmatprep.subr.mxu0 0.0
  %3063 = vmatpush2.xpose.msra.mxu0 0.0
  %3064 = vmatprep.subr.mxu0 0.0
  %3065 = vmatpush2.xpose.msra.mxu0 0.0
  %3066 = vmatprep.subr.mxu0 0.0
  %3067 = vmatpush2.xpose.msra.mxu0 0.0
  %3068 = vmatprep.subr.mxu0 0.0
  %3069 = vmatpush2.xpose.msra.mxu0 0.0
  %3070 = vmatprep.subr.mxu0 0.0
  %3071 = vmatpush2.xpose.msra.mxu0 0.0
  %3072 = vmatprep.subr.mxu0 0.0
  %3073 = vmatpush2.xpose.msra.mxu0 0.0
  %3074 = vmatprep.subr.mxu0 0.0
  %3075 = vmatpush2.xpose.msra.mxu0 0.0
  %3076 = vmatprep.subr.mxu0 0.0
  %3077 = vmatpush2.xpose.msra.mxu0 0.0
  %3078 = vmatprep.subr.mxu0 0.0
  %3079 = vmatpush2.xpose.msra.mxu0 0.0
  %3080 = vmatprep.subr.mxu0 0.0
  %3081 = vmatpush2.xpose.msra.mxu0 0.0
  %3082 = vmatprep.subr.mxu0 0.0
  %3083 = vmatpush2.xpose.msra.mxu0 0.0
  %3084 = vmatprep.mubr.f32.mxu0 0.0
  %3085 = vmatmul.mubr.f32.gmra.mxu0 %v3016
  %v3086 = vpop.f32.mrf.mxu0
  %v3087 = vadd.f32 0.0, %v3086
  %v3088 = vpop.f32.mrf.mxu0
  %3089 = vdwg.mxu0
  %v3090 = vmul.f32 %v3087, 0.35355338
  %v3091 = vsel %vm187, %v3090, -inf
  %3092 = vmax.xlane.f32.xlu0 %v3091
  %v3093 = vpop.xlane.xlu0 %3092
  %v3094 = vsub.f32 %v3090, %v3093
  %v3095 = vmul.f32 %v3094, 1.442695
  %v3096 = vpow.pop %v3095
  %v3097 = vsel %vm187, %v3096, 0.0
  %3098 = vadd.xlane.f32.xlu0 %v3097
  %v3099 = vpop.xlane.xlu0 %3098
  %v3100 = vrcp.pop %v3099
  %v3101 = vmul.f32 %v3096, %v3100
  %3102 = vrot.lane.b32.xlu0 %v2516, 48
  %v3103 = vpop.permute.xlu0 %3102
  %v3106 = vsel %vm187, %v3101, 0
  %3108 = vmatprep.subr.mxu0 0.0
  %3109 = vmatpush1.msra.mxu0 0.0
  %3110 = vmatprep.subr.mxu0 0.0
  %3111 = vmatpush1.msra.mxu0 0.0
  %3112 = vmatprep.subr.mxu0 0.0
  %3113 = vmatpush1.msra.mxu0 0.0
  %3114 = vmatprep.subr.mxu0 0.0
  %3115 = vmatpush1.msra.mxu0 0.0
  %3116 = vmatprep.subr.mxu0 0.0
  %3117 = vmatpush1.msra.mxu0 0.0
  %3118 = vmatprep.subr.mxu0 0.0
  %3119 = vmatpush1.msra.mxu0 0.0
  %3120 = vmatprep.subr.mxu0 0.0
  %3121 = vmatpush1.msra.mxu0 0.0
  %3122 = vmatprep.subr.mxu0 0.0
  %3123 = vmatpush1.msra.mxu0 0.0
  %3124 = vmatprep.subr.mxu0 0.0
  %3125 = vmatpush1.msra.mxu0 0.0
  %3126 = vmatprep.subr.mxu0 0.0
  %3127 = vmatpush1.msra.mxu0 0.0
  %3128 = vmatprep.subr.mxu0 0.0
  %3129 = vmatpush1.msra.mxu0 0.0
  %3130 = vmatprep.subr.mxu0 0.0
  %3131 = vmatpush1.msra.mxu0 0.0
  %3132 = vmatprep.subr.mxu0 0.0
  %3133 = vmatpush1.msra.mxu0 0.0
  %3134 = vmatprep.subr.mxu0 0.0
  %3135 = vmatpush1.msra.mxu0 0.0
  %3136 = vmatprep.subr.mxu0 0.0
  %3137 = vmatpush1.msra.mxu0 0.0
  %3138 = vmatprep.subr.mxu0 0.0
  %3139 = vmatpush1.msra.mxu0 %v3103
  %3140 = vmatprep.subr.mxu0 0.0
  %3141 = vmatpush2.msra.mxu0 0.0
  %3142 = vmatprep.subr.mxu0 0.0
  %3143 = vmatpush2.msra.mxu0 0.0
  %3144 = vmatprep.subr.mxu0 0.0
  %3145 = vmatpush2.msra.mxu0 0.0
  %3146 = vmatprep.subr.mxu0 0.0
  %3147 = vmatpush2.msra.mxu0 0.0
  %3148 = vmatprep.subr.mxu0 0.0
  %3149 = vmatpush2.msra.mxu0 0.0
  %3150 = vmatprep.subr.mxu0 0.0
  %3151 = vmatpush2.msra.mxu0 0.0
  %3152 = vmatprep.subr.mxu0 0.0
  %3153 = vmatpush2.msra.mxu0 0.0
  %3154 = vmatprep.subr.mxu0 0.0
  %3155 = vmatpush2.msra.mxu0 0.0
  %3156 = vmatprep.subr.mxu0 0.0
  %3157 = vmatpush2.msra.mxu0 0.0
  %3158 = vmatprep.subr.mxu0 0.0
  %3159 = vmatpush2.msra.mxu0 0.0
  %3160 = vmatprep.subr.mxu0 0.0
  %3161 = vmatpush2.msra.mxu0 0.0
  %3162 = vmatprep.subr.mxu0 0.0
  %3163 = vmatpush2.msra.mxu0 0.0
  %3164 = vmatprep.subr.mxu0 0.0
  %3165 = vmatpush2.msra.mxu0 0.0
  %3166 = vmatprep.subr.mxu0 0.0
  %3167 = vmatpush2.msra.mxu0 0.0
  %3168 = vmatprep.subr.mxu0 0.0
  %3169 = vmatpush2.msra.mxu0 0.0
  %3170 = vmatprep.subr.mxu0 0.0
  %3171 = vmatpush2.msra.mxu0 0.0
  %3172 = vmatprep.mubr.f32.mxu0 0.0
  %3173 = vmatmul.mubr.f32.gmra.mxu0 %v3106
  %v3174 = vpop.f32.mrf.mxu0
  %v3175 = vadd.f32 0.0, %v3174
  %v3176 = vpop.f32.mrf.mxu0
  %3177 = vdwg.mxu0
  %v3179 = vsel %vm187, %v3175, 0
  %3181 = vmatprep.subr.mxu0 0.0
  %3182 = vmatpush1.msra.mxu0 0.0
  %3183 = vmatprep.subr.mxu0 0.0
  %3184 = vmatpush1.msra.mxu0 0.0
  %3185 = vmatprep.subr.mxu0 0.0
  %3186 = vmatpush1.msra.mxu0 0.0
  %3187 = vmatprep.subr.mxu0 0.0
  %3188 = vmatpush1.msra.mxu0 0.0
  %3189 = vmatprep.subr.mxu0 0.0
  %3190 = vmatpush1.msra.mxu0 0.0
  %3191 = vmatprep.subr.mxu0 0.0
  %3192 = vmatpush1.msra.mxu0 0.0
  %3193 = vmatprep.subr.mxu0 0.0
  %3194 = vmatpush1.msra.mxu0 0.0
  %3195 = vmatprep.subr.mxu0 0.0
  %3196 = vmatpush1.msra.mxu0 0.0
  %3197 = vmatprep.subr.mxu0 0.0
  %3198 = vmatpush1.msra.mxu0 0.0
  %3199 = vmatprep.subr.mxu0 0.0
  %3200 = vmatpush1.msra.mxu0 0.0
  %3201 = vmatprep.subr.mxu0 0.0
  %3202 = vmatpush1.msra.mxu0 0.0
  %3203 = vmatprep.subr.mxu0 0.0
  %3204 = vmatpush1.msra.mxu0 0.0
  %3205 = vmatprep.subr.mxu0 0.0
  %3206 = vmatpush1.msra.mxu0 0.0
  %3207 = vmatprep.subr.mxu0 0.0
  %3208 = vmatpush1.msra.mxu0 0.0
  %3209 = vmatprep.subr.mxu0 0.0
  %3210 = vmatpush1.msra.mxu0 0.0
  %3211 = vmatprep.subr.mxu0 0.0
  %3212 = vmatpush1.msra.mxu0 %v2527
  %3213 = vmatprep.subr.mxu0 0.0
  %3214 = vmatpush2.msra.mxu0 0.0
  %3215 = vmatprep.subr.mxu0 0.0
  %3216 = vmatpush2.msra.mxu0 0.0
  %3217 = vmatprep.subr.mxu0 0.0
  %3218 = vmatpush2.msra.mxu0 0.0
  %3219 = vmatprep.subr.mxu0 0.0
  %3220 = vmatpush2.msra.mxu0 0.0
  %3221 = vmatprep.subr.mxu0 0.0
  %3222 = vmatpush2.msra.mxu0 0.0
  %3223 = vmatprep.subr.mxu0 0.0
  %3224 = vmatpush2.msra.mxu0 0.0
  %3225 = vmatprep.subr.mxu0 0.0
  %3226 = vmatpush2.msra.mxu0 0.0
  %3227 = vmatprep.subr.mxu0 0.0
  %3228 = vmatpush2.msra.mxu0 0.0
  %3229 = vmatprep.subr.mxu0 0.0
  %3230 = vmatpush2.msra.mxu0 0.0
  %3231 = vmatprep.subr.mxu0 0.0
  %3232 = vmatpush2.msra.mxu0 0.0
  %3233 = vmatprep.subr.mxu0 0.0
  %3234 = vmatpush2.msra.mxu0 0.0
  %3235 = vmatprep.subr.mxu0 0.0
  %3236 = vmatpush2.msra.mxu0 0.0
  %3237 = vmatprep.subr.mxu0 0.0
  %3238 = vmatpush2.msra.mxu0 0.0
  %3239 = vmatprep.subr.mxu0 0.0
  %3240 = vmatpush2.msra.mxu0 0.0
  %3241 = vmatprep.subr.mxu0 0.0
  %3242 = vmatpush2.msra.mxu0 0.0
  %3243 = vmatprep.subr.mxu0 0.0
  %3244 = vmatpush2.msra.mxu0 0.0
  %3245 = vmatprep.mubr.f32.mxu0 0.0
  %3246 = vmatmul.mubr.f32.gmra.mxu0 %v3179
  %v3247 = vpop.f32.mrf.mxu0
  %v3248 = vadd.f32 0.0, %v3247
  %v3249 = vpop.f32.mrf.mxu0
  %3250 = vdwg.mxu0
  %v3251 = vadd.f32 %v3009, %v3248
  %3252 = vrot.lane.b32.xlu0 %v2516, 104
  %v3253 = vpop.permute.xlu0 %3252
  %3254 = vrot.lane.b32.xlu0 %v2516, 72
  %v3255 = vpop.permute.xlu0 %3254
  %v3256 = vsel %vm187, %v3253, 0
  %v3258 = vsel %vm187, %v3255, 0
  %3260 = vmatprep.subr.mxu0 0.0
  %3261 = vmatpush1.xpose.msra.mxu0 0.0
  %3262 = vmatprep.subr.mxu0 0.0
  %3263 = vmatpush1.xpose.msra.mxu0 0.0
  %3264 = vmatprep.subr.mxu0 0.0
  %3265 = vmatpush1.xpose.msra.mxu0 0.0
  %3266 = vmatprep.subr.mxu0 0.0
  %3267 = vmatpush1.xpose.msra.mxu0 0.0
  %3268 = vmatprep.subr.mxu0 0.0
  %3269 = vmatpush1.xpose.msra.mxu0 0.0
  %3270 = vmatprep.subr.mxu0 0.0
  %3271 = vmatpush1.xpose.msra.mxu0 0.0
  %3272 = vmatprep.subr.mxu0 0.0
  %3273 = vmatpush1.xpose.msra.mxu0 0.0
  %3274 = vmatprep.subr.mxu0 0.0
  %3275 = vmatpush1.xpose.msra.mxu0 0.0
  %3276 = vmatprep.subr.mxu0 0.0
  %3277 = vmatpush1.xpose.msra.mxu0 0.0
  %3278 = vmatprep.subr.mxu0 0.0
  %3279 = vmatpush1.xpose.msra.mxu0 0.0
  %3280 = vmatprep.subr.mxu0 0.0
  %3281 = vmatpush1.xpose.msra.mxu0 0.0
  %3282 = vmatprep.subr.mxu0 0.0
  %3283 = vmatpush1.xpose.msra.mxu0 0.0
  %3284 = vmatprep.subr.mxu0 0.0
  %3285 = vmatpush1.xpose.msra.mxu0 0.0
  %3286 = vmatprep.subr.mxu0 0.0
  %3287 = vmatpush1.xpose.msra.mxu0 0.0
  %3288 = vmatprep.subr.mxu0 0.0
  %3289 = vmatpush1.xpose.msra.mxu0 0.0
  %3290 = vmatprep.subr.mxu0 0.0
  %3291 = vmatpush1.xpose.msra.mxu0 %v3258
  %3292 = vmatprep.subr.mxu0 0.0
  %3293 = vmatpush2.xpose.msra.mxu0 0.0
  %3294 = vmatprep.subr.mxu0 0.0
  %3295 = vmatpush2.xpose.msra.mxu0 0.0
  %3296 = vmatprep.subr.mxu0 0.0
  %3297 = vmatpush2.xpose.msra.mxu0 0.0
  %3298 = vmatprep.subr.mxu0 0.0
  %3299 = vmatpush2.xpose.msra.mxu0 0.0
  %3300 = vmatprep.subr.mxu0 0.0
  %3301 = vmatpush2.xpose.msra.mxu0 0.0
  %3302 = vmatprep.subr.mxu0 0.0
  %3303 = vmatpush2.xpose.msra.mxu0 0.0
  %3304 = vmatprep.subr.mxu0 0.0
  %3305 = vmatpush2.xpose.msra.mxu0 0.0
  %3306 = vmatprep.subr.mxu0 0.0
  %3307 = vmatpush2.xpose.msra.mxu0 0.0
  %3308 = vmatprep.subr.mxu0 0.0
  %3309 = vmatpush2.xpose.msra.mxu0 0.0
  %3310 = vmatprep.subr.mxu0 0.0
  %3311 = vmatpush2.xpose.msra.mxu0 0.0
  %3312 = vmatprep.subr.mxu0 0.0
  %3313 = vmatpush2.xpose.msra.mxu0 0.0
  %3314 = vmatprep.subr.mxu0 0.0
  %3315 = vmatpush2.xpose.msra.mxu0 0.0
  %3316 = vmatprep.subr.mxu0 0.0
  %3317 = vmatpush2.xpose.msra.mxu0 0.0
  %3318 = vmatprep.subr.mxu0 0.0
  %3319 = vmatpush2.xpose.msra.mxu0 0.0
  %3320 = vmatprep.subr.mxu0 0.0
  %3321 = vmatpush2.xpose.msra.mxu0 0.0
  %3322 = vmatprep.subr.mxu0 0.0
  %3323 = vmatpush2.xpose.msra.mxu0 0.0
  %3324 = vmatprep.mubr.f32.mxu0 0.0
  %3325 = vmatmul.mubr.f32.gmra.mxu0 %v3256
  %v3326 = vpop.f32.mrf.mxu0
  %v3327 = vadd.f32 0.0, %v3326
  %v3328 = vpop.f32.mrf.mxu0
  %3329 = vdwg.mxu0
  %v3330 = vmul.f32 %v3327, 0.35355338
  %v3331 = vsel %vm187, %v3330, -inf
  %3332 = vmax.xlane.f32.xlu0 %v3331
  %v3333 = vpop.xlane.xlu0 %3332
  %v3334 = vsub.f32 %v3330, %v3333
  %v3335 = vmul.f32 %v3334, 1.442695
  %v3336 = vpow.pop %v3335
  %v3337 = vsel %vm187, %v3336, 0.0
  %3338 = vadd.xlane.f32.xlu0 %v3337
  %v3339 = vpop.xlane.xlu0 %3338
  %v3340 = vrcp.pop %v3339
  %v3341 = vmul.f32 %v3336, %v3340
  %3342 = vrot.lane.b32.xlu0 %v2516, 40
  %v3343 = vpop.permute.xlu0 %3342
  %v3346 = vsel %vm187, %v3341, 0
  %3348 = vmatprep.subr.mxu0 0.0
  %3349 = vmatpush1.msra.mxu0 0.0
  %3350 = vmatprep.subr.mxu0 0.0
  %3351 = vmatpush1.msra.mxu0 0.0
  %3352 = vmatprep.subr.mxu0 0.0
  %3353 = vmatpush1.msra.mxu0 0.0
  %3354 = vmatprep.subr.mxu0 0.0
  %3355 = vmatpush1.msra.mxu0 0.0
  %3356 = vmatprep.subr.mxu0 0.0
  %3357 = vmatpush1.msra.mxu0 0.0
  %3358 = vmatprep.subr.mxu0 0.0
  %3359 = vmatpush1.msra.mxu0 0.0
  %3360 = vmatprep.subr.mxu0 0.0
  %3361 = vmatpush1.msra.mxu0 0.0
  %3362 = vmatprep.subr.mxu0 0.0
  %3363 = vmatpush1.msra.mxu0 0.0
  %3364 = vmatprep.subr.mxu0 0.0
  %3365 = vmatpush1.msra.mxu0 0.0
  %3366 = vmatprep.subr.mxu0 0.0
  %3367 = vmatpush1.msra.mxu0 0.0
  %3368 = vmatprep.subr.mxu0 0.0
  %3369 = vmatpush1.msra.mxu0 0.0
  %3370 = vmatprep.subr.mxu0 0.0
  %3371 = vmatpush1.msra.mxu0 0.0
  %3372 = vmatprep.subr.mxu0 0.0
  %3373 = vmatpush1.msra.mxu0 0.0
  %3374 = vmatprep.subr.mxu0 0.0
  %3375 = vmatpush1.msra.mxu0 0.0
  %3376 = vmatprep.subr.mxu0 0.0
  %3377 = vmatpush1.msra.mxu0 0.0
  %3378 = vmatprep.subr.mxu0 0.0
  %3379 = vmatpush1.msra.mxu0 %v3343
  %3380 = vmatprep.subr.mxu0 0.0
  %3381 = vmatpush2.msra.mxu0 0.0
  %3382 = vmatprep.subr.mxu0 0.0
  %3383 = vmatpush2.msra.mxu0 0.0
  %3384 = vmatprep.subr.mxu0 0.0
  %3385 = vmatpush2.msra.mxu0 0.0
  %3386 = vmatprep.subr.mxu0 0.0
  %3387 = vmatpush2.msra.mxu0 0.0
  %3388 = vmatprep.subr.mxu0 0.0
  %3389 = vmatpush2.msra.mxu0 0.0
  %3390 = vmatprep.subr.mxu0 0.0
  %3391 = vmatpush2.msra.mxu0 0.0
  %3392 = vmatprep.subr.mxu0 0.0
  %3393 = vmatpush2.msra.mxu0 0.0
  %3394 = vmatprep.subr.mxu0 0.0
  %3395 = vmatpush2.msra.mxu0 0.0
  %3396 = vmatprep.subr.mxu0 0.0
  %3397 = vmatpush2.msra.mxu0 0.0
  %3398 = vmatprep.subr.mxu0 0.0
  %3399 = vmatpush2.msra.mxu0 0.0
  %3400 = vmatprep.subr.mxu0 0.0
  %3401 = vmatpush2.msra.mxu0 0.0
  %3402 = vmatprep.subr.mxu0 0.0
  %3403 = vmatpush2.msra.mxu0 0.0
  %3404 = vmatprep.subr.mxu0 0.0
  %3405 = vmatpush2.msra.mxu0 0.0
  %3406 = vmatprep.subr.mxu0 0.0
  %3407 = vmatpush2.msra.mxu0 0.0
  %3408 = vmatprep.subr.mxu0 0.0
  %3409 = vmatpush2.msra.mxu0 0.0
  %3410 = vmatprep.subr.mxu0 0.0
  %3411 = vmatpush2.msra.mxu0 0.0
  %3412 = vmatprep.mubr.f32.mxu0 0.0
  %3413 = vmatmul.mubr.f32.gmra.mxu0 %v3346
  %v3414 = vpop.f32.mrf.mxu0
  %v3415 = vadd.f32 0.0, %v3414
  %v3416 = vpop.f32.mrf.mxu0
  %3417 = vdwg.mxu0
  %v3419 = vsel %vm187, %v3415, 0
  %3421 = vmatprep.subr.mxu0 0.0
  %3422 = vmatpush1.msra.mxu0 0.0
  %3423 = vmatprep.subr.mxu0 0.0
  %3424 = vmatpush1.msra.mxu0 0.0
  %3425 = vmatprep.subr.mxu0 0.0
  %3426 = vmatpush1.msra.mxu0 0.0
  %3427 = vmatprep.subr.mxu0 0.0
  %3428 = vmatpush1.msra.mxu0 0.0
  %3429 = vmatprep.subr.mxu0 0.0
  %3430 = vmatpush1.msra.mxu0 0.0
  %3431 = vmatprep.subr.mxu0 0.0
  %3432 = vmatpush1.msra.mxu0 0.0
  %3433 = vmatprep.subr.mxu0 0.0
  %3434 = vmatpush1.msra.mxu0 0.0
  %3435 = vmatprep.subr.mxu0 0.0
  %3436 = vmatpush1.msra.mxu0 0.0
  %3437 = vmatprep.subr.mxu0 0.0
  %3438 = vmatpush1.msra.mxu0 0.0
  %3439 = vmatprep.subr.mxu0 0.0
  %3440 = vmatpush1.msra.mxu0 0.0
  %3441 = vmatprep.subr.mxu0 0.0
  %3442 = vmatpush1.msra.mxu0 0.0
  %3443 = vmatprep.subr.mxu0 0.0
  %3444 = vmatpush1.msra.mxu0 0.0
  %3445 = vmatprep.subr.mxu0 0.0
  %3446 = vmatpush1.msra.mxu0 0.0
  %3447 = vmatprep.subr.mxu0 0.0
  %3448 = vmatpush1.msra.mxu0 0.0
  %3449 = vmatprep.subr.mxu0 0.0
  %3450 = vmatpush1.msra.mxu0 0.0
  %3451 = vmatprep.subr.mxu0 0.0
  %3452 = vmatpush1.msra.mxu0 %v2528
  %3453 = vmatprep.subr.mxu0 0.0
  %3454 = vmatpush2.msra.mxu0 0.0
  %3455 = vmatprep.subr.mxu0 0.0
  %3456 = vmatpush2.msra.mxu0 0.0
  %3457 = vmatprep.subr.mxu0 0.0
  %3458 = vmatpush2.msra.mxu0 0.0
  %3459 = vmatprep.subr.mxu0 0.0
  %3460 = vmatpush2.msra.mxu0 0.0
  %3461 = vmatprep.subr.mxu0 0.0
  %3462 = vmatpush2.msra.mxu0 0.0
  %3463 = vmatprep.subr.mxu0 0.0
  %3464 = vmatpush2.msra.mxu0 0.0
  %3465 = vmatprep.subr.mxu0 0.0
  %3466 = vmatpush2.msra.mxu0 0.0
  %3467 = vmatprep.subr.mxu0 0.0
  %3468 = vmatpush2.msra.mxu0 0.0
  %3469 = vmatprep.subr.mxu0 0.0
  %3470 = vmatpush2.msra.mxu0 0.0
  %3471 = vmatprep.subr.mxu0 0.0
  %3472 = vmatpush2.msra.mxu0 0.0
  %3473 = vmatprep.subr.mxu0 0.0
  %3474 = vmatpush2.msra.mxu0 0.0
  %3475 = vmatprep.subr.mxu0 0.0
  %3476 = vmatpush2.msra.mxu0 0.0
  %3477 = vmatprep.subr.mxu0 0.0
  %3478 = vmatpush2.msra.mxu0 0.0
  %3479 = vmatprep.subr.mxu0 0.0
  %3480 = vmatpush2.msra.mxu0 0.0
  %3481 = vmatprep.subr.mxu0 0.0
  %3482 = vmatpush2.msra.mxu0 0.0
  %3483 = vmatprep.subr.mxu0 0.0
  %3484 = vmatpush2.msra.mxu0 0.0
  %3485 = vmatprep.mubr.f32.mxu0 0.0
  %3486 = vmatmul.mubr.f32.gmra.mxu0 %v3419
  %v3487 = vpop.f32.mrf.mxu0
  %v3488 = vadd.f32 0.0, %v3487
  %v3489 = vpop.f32.mrf.mxu0
  %3490 = vdwg.mxu0
  %v3491 = vadd.f32 %v3251, %v3488
  %v3493 = vlaneseq
  %v3494 = vshrl.u32 %v3493, 7
  %v3495 = vsub.s32 0, %v3494
  %v3496 = vrot.slane %v2530, %v3495
  %v3498 = vadd.f32 %v3491, %v3496
  %v3499 = vadd.f32 %v2436, %v3498
  %v3500 = vsel %vm95, %v3499, 0.0
  %v3501 = vrot.slane %v3500, 4
  %v3502 = vadd.f32 %v3500, %v3501
  %v3503 = vrot.slane %v3502, 2
  %v3504 = vadd.f32 %v3502, %v3503
  %v3505 = vrot.slane %v3504, 1
  %v3506 = vadd.f32 %v3504, %v3505
  %v3507 = vmul.f32 %v3506, %v1157
  %v3508 = vmul.f32 %v3499, %v3499
  %v3509 = vsel %vm95, %v3508, 0.0
  %v3510 = vrot.slane %v3509, 4
  %v3511 = vadd.f32 %v3509, %v3510
  %v3512 = vrot.slane %v3511, 2
  %v3513 = vadd.f32 %v3511, %v3512
  %v3514 = vrot.slane %v3513, 1
  %v3515 = vadd.f32 %v3513, %v3514
  %v3516 = vmul.f32 %v3515, %v1157
  %v3517 = vmul.f32 %v3507, %v3507
  %v3518 = vsub.f32 %v3516, %v3517
  %v3519 = vsub.f32 %v3499, %v3507
  %v3520 = vadd.f32 %v3518, 1e-05
  %v3521 = vrsqrt.pop %v3520
  %v3522 = vmul.f32 %v3519, %v3521
  %v3524 = vlaneseq
  %v3525 = vshrl.u32 %v3524, 7
  %v3526 = vsub.s32 0, %v3525
  %v3527 = vrot.slane %v2532, %v3526
  %v3529 = vmul.f32 %v3522, %v3527
  %v3531 = vlaneseq
  %v3532 = vshrl.u32 %v3531, 7
  %v3533 = vsub.s32 0, %v3532
  %v3534 = vrot.slane %v2534, %v3533
  %v3536 = vadd.f32 %v3529, %v3534
  %3537 = vst.msk [vmem:[#allocation2] sm:$0xff] %vm95, %v3536
  %3539 = vrot.lane.b32.xlu0 %v2521, 96
  %v3540 = vpop.permute.xlu0 %3539
  %v3541 = vsel %vm187, %v2521, 0
  %v3543 = vsel %vm187, %v3540, 0
  %3545 = vmatprep.subr.mxu0 0.0
  %3546 = vmatpush1.xpose.msra.mxu0 0.0
  %3547 = vmatprep.subr.mxu0 0.0
  %3548 = vmatpush1.xpose.msra.mxu0 0.0
  %3549 = vmatprep.subr.mxu0 0.0
  %3550 = vmatpush1.xpose.msra.mxu0 0.0
  %3551 = vmatprep.subr.mxu0 0.0
  %3552 = vmatpush1.xpose.msra.mxu0 0.0
  %3553 = vmatprep.subr.mxu0 0.0
  %3554 = vmatpush1.xpose.msra.mxu0 0.0
  %3555 = vmatprep.subr.mxu0 0.0
  %3556 = vmatpush1.xpose.msra.mxu0 0.0
  %3557 = vmatprep.subr.mxu0 0.0
  %3558 = vmatpush1.xpose.msra.mxu0 0.0
  %3559 = vmatprep.subr.mxu0 0.0
  %3560 = vmatpush1.xpose.msra.mxu0 0.0
  %3561 = vmatprep.subr.mxu0 0.0
  %3562 = vmatpush1.xpose.msra.mxu0 0.0
  %3563 = vmatprep.subr.mxu0 0.0
  %3564 = vmatpush1.xpose.msra.mxu0 0.0
  %3565 = vmatprep.subr.mxu0 0.0
  %3566 = vmatpush1.xpose.msra.mxu0 0.0
  %3567 = vmatprep.subr.mxu0 0.0
  %3568 = vmatpush1.xpose.msra.mxu0 0.0
  %3569 = vmatprep.subr.mxu0 0.0
  %3570 = vmatpush1.xpose.msra.mxu0 0.0
  %3571 = vmatprep.subr.mxu0 0.0
  %3572 = vmatpush1.xpose.msra.mxu0 0.0
  %3573 = vmatprep.subr.mxu0 0.0
  %3574 = vmatpush1.xpose.msra.mxu0 0.0
  %3575 = vmatprep.subr.mxu0 0.0
  %3576 = vmatpush1.xpose.msra.mxu0 %v3543
  %3577 = vmatprep.subr.mxu0 0.0
  %3578 = vmatpush2.xpose.msra.mxu0 0.0
  %3579 = vmatprep.subr.mxu0 0.0
  %3580 = vmatpush2.xpose.msra.mxu0 0.0
  %3581 = vmatprep.subr.mxu0 0.0
  %3582 = vmatpush2.xpose.msra.mxu0 0.0
  %3583 = vmatprep.subr.mxu0 0.0
  %3584 = vmatpush2.xpose.msra.mxu0 0.0
  %3585 = vmatprep.subr.mxu0 0.0
  %3586 = vmatpush2.xpose.msra.mxu0 0.0
  %3587 = vmatprep.subr.mxu0 0.0
  %3588 = vmatpush2.xpose.msra.mxu0 0.0
  %3589 = vmatprep.subr.mxu0 0.0
  %3590 = vmatpush2.xpose.msra.mxu0 0.0
  %3591 = vmatprep.subr.mxu0 0.0
  %3592 = vmatpush2.xpose.msra.mxu0 0.0
  %3593 = vmatprep.subr.mxu0 0.0
  %3594 = vmatpush2.xpose.msra.mxu0 0.0
  %3595 = vmatprep.subr.mxu0 0.0
  %3596 = vmatpush2.xpose.msra.mxu0 0.0
  %3597 = vmatprep.subr.mxu0 0.0
  %3598 = vmatpush2.xpose.msra.mxu0 0.0
  %3599 = vmatprep.subr.mxu0 0.0
  %3600 = vmatpush2.xpose.msra.mxu0 0.0
  %3601 = vmatprep.subr.mxu0 0.0
  %3602 = vmatpush2.xpose.msra.mxu0 0.0
  %3603 = vmatprep.subr.mxu0 0.0
  %3604 = vmatpush2.xpose.msra.mxu0 0.0
  %3605 = vmatprep.subr.mxu0 0.0
  %3606 = vmatpush2.xpose.msra.mxu0 0.0
  %3607 = vmatprep.subr.mxu0 0.0
  %3608 = vmatpush2.xpose.msra.mxu0 0.0
  %3609 = vmatprep.mubr.f32.mxu0 0.0
  %3610 = vmatmul.mubr.f32.gmra.mxu0 %v3541
  %v3611 = vpop.f32.mrf.mxu0
  %v3612 = vadd.f32 0.0, %v3611
  %v3613 = vpop.f32.mrf.mxu0
  %3614 = vdwg.mxu0
  %v3615 = vmul.f32 %v3612, 0.35355338
  %v3616 = vsel %vm187, %v3615, -inf
  %3617 = vmax.xlane.f32.xlu0 %v3616
  %v3618 = vpop.xlane.xlu0 %3617
  %v3619 = vsub.f32 %v3615, %v3618
  %v3620 = vmul.f32 %v3619, 1.442695
  %v3621 = vpow.pop %v3620
  %v3622 = vsel %vm187, %v3621, 0.0
  %3623 = vadd.xlane.f32.xlu0 %v3622
  %v3624 = vpop.xlane.xlu0 %3623
  %v3625 = vrcp.pop %v3624
  %v3626 = vmul.f32 %v3621, %v3625
  %3627 = vrot.lane.b32.xlu0 %v2521, 64
  %v3628 = vpop.permute.xlu0 %3627
  %v3631 = vsel %vm187, %v3626, 0
  %3633 = vmatprep.subr.mxu0 0.0
  %3634 = vmatpush1.msra.mxu0 0.0
  %3635 = vmatprep.subr.mxu0 0.0
  %3636 = vmatpush1.msra.mxu0 0.0
  %3637 = vmatprep.subr.mxu0 0.0
  %3638 = vmatpush1.msra.mxu0 0.0
  %3639 = vmatprep.subr.mxu0 0.0
  %3640 = vmatpush1.msra.mxu0 0.0
  %3641 = vmatprep.subr.mxu0 0.0
  %3642 = vmatpush1.msra.mxu0 0.0
  %3643 = vmatprep.subr.mxu0 0.0
  %3644 = vmatpush1.msra.mxu0 0.0
  %3645 = vmatprep.subr.mxu0 0.0
  %3646 = vmatpush1.msra.mxu0 0.0
  %3647 = vmatprep.subr.mxu0 0.0
  %3648 = vmatpush1.msra.mxu0 0.0
  %3649 = vmatprep.subr.mxu0 0.0
  %3650 = vmatpush1.msra.mxu0 0.0
  %3651 = vmatprep.subr.mxu0 0.0
  %3652 = vmatpush1.msra.mxu0 0.0
  %3653 = vmatprep.subr.mxu0 0.0
  %3654 = vmatpush1.msra.mxu0 0.0
  %3655 = vmatprep.subr.mxu0 0.0
  %3656 = vmatpush1.msra.mxu0 0.0
  %3657 = vmatprep.subr.mxu0 0.0
  %3658 = vmatpush1.msra.mxu0 0.0
  %3659 = vmatprep.subr.mxu0 0.0
  %3660 = vmatpush1.msra.mxu0 0.0
  %3661 = vmatprep.subr.mxu0 0.0
  %3662 = vmatpush1.msra.mxu0 0.0
  %3663 = vmatprep.subr.mxu0 0.0
  %3664 = vmatpush1.msra.mxu0 %v3628
  %3665 = vmatprep.subr.mxu0 0.0
  %3666 = vmatpush2.msra.mxu0 0.0
  %3667 = vmatprep.subr.mxu0 0.0
  %3668 = vmatpush2.msra.mxu0 0.0
  %3669 = vmatprep.subr.mxu0 0.0
  %3670 = vmatpush2.msra.mxu0 0.0
  %3671 = vmatprep.subr.mxu0 0.0
  %3672 = vmatpush2.msra.mxu0 0.0
  %3673 = vmatprep.subr.mxu0 0.0
  %3674 = vmatpush2.msra.mxu0 0.0
  %3675 = vmatprep.subr.mxu0 0.0
  %3676 = vmatpush2.msra.mxu0 0.0
  %3677 = vmatprep.subr.mxu0 0.0
  %3678 = vmatpush2.msra.mxu0 0.0
  %3679 = vmatprep.subr.mxu0 0.0
  %3680 = vmatpush2.msra.mxu0 0.0
  %3681 = vmatprep.subr.mxu0 0.0
  %3682 = vmatpush2.msra.mxu0 0.0
  %3683 = vmatprep.subr.mxu0 0.0
  %3684 = vmatpush2.msra.mxu0 0.0
  %3685 = vmatprep.subr.mxu0 0.0
  %3686 = vmatpush2.msra.mxu0 0.0
  %3687 = vmatprep.subr.mxu0 0.0
  %3688 = vmatpush2.msra.mxu0 0.0
  %3689 = vmatprep.subr.mxu0 0.0
  %3690 = vmatpush2.msra.mxu0 0.0
  %3691 = vmatprep.subr.mxu0 0.0
  %3692 = vmatpush2.msra.mxu0 0.0
  %3693 = vmatprep.subr.mxu0 0.0
  %3694 = vmatpush2.msra.mxu0 0.0
  %3695 = vmatprep.subr.mxu0 0.0
  %3696 = vmatpush2.msra.mxu0 0.0
  %3697 = vmatprep.mubr.f32.mxu0 0.0
  %3698 = vmatmul.mubr.f32.gmra.mxu0 %v3631
  %v3699 = vpop.f32.mrf.mxu0
  %v3700 = vadd.f32 0.0, %v3699
  %v3701 = vpop.f32.mrf.mxu0
  %3702 = vdwg.mxu0
  %3703 = vrot.lane.b32.xlu0 %v2521, 120
  %v3704 = vpop.permute.xlu0 %3703
  %3705 = vrot.lane.b32.xlu0 %v2521, 88
  %v3706 = vpop.permute.xlu0 %3705
  %v3707 = vsel %vm187, %v3704, 0
  %v3709 = vsel %vm187, %v3706, 0
  %3711 = vmatprep.subr.mxu0 0.0
  %3712 = vmatpush1.xpose.msra.mxu0 0.0
  %3713 = vmatprep.subr.mxu0 0.0
  %3714 = vmatpush1.xpose.msra.mxu0 0.0
  %3715 = vmatprep.subr.mxu0 0.0
  %3716 = vmatpush1.xpose.msra.mxu0 0.0
  %3717 = vmatprep.subr.mxu0 0.0
  %3718 = vmatpush1.xpose.msra.mxu0 0.0
  %3719 = vmatprep.subr.mxu0 0.0
  %3720 = vmatpush1.xpose.msra.mxu0 0.0
  %3721 = vmatprep.subr.mxu0 0.0
  %3722 = vmatpush1.xpose.msra.mxu0 0.0
  %3723 = vmatprep.subr.mxu0 0.0
  %3724 = vmatpush1.xpose.msra.mxu0 0.0
  %3725 = vmatprep.subr.mxu0 0.0
  %3726 = vmatpush1.xpose.msra.mxu0 0.0
  %3727 = vmatprep.subr.mxu0 0.0
  %3728 = vmatpush1.xpose.msra.mxu0 0.0
  %3729 = vmatprep.subr.mxu0 0.0
  %3730 = vmatpush1.xpose.msra.mxu0 0.0
  %3731 = vmatprep.subr.mxu0 0.0
  %3732 = vmatpush1.xpose.msra.mxu0 0.0
  %3733 = vmatprep.subr.mxu0 0.0
  %3734 = vmatpush1.xpose.msra.mxu0 0.0
  %3735 = vmatprep.subr.mxu0 0.0
  %3736 = vmatpush1.xpose.msra.mxu0 0.0
  %3737 = vmatprep.subr.mxu0 0.0
  %3738 = vmatpush1.xpose.msra.mxu0 0.0
  %3739 = vmatprep.subr.mxu0 0.0
  %3740 = vmatpush1.xpose.msra.mxu0 0.0
  %3741 = vmatprep.subr.mxu0 0.0
  %3742 = vmatpush1.xpose.msra.mxu0 %v3709
  %3743 = vmatprep.subr.mxu0 0.0
  %3744 = vmatpush2.xpose.msra.mxu0 0.0
  %3745 = vmatprep.subr.mxu0 0.0
  %3746 = vmatpush2.xpose.msra.mxu0 0.0
  %3747 = vmatprep.subr.mxu0 0.0
  %3748 = vmatpush2.xpose.msra.mxu0 0.0
  %3749 = vmatprep.subr.mxu0 0.0
  %3750 = vmatpush2.xpose.msra.mxu0 0.0
  %3751 = vmatprep.subr.mxu0 0.0
  %3752 = vmatpush2.xpose.msra.mxu0 0.0
  %3753 = vmatprep.subr.mxu0 0.0
  %3754 = vmatpush2.xpose.msra.mxu0 0.0
  %3755 = vmatprep.subr.mxu0 0.0
  %3756 = vmatpush2.xpose.msra.mxu0 0.0
  %3757 = vmatprep.subr.mxu0 0.0
  %3758 = vmatpush2.xpose.msra.mxu0 0.0
  %3759 = vmatprep.subr.mxu0 0.0
  %3760 = vmatpush2.xpose.msra.mxu0 0.0
  %3761 = vmatprep.subr.mxu0 0.0
  %3762 = vmatpush2.xpose.msra.mxu0 0.0
  %3763 = vmatprep.subr.mxu0 0.0
  %3764 = vmatpush2.xpose.msra.mxu0 0.0
  %3765 = vmatprep.subr.mxu0 0.0
  %3766 = vmatpush2.xpose.msra.mxu0 0.0
  %3767 = vmatprep.subr.mxu0 0.0
  %3768 = vmatpush2.xpose.msra.mxu0 0.0
  %3769 = vmatprep.subr.mxu0 0.0
  %3770 = vmatpush2.xpose.msra.mxu0 0.0
  %3771 = vmatprep.subr.mxu0 0.0
  %3772 = vmatpush2.xpose.msra.mxu0 0.0
  %3773 = vmatprep.subr.mxu0 0.0
  %3774 = vmatpush2.xpose.msra.mxu0 0.0
  %3775 = vmatprep.mubr.f32.mxu0 0.0
  %3776 = vmatmul.mubr.f32.gmra.mxu0 %v3707
  %v3777 = vpop.f32.mrf.mxu0
  %v3778 = vadd.f32 0.0, %v3777
  %v3779 = vpop.f32.mrf.mxu0
  %3780 = vdwg.mxu0
  %v3781 = vmul.f32 %v3778, 0.35355338
  %v3782 = vsel %vm187, %v3781, -inf
  %3783 = vmax.xlane.f32.xlu0 %v3782
  %v3784 = vpop.xlane.xlu0 %3783
  %v3785 = vsub.f32 %v3781, %v3784
  %v3786 = vmul.f32 %v3785, 1.442695
  %v3787 = vpow.pop %v3786
  %v3788 = vsel %vm187, %v3787, 0.0
  %3789 = vadd.xlane.f32.xlu0 %v3788
  %v3790 = vpop.xlane.xlu0 %3789
  %v3791 = vrcp.pop %v3790
  %v3792 = vmul.f32 %v3787, %v3791
  %3793 = vrot.lane.b32.xlu0 %v2521, 56
  %v3794 = vpop.permute.xlu0 %3793
  %v3797 = vsel %vm187, %v3792, 0
  %3799 = vmatprep.subr.mxu0 0.0
  %3800 = vmatpush1.msra.mxu0 0.0
  %3801 = vmatprep.subr.mxu0 0.0
  %3802 = vmatpush1.msra.mxu0 0.0
  %3803 = vmatprep.subr.mxu0 0.0
  %3804 = vmatpush1.msra.mxu0 0.0
  %3805 = vmatprep.subr.mxu0 0.0
  %3806 = vmatpush1.msra.mxu0 0.0
  %3807 = vmatprep.subr.mxu0 0.0
  %3808 = vmatpush1.msra.mxu0 0.0
  %3809 = vmatprep.subr.mxu0 0.0
  %3810 = vmatpush1.msra.mxu0 0.0
  %3811 = vmatprep.subr.mxu0 0.0
  %3812 = vmatpush1.msra.mxu0 0.0
  %3813 = vmatprep.subr.mxu0 0.0
  %3814 = vmatpush1.msra.mxu0 0.0
  %3815 = vmatprep.subr.mxu0 0.0
  %3816 = vmatpush1.msra.mxu0 0.0
  %3817 = vmatprep.subr.mxu0 0.0
  %3818 = vmatpush1.msra.mxu0 0.0
  %3819 = vmatprep.subr.mxu0 0.0
  %3820 = vmatpush1.msra.mxu0 0.0
  %3821 = vmatprep.subr.mxu0 0.0
  %3822 = vmatpush1.msra.mxu0 0.0
  %3823 = vmatprep.subr.mxu0 0.0
  %3824 = vmatpush1.msra.mxu0 0.0
  %3825 = vmatprep.subr.mxu0 0.0
  %3826 = vmatpush1.msra.mxu0 0.0
  %3827 = vmatprep.subr.mxu0 0.0
  %3828 = vmatpush1.msra.mxu0 0.0
  %3829 = vmatprep.subr.mxu0 0.0
  %3830 = vmatpush1.msra.mxu0 %v3794
  %3831 = vmatprep.subr.mxu0 0.0
  %3832 = vmatpush2.msra.mxu0 0.0
  %3833 = vmatprep.subr.mxu0 0.0
  %3834 = vmatpush2.msra.mxu0 0.0
  %3835 = vmatprep.subr.mxu0 0.0
  %3836 = vmatpush2.msra.mxu0 0.0
  %3837 = vmatprep.subr.mxu0 0.0
  %3838 = vmatpush2.msra.mxu0 0.0
  %3839 = vmatprep.subr.mxu0 0.0
  %3840 = vmatpush2.msra.mxu0 0.0
  %3841 = vmatprep.subr.mxu0 0.0
  %3842 = vmatpush2.msra.mxu0 0.0
  %3843 = vmatprep.subr.mxu0 0.0
  %3844 = vmatpush2.msra.mxu0 0.0
  %3845 = vmatprep.subr.mxu0 0.0
  %3846 = vmatpush2.msra.mxu0 0.0
  %3847 = vmatprep.subr.mxu0 0.0
  %3848 = vmatpush2.msra.mxu0 0.0
  %3849 = vmatprep.subr.mxu0 0.0
  %3850 = vmatpush2.msra.mxu0 0.0
  %3851 = vmatprep.subr.mxu0 0.0
  %3852 = vmatpush2.msra.mxu0 0.0
  %3853 = vmatprep.subr.mxu0 0.0
  %3854 = vmatpush2.msra.mxu0 0.0
  %3855 = vmatprep.subr.mxu0 0.0
  %3856 = vmatpush2.msra.mxu0 0.0
  %3857 = vmatprep.subr.mxu0 0.0
  %3858 = vmatpush2.msra.mxu0 0.0
  %3859 = vmatprep.subr.mxu0 0.0
  %3860 = vmatpush2.msra.mxu0 0.0
  %3861 = vmatprep.subr.mxu0 0.0
  %3862 = vmatpush2.msra.mxu0 0.0
  %3863 = vmatprep.mubr.f32.mxu0 0.0
  %3864 = vmatmul.mubr.f32.gmra.mxu0 %v3797
  %v3865 = vpop.f32.mrf.mxu0
  %v3866 = vadd.f32 0.0, %v3865
  %v3867 = vpop.f32.mrf.mxu0
  %3868 = vdwg.mxu0
  %v3870 = vsel %vm187, %v3866, 0
  %3872 = vmatprep.subr.mxu0 0.0
  %3873 = vmatpush1.msra.mxu0 0.0
  %3874 = vmatprep.subr.mxu0 0.0
  %3875 = vmatpush1.msra.mxu0 0.0
  %3876 = vmatprep.subr.mxu0 0.0
  %3877 = vmatpush1.msra.mxu0 0.0
  %3878 = vmatprep.subr.mxu0 0.0
  %3879 = vmatpush1.msra.mxu0 0.0
  %3880 = vmatprep.subr.mxu0 0.0
  %3881 = vmatpush1.msra.mxu0 0.0
  %3882 = vmatprep.subr.mxu0 0.0
  %3883 = vmatpush1.msra.mxu0 0.0
  %3884 = vmatprep.subr.mxu0 0.0
  %3885 = vmatpush1.msra.mxu0 0.0
  %3886 = vmatprep.subr.mxu0 0.0
  %3887 = vmatpush1.msra.mxu0 0.0
  %3888 = vmatprep.subr.mxu0 0.0
  %3889 = vmatpush1.msra.mxu0 0.0
  %3890 = vmatprep.subr.mxu0 0.0
  %3891 = vmatpush1.msra.mxu0 0.0
  %3892 = vmatprep.subr.mxu0 0.0
  %3893 = vmatpush1.msra.mxu0 0.0
  %3894 = vmatprep.subr.mxu0 0.0
  %3895 = vmatpush1.msra.mxu0 0.0
  %3896 = vmatprep.subr.mxu0 0.0
  %3897 = vmatpush1.msra.mxu0 0.0
  %3898 = vmatprep.subr.mxu0 0.0
  %3899 = vmatpush1.msra.mxu0 0.0
  %3900 = vmatprep.subr.mxu0 0.0
  %3901 = vmatpush1.msra.mxu0 0.0
  %3902 = vmatprep.subr.mxu0 0.0
  %3903 = vmatpush1.msra.mxu0 %v2526
  %3904 = vmatprep.subr.mxu0 0.0
  %3905 = vmatpush2.msra.mxu0 0.0
  %3906 = vmatprep.subr.mxu0 0.0
  %3907 = vmatpush2.msra.mxu0 0.0
  %3908 = vmatprep.subr.mxu0 0.0
  %3909 = vmatpush2.msra.mxu0 0.0
  %3910 = vmatprep.subr.mxu0 0.0
  %3911 = vmatpush2.msra.mxu0 0.0
  %3912 = vmatprep.subr.mxu0 0.0
  %3913 = vmatpush2.msra.mxu0 0.0
  %3914 = vmatprep.subr.mxu0 0.0
  %3915 = vmatpush2.msra.mxu0 0.0
  %3916 = vmatprep.subr.mxu0 0.0
  %3917 = vmatpush2.msra.mxu0 0.0
  %3918 = vmatprep.subr.mxu0 0.0
  %3919 = vmatpush2.msra.mxu0 0.0
  %3920 = vmatprep.subr.mxu0 0.0
  %3921 = vmatpush2.msra.mxu0 0.0
  %3922 = vmatprep.subr.mxu0 0.0
  %3923 = vmatpush2.msra.mxu0 0.0
  %3924 = vmatprep.subr.mxu0 0.0
  %3925 = vmatpush2.msra.mxu0 0.0
  %3926 = vmatprep.subr.mxu0 0.0
  %3927 = vmatpush2.msra.mxu0 0.0
  %3928 = vmatprep.subr.mxu0 0.0
  %3929 = vmatpush2.msra.mxu0 0.0
  %3930 = vmatprep.subr.mxu0 0.0
  %3931 = vmatpush2.msra.mxu0 0.0
  %3932 = vmatprep.subr.mxu0 0.0
  %3933 = vmatpush2.msra.mxu0 0.0
  %3934 = vmatprep.subr.mxu0 0.0
  %3935 = vmatpush2.msra.mxu0 0.0
  %3936 = vmatprep.mubr.f32.mxu0 0.0
  %3937 = vmatmul.mubr.f32.gmra.mxu0 %v3870
  %v3938 = vpop.f32.mrf.mxu0
  %v3939 = vadd.f32 0.0, %v3938
  %v3940 = vpop.f32.mrf.mxu0
  %3941 = vdwg.mxu0
  %v3943 = vsel %vm187, %v3700, 0
  %3945 = vmatprep.subr.mxu0 0.0
  %3946 = vmatpush1.msra.mxu0 0.0
  %3947 = vmatprep.subr.mxu0 0.0
  %3948 = vmatpush1.msra.mxu0 0.0
  %3949 = vmatprep.subr.mxu0 0.0
  %3950 = vmatpush1.msra.mxu0 0.0
  %3951 = vmatprep.subr.mxu0 0.0
  %3952 = vmatpush1.msra.mxu0 0.0
  %3953 = vmatprep.subr.mxu0 0.0
  %3954 = vmatpush1.msra.mxu0 0.0
  %3955 = vmatprep.subr.mxu0 0.0
  %3956 = vmatpush1.msra.mxu0 0.0
  %3957 = vmatprep.subr.mxu0 0.0
  %3958 = vmatpush1.msra.mxu0 0.0
  %3959 = vmatprep.subr.mxu0 0.0
  %3960 = vmatpush1.msra.mxu0 0.0
  %3961 = vmatprep.subr.mxu0 0.0
  %3962 = vmatpush1.msra.mxu0 0.0
  %3963 = vmatprep.subr.mxu0 0.0
  %3964 = vmatpush1.msra.mxu0 0.0
  %3965 = vmatprep.subr.mxu0 0.0
  %3966 = vmatpush1.msra.mxu0 0.0
  %3967 = vmatprep.subr.mxu0 0.0
  %3968 = vmatpush1.msra.mxu0 0.0
  %3969 = vmatprep.subr.mxu0 0.0
  %3970 = vmatpush1.msra.mxu0 0.0
  %3971 = vmatprep.subr.mxu0 0.0
  %3972 = vmatpush1.msra.mxu0 0.0
  %3973 = vmatprep.subr.mxu0 0.0
  %3974 = vmatpush1.msra.mxu0 0.0
  %3975 = vmatprep.subr.mxu0 0.0
  %3976 = vmatpush1.msra.mxu0 %v2525
  %3977 = vmatprep.subr.mxu0 0.0
  %3978 = vmatpush2.msra.mxu0 0.0
  %3979 = vmatprep.subr.mxu0 0.0
  %3980 = vmatpush2.msra.mxu0 0.0
  %3981 = vmatprep.subr.mxu0 0.0
  %3982 = vmatpush2.msra.mxu0 0.0
  %3983 = vmatprep.subr.mxu0 0.0
  %3984 = vmatpush2.msra.mxu0 0.0
  %3985 = vmatprep.subr.mxu0 0.0
  %3986 = vmatpush2.msra.mxu0 0.0
  %3987 = vmatprep.subr.mxu0 0.0
  %3988 = vmatpush2.msra.mxu0 0.0
  %3989 = vmatprep.subr.mxu0 0.0
  %3990 = vmatpush2.msra.mxu0 0.0
  %3991 = vmatprep.subr.mxu0 0.0
  %3992 = vmatpush2.msra.mxu0 0.0
  %3993 = vmatprep.subr.mxu0 0.0
  %3994 = vmatpush2.msra.mxu0 0.0
  %3995 = vmatprep.subr.mxu0 0.0
  %3996 = vmatpush2.msra.mxu0 0.0
  %3997 = vmatprep.subr.mxu0 0.0
  %3998 = vmatpush2.msra.mxu0 0.0
  %3999 = vmatprep.subr.mxu0 0.0
  %4000 = vmatpush2.msra.mxu0 0.0
  %4001 = vmatprep.subr.mxu0 0.0
  %4002 = vmatpush2.msra.mxu0 0.0
  %4003 = vmatprep.subr.mxu0 0.0
  %4004 = vmatpush2.msra.mxu0 0.0
  %4005 = vmatprep.subr.mxu0 0.0
  %4006 = vmatpush2.msra.mxu0 0.0
  %4007 = vmatprep.subr.mxu0 0.0
  %4008 = vmatpush2.msra.mxu0 0.0
  %4009 = vmatprep.mubr.f32.mxu0 0.0
  %4010 = vmatmul.mubr.f32.gmra.mxu0 %v3943
  %v4011 = vpop.f32.mrf.mxu0
  %v4012 = vadd.f32 %v3939, %v4011
  %v4013 = vpop.f32.mrf.mxu0
  %4014 = vdwg.mxu0
  %4015 = vrot.lane.b32.xlu0 %v2521, 112
  %v4016 = vpop.permute.xlu0 %4015
  %4017 = vrot.lane.b32.xlu0 %v2521, 80
  %v4018 = vpop.permute.xlu0 %4017
  %v4019 = vsel %vm187, %v4016, 0
  %v4021 = vsel %vm187, %v4018, 0
  %4023 = vmatprep.subr.mxu0 0.0
  %4024 = vmatpush1.xpose.msra.mxu0 0.0
  %4025 = vmatprep.subr.mxu0 0.0
  %4026 = vmatpush1.xpose.msra.mxu0 0.0
  %4027 = vmatprep.subr.mxu0 0.0
  %4028 = vmatpush1.xpose.msra.mxu0 0.0
  %4029 = vmatprep.subr.mxu0 0.0
  %4030 = vmatpush1.xpose.msra.mxu0 0.0
  %4031 = vmatprep.subr.mxu0 0.0
  %4032 = vmatpush1.xpose.msra.mxu0 0.0
  %4033 = vmatprep.subr.mxu0 0.0
  %4034 = vmatpush1.xpose.msra.mxu0 0.0
  %4035 = vmatprep.subr.mxu0 0.0
  %4036 = vmatpush1.xpose.msra.mxu0 0.0
  %4037 = vmatprep.subr.mxu0 0.0
  %4038 = vmatpush1.xpose.msra.mxu0 0.0
  %4039 = vmatprep.subr.mxu0 0.0
  %4040 = vmatpush1.xpose.msra.mxu0 0.0
  %4041 = vmatprep.subr.mxu0 0.0
  %4042 = vmatpush1.xpose.msra.mxu0 0.0
  %4043 = vmatprep.subr.mxu0 0.0
  %4044 = vmatpush1.xpose.msra.mxu0 0.0
  %4045 = vmatprep.subr.mxu0 0.0
  %4046 = vmatpush1.xpose.msra.mxu0 0.0
  %4047 = vmatprep.subr.mxu0 0.0
  %4048 = vmatpush1.xpose.msra.mxu0 0.0
  %4049 = vmatprep.subr.mxu0 0.0
  %4050 = vmatpush1.xpose.msra.mxu0 0.0
  %4051 = vmatprep.subr.mxu0 0.0
  %4052 = vmatpush1.xpose.msra.mxu0 0.0
  %4053 = vmatprep.subr.mxu0 0.0
  %4054 = vmatpush1.xpose.msra.mxu0 %v4021
  %4055 = vmatprep.subr.mxu0 0.0
  %4056 = vmatpush2.xpose.msra.mxu0 0.0
  %4057 = vmatprep.subr.mxu0 0.0
  %4058 = vmatpush2.xpose.msra.mxu0 0.0
  %4059 = vmatprep.subr.mxu0 0.0
  %4060 = vmatpush2.xpose.msra.mxu0 0.0
  %4061 = vmatprep.subr.mxu0 0.0
  %4062 = vmatpush2.xpose.msra.mxu0 0.0
  %4063 = vmatprep.subr.mxu0 0.0
  %4064 = vmatpush2.xpose.msra.mxu0 0.0
  %4065 = vmatprep.subr.mxu0 0.0
  %4066 = vmatpush2.xpose.msra.mxu0 0.0
  %4067 = vmatprep.subr.mxu0 0.0
  %4068 = vmatpush2.xpose.msra.mxu0 0.0
  %4069 = vmatprep.subr.mxu0 0.0
  %4070 = vmatpush2.xpose.msra.mxu0 0.0
  %4071 = vmatprep.subr.mxu0 0.0
  %4072 = vmatpush2.xpose.msra.mxu0 0.0
  %4073 = vmatprep.subr.mxu0 0.0
  %4074 = vmatpush2.xpose.msra.mxu0 0.0
  %4075 = vmatprep.subr.mxu0 0.0
  %4076 = vmatpush2.xpose.msra.mxu0 0.0
  %4077 = vmatprep.subr.mxu0 0.0
  %4078 = vmatpush2.xpose.msra.mxu0 0.0
  %4079 = vmatprep.subr.mxu0 0.0
  %4080 = vmatpush2.xpose.msra.mxu0 0.0
  %4081 = vmatprep.subr.mxu0 0.0
  %4082 = vmatpush2.xpose.msra.mxu0 0.0
  %4083 = vmatprep.subr.mxu0 0.0
  %4084 = vmatpush2.xpose.msra.mxu0 0.0
  %4085 = vmatprep.subr.mxu0 0.0
  %4086 = vmatpush2.xpose.msra.mxu0 0.0
  %4087 = vmatprep.mubr.f32.mxu0 0.0
  %4088 = vmatmul.mubr.f32.gmra.mxu0 %v4019
  %v4089 = vpop.f32.mrf.mxu0
  %v4090 = vadd.f32 0.0, %v4089
  %v4091 = vpop.f32.mrf.mxu0
  %4092 = vdwg.mxu0
  %v4093 = vmul.f32 %v4090, 0.35355338
  %v4094 = vsel %vm187, %v4093, -inf
  %4095 = vmax.xlane.f32.xlu0 %v4094
  %v4096 = vpop.xlane.xlu0 %4095
  %v4097 = vsub.f32 %v4093, %v4096
  %v4098 = vmul.f32 %v4097, 1.442695
  %v4099 = vpow.pop %v4098
  %v4100 = vsel %vm187, %v4099, 0.0
  %4101 = vadd.xlane.f32.xlu0 %v4100
  %v4102 = vpop.xlane.xlu0 %4101
  %v4103 = vrcp.pop %v4102
  %v4104 = vmul.f32 %v4099, %v4103
  %4105 = vrot.lane.b32.xlu0 %v2521, 48
  %v4106 = vpop.permute.xlu0 %4105
  %v4109 = vsel %vm187, %v4104, 0
  %4111 = vmatprep.subr.mxu0 0.0
  %4112 = vmatpush1.msra.mxu0 0.0
  %4113 = vmatprep.subr.mxu0 0.0
  %4114 = vmatpush1.msra.mxu0 0.0
  %4115 = vmatprep.subr.mxu0 0.0
  %4116 = vmatpush1.msra.mxu0 0.0
  %4117 = vmatprep.subr.mxu0 0.0
  %4118 = vmatpush1.msra.mxu0 0.0
  %4119 = vmatprep.subr.mxu0 0.0
  %4120 = vmatpush1.msra.mxu0 0.0
  %4121 = vmatprep.subr.mxu0 0.0
  %4122 = vmatpush1.msra.mxu0 0.0
  %4123 = vmatprep.subr.mxu0 0.0
  %4124 = vmatpush1.msra.mxu0 0.0
  %4125 = vmatprep.subr.mxu0 0.0
  %4126 = vmatpush1.msra.mxu0 0.0
  %4127 = vmatprep.subr.mxu0 0.0
  %4128 = vmatpush1.msra.mxu0 0.0
  %4129 = vmatprep.subr.mxu0 0.0
  %4130 = vmatpush1.msra.mxu0 0.0
  %4131 = vmatprep.subr.mxu0 0.0
  %4132 = vmatpush1.msra.mxu0 0.0
  %4133 = vmatprep.subr.mxu0 0.0
  %4134 = vmatpush1.msra.mxu0 0.0
  %4135 = vmatprep.subr.mxu0 0.0
  %4136 = vmatpush1.msra.mxu0 0.0
  %4137 = vmatprep.subr.mxu0 0.0
  %4138 = vmatpush1.msra.mxu0 0.0
  %4139 = vmatprep.subr.mxu0 0.0
  %4140 = vmatpush1.msra.mxu0 0.0
  %4141 = vmatprep.subr.mxu0 0.0
  %4142 = vmatpush1.msra.mxu0 %v4106
  %4143 = vmatprep.subr.mxu0 0.0
  %4144 = vmatpush2.msra.mxu0 0.0
  %4145 = vmatprep.subr.mxu0 0.0
  %4146 = vmatpush2.msra.mxu0 0.0
  %4147 = vmatprep.subr.mxu0 0.0
  %4148 = vmatpush2.msra.mxu0 0.0
  %4149 = vmatprep.subr.mxu0 0.0
  %4150 = vmatpush2.msra.mxu0 0.0
  %4151 = vmatprep.subr.mxu0 0.0
  %4152 = vmatpush2.msra.mxu0 0.0
  %4153 = vmatprep.subr.mxu0 0.0
  %4154 = vmatpush2.msra.mxu0 0.0
  %4155 = vmatprep.subr.mxu0 0.0
  %4156 = vmatpush2.msra.mxu0 0.0
  %4157 = vmatprep.subr.mxu0 0.0
  %4158 = vmatpush2.msra.mxu0 0.0
  %4159 = vmatprep.subr.mxu0 0.0
  %4160 = vmatpush2.msra.mxu0 0.0
  %4161 = vmatprep.subr.mxu0 0.0
  %4162 = vmatpush2.msra.mxu0 0.0
  %4163 = vmatprep.subr.mxu0 0.0
  %4164 = vmatpush2.msra.mxu0 0.0
  %4165 = vmatprep.subr.mxu0 0.0
  %4166 = vmatpush2.msra.mxu0 0.0
  %4167 = vmatprep.subr.mxu0 0.0
  %4168 = vmatpush2.msra.mxu0 0.0
  %4169 = vmatprep.subr.mxu0 0.0
  %4170 = vmatpush2.msra.mxu0 0.0
  %4171 = vmatprep.subr.mxu0 0.0
  %4172 = vmatpush2.msra.mxu0 0.0
  %4173 = vmatprep.subr.mxu0 0.0
  %4174 = vmatpush2.msra.mxu0 0.0
  %4175 = vmatprep.mubr.f32.mxu0 0.0
  %4176 = vmatmul.mubr.f32.gmra.mxu0 %v4109
  %v4177 = vpop.f32.mrf.mxu0
  %v4178 = vadd.f32 0.0, %v4177
  %v4179 = vpop.f32.mrf.mxu0
  %4180 = vdwg.mxu0
  %v4182 = vsel %vm187, %v4178, 0
  %4184 = vmatprep.subr.mxu0 0.0
  %4185 = vmatpush1.msra.mxu0 0.0
  %4186 = vmatprep.subr.mxu0 0.0
  %4187 = vmatpush1.msra.mxu0 0.0
  %4188 = vmatprep.subr.mxu0 0.0
  %4189 = vmatpush1.msra.mxu0 0.0
  %4190 = vmatprep.subr.mxu0 0.0
  %4191 = vmatpush1.msra.mxu0 0.0
  %4192 = vmatprep.subr.mxu0 0.0
  %4193 = vmatpush1.msra.mxu0 0.0
  %4194 = vmatprep.subr.mxu0 0.0
  %4195 = vmatpush1.msra.mxu0 0.0
  %4196 = vmatprep.subr.mxu0 0.0
  %4197 = vmatpush1.msra.mxu0 0.0
  %4198 = vmatprep.subr.mxu0 0.0
  %4199 = vmatpush1.msra.mxu0 0.0
  %4200 = vmatprep.subr.mxu0 0.0
  %4201 = vmatpush1.msra.mxu0 0.0
  %4202 = vmatprep.subr.mxu0 0.0
  %4203 = vmatpush1.msra.mxu0 0.0
  %4204 = vmatprep.subr.mxu0 0.0
  %4205 = vmatpush1.msra.mxu0 0.0
  %4206 = vmatprep.subr.mxu0 0.0
  %4207 = vmatpush1.msra.mxu0 0.0
  %4208 = vmatprep.subr.mxu0 0.0
  %4209 = vmatpush1.msra.mxu0 0.0
  %4210 = vmatprep.subr.mxu0 0.0
  %4211 = vmatpush1.msra.mxu0 0.0
  %4212 = vmatprep.subr.mxu0 0.0
  %4213 = vmatpush1.msra.mxu0 0.0
  %4214 = vmatprep.subr.mxu0 0.0
  %4215 = vmatpush1.msra.mxu0 %v2527
  %4216 = vmatprep.subr.mxu0 0.0
  %4217 = vmatpush2.msra.mxu0 0.0
  %4218 = vmatprep.subr.mxu0 0.0
  %4219 = vmatpush2.msra.mxu0 0.0
  %4220 = vmatprep.subr.mxu0 0.0
  %4221 = vmatpush2.msra.mxu0 0.0
  %4222 = vmatprep.subr.mxu0 0.0
  %4223 = vmatpush2.msra.mxu0 0.0
  %4224 = vmatprep.subr.mxu0 0.0
  %4225 = vmatpush2.msra.mxu0 0.0
  %4226 = vmatprep.subr.mxu0 0.0
  %4227 = vmatpush2.msra.mxu0 0.0
  %4228 = vmatprep.subr.mxu0 0.0
  %4229 = vmatpush2.msra.mxu0 0.0
  %4230 = vmatprep.subr.mxu0 0.0
  %4231 = vmatpush2.msra.mxu0 0.0
  %4232 = vmatprep.subr.mxu0 0.0
  %4233 = vmatpush2.msra.mxu0 0.0
  %4234 = vmatprep.subr.mxu0 0.0
  %4235 = vmatpush2.msra.mxu0 0.0
  %4236 = vmatprep.subr.mxu0 0.0
  %4237 = vmatpush2.msra.mxu0 0.0
  %4238 = vmatprep.subr.mxu0 0.0
  %4239 = vmatpush2.msra.mxu0 0.0
  %4240 = vmatprep.subr.mxu0 0.0
  %4241 = vmatpush2.msra.mxu0 0.0
  %4242 = vmatprep.subr.mxu0 0.0
  %4243 = vmatpush2.msra.mxu0 0.0
  %4244 = vmatprep.subr.mxu0 0.0
  %4245 = vmatpush2.msra.mxu0 0.0
  %4246 = vmatprep.subr.mxu0 0.0
  %4247 = vmatpush2.msra.mxu0 0.0
  %4248 = vmatprep.mubr.f32.mxu0 0.0
  %4249 = vmatmul.mubr.f32.gmra.mxu0 %v4182
  %v4250 = vpop.f32.mrf.mxu0
  %v4251 = vadd.f32 0.0, %v4250
  %v4252 = vpop.f32.mrf.mxu0
  %4253 = vdwg.mxu0
  %v4254 = vadd.f32 %v4012, %v4251
  %4255 = vrot.lane.b32.xlu0 %v2521, 104
  %v4256 = vpop.permute.xlu0 %4255
  %4257 = vrot.lane.b32.xlu0 %v2521, 72
  %v4258 = vpop.permute.xlu0 %4257
  %v4259 = vsel %vm187, %v4256, 0
  %v4261 = vsel %vm187, %v4258, 0
  %4263 = vmatprep.subr.mxu0 0.0
  %4264 = vmatpush1.xpose.msra.mxu0 0.0
  %4265 = vmatprep.subr.mxu0 0.0
  %4266 = vmatpush1.xpose.msra.mxu0 0.0
  %4267 = vmatprep.subr.mxu0 0.0
  %4268 = vmatpush1.xpose.msra.mxu0 0.0
  %4269 = vmatprep.subr.mxu0 0.0
  %4270 = vmatpush1.xpose.msra.mxu0 0.0
  %4271 = vmatprep.subr.mxu0 0.0
  %4272 = vmatpush1.xpose.msra.mxu0 0.0
  %4273 = vmatprep.subr.mxu0 0.0
  %4274 = vmatpush1.xpose.msra.mxu0 0.0
  %4275 = vmatprep.subr.mxu0 0.0
  %4276 = vmatpush1.xpose.msra.mxu0 0.0
  %4277 = vmatprep.subr.mxu0 0.0
  %4278 = vmatpush1.xpose.msra.mxu0 0.0
  %4279 = vmatprep.subr.mxu0 0.0
  %4280 = vmatpush1.xpose.msra.mxu0 0.0
  %4281 = vmatprep.subr.mxu0 0.0
  %4282 = vmatpush1.xpose.msra.mxu0 0.0
  %4283 = vmatprep.subr.mxu0 0.0
  %4284 = vmatpush1.xpose.msra.mxu0 0.0
  %4285 = vmatprep.subr.mxu0 0.0
  %4286 = vmatpush1.xpose.msra.mxu0 0.0
  %4287 = vmatprep.subr.mxu0 0.0
  %4288 = vmatpush1.xpose.msra.mxu0 0.0
  %4289 = vmatprep.subr.mxu0 0.0
  %4290 = vmatpush1.xpose.msra.mxu0 0.0
  %4291 = vmatprep.subr.mxu0 0.0
  %4292 = vmatpush1.xpose.msra.mxu0 0.0
  %4293 = vmatprep.subr.mxu0 0.0
  %4294 = vmatpush1.xpose.msra.mxu0 %v4261
  %4295 = vmatprep.subr.mxu0 0.0
  %4296 = vmatpush2.xpose.msra.mxu0 0.0
  %4297 = vmatprep.subr.mxu0 0.0
  %4298 = vmatpush2.xpose.msra.mxu0 0.0
  %4299 = vmatprep.subr.mxu0 0.0
  %4300 = vmatpush2.xpose.msra.mxu0 0.0
  %4301 = vmatprep.subr.mxu0 0.0
  %4302 = vmatpush2.xpose.msra.mxu0 0.0
  %4303 = vmatprep.subr.mxu0 0.0
  %4304 = vmatpush2.xpose.msra.mxu0 0.0
  %4305 = vmatprep.subr.mxu0 0.0
  %4306 = vmatpush2.xpose.msra.mxu0 0.0
  %4307 = vmatprep.subr.mxu0 0.0
  %4308 = vmatpush2.xpose.msra.mxu0 0.0
  %4309 = vmatprep.subr.mxu0 0.0
  %4310 = vmatpush2.xpose.msra.mxu0 0.0
  %4311 = vmatprep.subr.mxu0 0.0
  %4312 = vmatpush2.xpose.msra.mxu0 0.0
  %4313 = vmatprep.subr.mxu0 0.0
  %4314 = vmatpush2.xpose.msra.mxu0 0.0
  %4315 = vmatprep.subr.mxu0 0.0
  %4316 = vmatpush2.xpose.msra.mxu0 0.0
  %4317 = vmatprep.subr.mxu0 0.0
  %4318 = vmatpush2.xpose.msra.mxu0 0.0
  %4319 = vmatprep.subr.mxu0 0.0
  %4320 = vmatpush2.xpose.msra.mxu0 0.0
  %4321 = vmatprep.subr.mxu0 0.0
  %4322 = vmatpush2.xpose.msra.mxu0 0.0
  %4323 = vmatprep.subr.mxu0 0.0
  %4324 = vmatpush2.xpose.msra.mxu0 0.0
  %4325 = vmatprep.subr.mxu0 0.0
  %4326 = vmatpush2.xpose.msra.mxu0 0.0
  %4327 = vmatprep.mubr.f32.mxu0 0.0
  %4328 = vmatmul.mubr.f32.gmra.mxu0 %v4259
  %v4329 = vpop.f32.mrf.mxu0
  %v4330 = vadd.f32 0.0, %v4329
  %v4331 = vpop.f32.mrf.mxu0
  %4332 = vdwg.mxu0
  %v4333 = vmul.f32 %v4330, 0.35355338
  %v4334 = vsel %vm187, %v4333, -inf
  %4335 = vmax.xlane.f32.xlu0 %v4334
  %v4336 = vpop.xlane.xlu0 %4335
  %v4337 = vsub.f32 %v4333, %v4336
  %v4338 = vmul.f32 %v4337, 1.442695
  %v4339 = vpow.pop %v4338
  %v4340 = vsel %vm187, %v4339, 0.0
  %4341 = vadd.xlane.f32.xlu0 %v4340
  %v4342 = vpop.xlane.xlu0 %4341
  %v4343 = vrcp.pop %v4342
  %v4344 = vmul.f32 %v4339, %v4343
  %4345 = vrot.lane.b32.xlu0 %v2521, 40
  %v4346 = vpop.permute.xlu0 %4345
  %v4349 = vsel %vm187, %v4344, 0
  %4351 = vmatprep.subr.mxu0 0.0
  %4352 = vmatpush1.msra.mxu0 0.0
  %4353 = vmatprep.subr.mxu0 0.0
  %4354 = vmatpush1.msra.mxu0 0.0
  %4355 = vmatprep.subr.mxu0 0.0
  %4356 = vmatpush1.msra.mxu0 0.0
  %4357 = vmatprep.subr.mxu0 0.0
  %4358 = vmatpush1.msra.mxu0 0.0
  %4359 = vmatprep.subr.mxu0 0.0
  %4360 = vmatpush1.msra.mxu0 0.0
  %4361 = vmatprep.subr.mxu0 0.0
  %4362 = vmatpush1.msra.mxu0 0.0
  %4363 = vmatprep.subr.mxu0 0.0
  %4364 = vmatpush1.msra.mxu0 0.0
  %4365 = vmatprep.subr.mxu0 0.0
  %4366 = vmatpush1.msra.mxu0 0.0
  %4367 = vmatprep.subr.mxu0 0.0
  %4368 = vmatpush1.msra.mxu0 0.0
  %4369 = vmatprep.subr.mxu0 0.0
  %4370 = vmatpush1.msra.mxu0 0.0
  %4371 = vmatprep.subr.mxu0 0.0
  %4372 = vmatpush1.msra.mxu0 0.0
  %4373 = vmatprep.subr.mxu0 0.0
  %4374 = vmatpush1.msra.mxu0 0.0
  %4375 = vmatprep.subr.mxu0 0.0
  %4376 = vmatpush1.msra.mxu0 0.0
  %4377 = vmatprep.subr.mxu0 0.0
  %4378 = vmatpush1.msra.mxu0 0.0
  %4379 = vmatprep.subr.mxu0 0.0
  %4380 = vmatpush1.msra.mxu0 0.0
  %4381 = vmatprep.subr.mxu0 0.0
  %4382 = vmatpush1.msra.mxu0 %v4346
  %4383 = vmatprep.subr.mxu0 0.0
  %4384 = vmatpush2.msra.mxu0 0.0
  %4385 = vmatprep.subr.mxu0 0.0
  %4386 = vmatpush2.msra.mxu0 0.0
  %4387 = vmatprep.subr.mxu0 0.0
  %4388 = vmatpush2.msra.mxu0 0.0
  %4389 = vmatprep.subr.mxu0 0.0
  %4390 = vmatpush2.msra.mxu0 0.0
  %4391 = vmatprep.subr.mxu0 0.0
  %4392 = vmatpush2.msra.mxu0 0.0
  %4393 = vmatprep.subr.mxu0 0.0
  %4394 = vmatpush2.msra.mxu0 0.0
  %4395 = vmatprep.subr.mxu0 0.0
  %4396 = vmatpush2.msra.mxu0 0.0
  %4397 = vmatprep.subr.mxu0 0.0
  %4398 = vmatpush2.msra.mxu0 0.0
  %4399 = vmatprep.subr.mxu0 0.0
  %4400 = vmatpush2.msra.mxu0 0.0
  %4401 = vmatprep.subr.mxu0 0.0
  %4402 = vmatpush2.msra.mxu0 0.0
  %4403 = vmatprep.subr.mxu0 0.0
  %4404 = vmatpush2.msra.mxu0 0.0
  %4405 = vmatprep.subr.mxu0 0.0
  %4406 = vmatpush2.msra.mxu0 0.0
  %4407 = vmatprep.subr.mxu0 0.0
  %4408 = vmatpush2.msra.mxu0 0.0
  %4409 = vmatprep.subr.mxu0 0.0
  %4410 = vmatpush2.msra.mxu0 0.0
  %4411 = vmatprep.subr.mxu0 0.0
  %4412 = vmatpush2.msra.mxu0 0.0
  %4413 = vmatprep.subr.mxu0 0.0
  %4414 = vmatpush2.msra.mxu0 0.0
  %4415 = vmatprep.mubr.f32.mxu0 0.0
  %4416 = vmatmul.mubr.f32.gmra.mxu0 %v4349
  %v4417 = vpop.f32.mrf.mxu0
  %v4418 = vadd.f32 0.0, %v4417
  %v4419 = vpop.f32.mrf.mxu0
  %4420 = vdwg.mxu0
  %v4422 = vsel %vm187, %v4418, 0
  %4424 = vmatprep.subr.mxu0 0.0
  %4425 = vmatpush1.msra.mxu0 0.0
  %4426 = vmatprep.subr.mxu0 0.0
  %4427 = vmatpush1.msra.mxu0 0.0
  %4428 = vmatprep.subr.mxu0 0.0
  %4429 = vmatpush1.msra.mxu0 0.0
  %4430 = vmatprep.subr.mxu0 0.0
  %4431 = vmatpush1.msra.mxu0 0.0
  %4432 = vmatprep.subr.mxu0 0.0
  %4433 = vmatpush1.msra.mxu0 0.0
  %4434 = vmatprep.subr.mxu0 0.0
  %4435 = vmatpush1.msra.mxu0 0.0
  %4436 = vmatprep.subr.mxu0 0.0
  %4437 = vmatpush1.msra.mxu0 0.0
  %4438 = vmatprep.subr.mxu0 0.0
  %4439 = vmatpush1.msra.mxu0 0.0
  %4440 = vmatprep.subr.mxu0 0.0
  %4441 = vmatpush1.msra.mxu0 0.0
  %4442 = vmatprep.subr.mxu0 0.0
  %4443 = vmatpush1.msra.mxu0 0.0
  %4444 = vmatprep.subr.mxu0 0.0
  %4445 = vmatpush1.msra.mxu0 0.0
  %4446 = vmatprep.subr.mxu0 0.0
  %4447 = vmatpush1.msra.mxu0 0.0
  %4448 = vmatprep.subr.mxu0 0.0
  %4449 = vmatpush1.msra.mxu0 0.0
  %4450 = vmatprep.subr.mxu0 0.0
  %4451 = vmatpush1.msra.mxu0 0.0
  %4452 = vmatprep.subr.mxu0 0.0
  %4453 = vmatpush1.msra.mxu0 0.0
  %4454 = vmatprep.subr.mxu0 0.0
  %4455 = vmatpush1.msra.mxu0 %v2528
  %4456 = vmatprep.subr.mxu0 0.0
  %4457 = vmatpush2.msra.mxu0 0.0
  %4458 = vmatprep.subr.mxu0 0.0
  %4459 = vmatpush2.msra.mxu0 0.0
  %4460 = vmatprep.subr.mxu0 0.0
  %4461 = vmatpush2.msra.mxu0 0.0
  %4462 = vmatprep.subr.mxu0 0.0
  %4463 = vmatpush2.msra.mxu0 0.0
  %4464 = vmatprep.subr.mxu0 0.0
  %4465 = vmatpush2.msra.mxu0 0.0
  %4466 = vmatprep.subr.mxu0 0.0
  %4467 = vmatpush2.msra.mxu0 0.0
  %4468 = vmatprep.subr.mxu0 0.0
  %4469 = vmatpush2.msra.mxu0 0.0
  %4470 = vmatprep.subr.mxu0 0.0
  %4471 = vmatpush2.msra.mxu0 0.0
  %4472 = vmatprep.subr.mxu0 0.0
  %4473 = vmatpush2.msra.mxu0 0.0
  %4474 = vmatprep.subr.mxu0 0.0
  %4475 = vmatpush2.msra.mxu0 0.0
  %4476 = vmatprep.subr.mxu0 0.0
  %4477 = vmatpush2.msra.mxu0 0.0
  %4478 = vmatprep.subr.mxu0 0.0
  %4479 = vmatpush2.msra.mxu0 0.0
  %4480 = vmatprep.subr.mxu0 0.0
  %4481 = vmatpush2.msra.mxu0 0.0
  %4482 = vmatprep.subr.mxu0 0.0
  %4483 = vmatpush2.msra.mxu0 0.0
  %4484 = vmatprep.subr.mxu0 0.0
  %4485 = vmatpush2.msra.mxu0 0.0
  %4486 = vmatprep.subr.mxu0 0.0
  %4487 = vmatpush2.msra.mxu0 0.0
  %4488 = vmatprep.mubr.f32.mxu0 0.0
  %4489 = vmatmul.mubr.f32.gmra.mxu0 %v4422
  %v4490 = vpop.f32.mrf.mxu0
  %v4491 = vadd.f32 0.0, %v4490
  %v4492 = vpop.f32.mrf.mxu0
  %4493 = vdwg.mxu0
  %v4494 = vadd.f32 %v4254, %v4491
  %v4495 = vadd.f32 %v4494, %v3496
  %v4496 = vadd.f32 %v2437, %v4495
  %v4497 = vsel %vm95, %v4496, 0.0
  %v4498 = vrot.slane %v4497, 4
  %v4499 = vadd.f32 %v4497, %v4498
  %v4500 = vrot.slane %v4499, 2
  %v4501 = vadd.f32 %v4499, %v4500
  %v4502 = vrot.slane %v4501, 1
  %v4503 = vadd.f32 %v4501, %v4502
  %v4504 = vmul.f32 %v4503, %v1157
  %v4505 = vmul.f32 %v4496, %v4496
  %v4506 = vsel %vm95, %v4505, 0.0
  %v4507 = vrot.slane %v4506, 4
  %v4508 = vadd.f32 %v4506, %v4507
  %v4509 = vrot.slane %v4508, 2
  %v4510 = vadd.f32 %v4508, %v4509
  %v4511 = vrot.slane %v4510, 1
  %v4512 = vadd.f32 %v4510, %v4511
  %v4513 = vmul.f32 %v4512, %v1157
  %v4514 = vmul.f32 %v4504, %v4504
  %v4515 = vsub.f32 %v4513, %v4514
  %v4516 = vsub.f32 %v4496, %v4504
  %v4517 = vadd.f32 %v4515, 1e-05
  %v4518 = vrsqrt.pop %v4517
  %v4519 = vmul.f32 %v4516, %v4518
  %v4520 = vmul.f32 %v4519, %v3527
  %v4521 = vadd.f32 %v4520, %v3534
  %4522 = vst.msk [vmem:[%s2173] sm:$0xff] %vm95, %v4521
  %v4523 = vld [vmem:[#allocation2] sm:$0xff]
  %v4524 = vld [vmem:[#allocation2 + $0x8] sm:$0xff]
  %s4525 = scalar_lea.vmem %s8, 32
  %v4526 = vld [vmem:[%s4525] sm:$0xff]
  %v4527 = vld [vmem:[%s4525 + $0x8] sm:$0xff]
  %v4528 = vld [vmem:[%s4525 + $0x10] sm:$0xff]
  %v4529 = vld [vmem:[%s4525 + $0x18] sm:$0xff]
  %v4531 = vsel %vm95, %v4523, 0
  %v4534 = vsel %vm95, %v4524, 0
  %4536 = vmatprep.subr.mxu0 0.0
  %4537 = vmatpush1.msra.mxu0 0.0
  %4538 = vmatprep.subr.mxu0 0.0
  %4539 = vmatpush1.msra.mxu0 0.0
  %4540 = vmatprep.subr.mxu0 0.0
  %4541 = vmatpush1.msra.mxu0 0.0
  %4542 = vmatprep.subr.mxu0 0.0
  %4543 = vmatpush1.msra.mxu0 0.0
  %4544 = vmatprep.subr.mxu0 0.0
  %4545 = vmatpush1.msra.mxu0 0.0
  %4546 = vmatprep.subr.mxu0 0.0
  %4547 = vmatpush1.msra.mxu0 0.0
  %4548 = vmatprep.subr.mxu0 0.0
  %4549 = vmatpush1.msra.mxu0 0.0
  %4550 = vmatprep.subr.mxu0 0.0
  %4551 = vmatpush1.msra.mxu0 0.0
  %4552 = vmatprep.subr.mxu0 0.0
  %4553 = vmatpush1.msra.mxu0 0.0
  %4554 = vmatprep.subr.mxu0 0.0
  %4555 = vmatpush1.msra.mxu0 0.0
  %4556 = vmatprep.subr.mxu0 0.0
  %4557 = vmatpush1.msra.mxu0 0.0
  %4558 = vmatprep.subr.mxu0 0.0
  %4559 = vmatpush1.msra.mxu0 0.0
  %4560 = vmatprep.subr.mxu0 0.0
  %4561 = vmatpush1.msra.mxu0 %v4529
  %4562 = vmatprep.subr.mxu0 0.0
  %4563 = vmatpush1.msra.mxu0 %v4528
  %4564 = vmatprep.subr.mxu0 0.0
  %4565 = vmatpush1.msra.mxu0 %v4527
  %4566 = vmatprep.subr.mxu0 0.0
  %4567 = vmatpush1.msra.mxu0 %v4526
  %4568 = vmatprep.subr.mxu0 0.0
  %4569 = vmatpush2.msra.mxu0 0.0
  %4570 = vmatprep.subr.mxu0 0.0
  %4571 = vmatpush2.msra.mxu0 0.0
  %4572 = vmatprep.subr.mxu0 0.0
  %4573 = vmatpush2.msra.mxu0 0.0
  %4574 = vmatprep.subr.mxu0 0.0
  %4575 = vmatpush2.msra.mxu0 0.0
  %4576 = vmatprep.subr.mxu0 0.0
  %4577 = vmatpush2.msra.mxu0 0.0
  %4578 = vmatprep.subr.mxu0 0.0
  %4579 = vmatpush2.msra.mxu0 0.0
  %4580 = vmatprep.subr.mxu0 0.0
  %4581 = vmatpush2.msra.mxu0 0.0
  %4582 = vmatprep.subr.mxu0 0.0
  %4583 = vmatpush2.msra.mxu0 0.0
  %4584 = vmatprep.subr.mxu0 0.0
  %4585 = vmatpush2.msra.mxu0 0.0
  %4586 = vmatprep.subr.mxu0 0.0
  %4587 = vmatpush2.msra.mxu0 0.0
  %4588 = vmatprep.subr.mxu0 0.0
  %4589 = vmatpush2.msra.mxu0 0.0
  %4590 = vmatprep.subr.mxu0 0.0
  %4591 = vmatpush2.msra.mxu0 0.0
  %4592 = vmatprep.subr.mxu0 0.0
  %4593 = vmatpush2.msra.mxu0 0.0
  %4594 = vmatprep.subr.mxu0 0.0
  %4595 = vmatpush2.msra.mxu0 0.0
  %4596 = vmatprep.subr.mxu0 0.0
  %4597 = vmatpush2.msra.mxu0 0.0
  %4598 = vmatprep.subr.mxu0 0.0
  %4599 = vmatpush2.msra.mxu0 0.0
  %4600 = vmatprep.mubr.f32.mxu0 0.0
  %4601 = vmatmul.mubr.f32.gmra.mxu0 %v4531
  %v4602 = vpop.f32.mrf.mxu0
  %v4603 = vadd.f32 0.0, %v4602
  %v4604 = vpop.f32.mrf.mxu0
  %4605 = vmatprep.mubr.f32.mxu0 0.0
  %4606 = vmatmul.mubr.f32.gmra.mxu0 %v4534
  %v4607 = vpop.f32.mrf.mxu0
  %v4608 = vadd.f32 0.0, %v4607
  %v4609 = vpop.f32.mrf.mxu0
  %4610 = vdwg.mxu0
  %s4611 = scalar_lea.vmem %s9, 1
  %v4612 = vld [vmem:[%s4611] sm:$0x1]
  %v4614 = vlaneseq
  %v4615 = vshrl.u32 %v4614, 7
  %v4616 = vsub.s32 0, %v4615
  %v4617 = vrot.slane %v4612, %v4616
  %v4619 = vadd.f32 %v4603, %v4617
  %v4620 = vadd.f32 %v4608, %v4617
  %v4621 = vmax.f32 %v4619, 0.0
  %v4622 = vmax.f32 %v4620, 0.0
  %s4623 = scalar_lea.vmem %s10, 64
  %v4624 = vld [vmem:[%s4623] sm:$0xff]
  %v4625 = vld [vmem:[%s4623 + $0x8] sm:$0xff]
  %v4626 = vld [vmem:[%s4623 + $0x10] sm:$0xff]
  %v4627 = vld [vmem:[%s4623 + $0x18] sm:$0xff]
  %v4628 = vld [vmem:[%s4623 + $0x20] sm:$0xff]
  %v4629 = vld [vmem:[%s4623 + $0x28] sm:$0xff]
  %v4630 = vld [vmem:[%s4623 + $0x30] sm:$0xff]
  %v4631 = vld [vmem:[%s4623 + $0x38] sm:$0xff]
  %v4633 = vsel %vm2281, %v4621, 0
  %v4636 = vsel %vm2281, %v4622, 0
  %4638 = vmatprep.subr.mxu0 0.0
  %4639 = vmatpush1.msra.mxu0 0.0
  %4640 = vmatprep.subr.mxu0 0.0
  %4641 = vmatpush1.msra.mxu0 0.0
  %4642 = vmatprep.subr.mxu0 0.0
  %4643 = vmatpush1.msra.mxu0 0.0
  %4644 = vmatprep.subr.mxu0 0.0
  %4645 = vmatpush1.msra.mxu0 0.0
  %4646 = vmatprep.subr.mxu0 0.0
  %4647 = vmatpush1.msra.mxu0 0.0
  %4648 = vmatprep.subr.mxu0 0.0
  %4649 = vmatpush1.msra.mxu0 0.0
  %4650 = vmatprep.subr.mxu0 0.0
  %4651 = vmatpush1.msra.mxu0 0.0
  %4652 = vmatprep.subr.mxu0 0.0
  %4653 = vmatpush1.msra.mxu0 0.0
  %4654 = vmatprep.subr.mxu0 0.0
  %4655 = vmatpush1.msra.mxu0 %v4631
  %4656 = vmatprep.subr.mxu0 0.0
  %4657 = vmatpush1.msra.mxu0 %v4630
  %4658 = vmatprep.subr.mxu0 0.0
  %4659 = vmatpush1.msra.mxu0 %v4629
  %4660 = vmatprep.subr.mxu0 0.0
  %4661 = vmatpush1.msra.mxu0 %v4628
  %4662 = vmatprep.subr.mxu0 0.0
  %4663 = vmatpush1.msra.mxu0 %v4627
  %4664 = vmatprep.subr.mxu0 0.0
  %4665 = vmatpush1.msra.mxu0 %v4626
  %4666 = vmatprep.subr.mxu0 0.0
  %4667 = vmatpush1.msra.mxu0 %v4625
  %4668 = vmatprep.subr.mxu0 0.0
  %4669 = vmatpush1.msra.mxu0 %v4624
  %4670 = vmatprep.subr.mxu0 0.0
  %4671 = vmatpush2.msra.mxu0 0.0
  %4672 = vmatprep.subr.mxu0 0.0
  %4673 = vmatpush2.msra.mxu0 0.0
  %4674 = vmatprep.subr.mxu0 0.0
  %4675 = vmatpush2.msra.mxu0 0.0
  %4676 = vmatprep.subr.mxu0 0.0
  %4677 = vmatpush2.msra.mxu0 0.0
  %4678 = vmatprep.subr.mxu0 0.0
  %4679 = vmatpush2.msra.mxu0 0.0
  %4680 = vmatprep.subr.mxu0 0.0
  %4681 = vmatpush2.msra.mxu0 0.0
  %4682 = vmatprep.subr.mxu0 0.0
  %4683 = vmatpush2.msra.mxu0 0.0
  %4684 = vmatprep.subr.mxu0 0.0
  %4685 = vmatpush2.msra.mxu0 0.0
  %4686 = vmatprep.subr.mxu0 0.0
  %4687 = vmatpush2.msra.mxu0 0.0
  %4688 = vmatprep.subr.mxu0 0.0
  %4689 = vmatpush2.msra.mxu0 0.0
  %4690 = vmatprep.subr.mxu0 0.0
  %4691 = vmatpush2.msra.mxu0 0.0
  %4692 = vmatprep.subr.mxu0 0.0
  %4693 = vmatpush2.msra.mxu0 0.0
  %4694 = vmatprep.subr.mxu0 0.0
  %4695 = vmatpush2.msra.mxu0 0.0
  %4696 = vmatprep.subr.mxu0 0.0
  %4697 = vmatpush2.msra.mxu0 0.0
  %4698 = vmatprep.subr.mxu0 0.0
  %4699 = vmatpush2.msra.mxu0 0.0
  %4700 = vmatprep.subr.mxu0 0.0
  %4701 = vmatpush2.msra.mxu0 0.0
  %4702 = vmatprep.mubr.f32.mxu0 0.0
  %4703 = vmatmul.mubr.f32.gmra.mxu0 %v4633
  %v4704 = vpop.f32.mrf.mxu0
  %v4705 = vadd.f32 0.0, %v4704
  %v4706 = vpop.f32.mrf.mxu0
  %4707 = vmatprep.mubr.f32.mxu0 0.0
  %4708 = vmatmul.mubr.f32.gmra.mxu0 %v4636
  %v4709 = vpop.f32.mrf.mxu0
  %v4710 = vadd.f32 0.0, %v4709
  %v4711 = vpop.f32.mrf.mxu0
  %4712 = vdwg.mxu0
  %s4713 = scalar_lea.vmem %s11, 1
  %v4714 = vld [vmem:[%s4713] sm:$0x1]
  %v4716 = vlaneseq
  %v4717 = vshrl.u32 %v4716, 7
  %v4718 = vsub.s32 0, %v4717
  %v4719 = vrot.slane %v4714, %v4718
  %v4721 = vadd.f32 %v4705, %v4719
  %v4722 = vadd.f32 %v4710, %v4719
  %v4723 = vadd.f32 %v4523, %v4721
  %v4724 = vadd.f32 %v4524, %v4722
  %s4725 = scalar_lea.vmem %s12, 1
  %v4726 = vld [vmem:[%s4725] sm:$0x1]
  %s4727 = scalar_lea.vmem %s13, 1
  %v4728 = vld [vmem:[%s4727] sm:$0x1]
  %v4729 = vsel %vm95, %v4723, 0.0
  %v4730 = vrot.slane %v4729, 4
  %v4731 = vadd.f32 %v4729, %v4730
  %v4732 = vrot.slane %v4731, 2
  %v4733 = vadd.f32 %v4731, %v4732
  %v4734 = vrot.slane %v4733, 1
  %v4735 = vadd.f32 %v4733, %v4734
  %v4736 = vsel %vm95, %v4724, 0.0
  %v4737 = vrot.slane %v4736, 4
  %v4738 = vadd.f32 %v4736, %v4737
  %v4739 = vrot.slane %v4738, 2
  %v4740 = vadd.f32 %v4738, %v4739
  %v4741 = vrot.slane %v4740, 1
  %v4742 = vadd.f32 %v4740, %v4741
  %v4743 = vmul.f32 %v4735, %v1157
  %v4744 = vmul.f32 %v4742, %v1157
  %v4745 = vmul.f32 %v4723, %v4723
  %v4746 = vmul.f32 %v4724, %v4724
  %v4747 = vsel %vm95, %v4745, 0.0
  %v4748 = vrot.slane %v4747, 4
  %v4749 = vadd.f32 %v4747, %v4748
  %v4750 = vrot.slane %v4749, 2
  %v4751 = vadd.f32 %v4749, %v4750
  %v4752 = vrot.slane %v4751, 1
  %v4753 = vadd.f32 %v4751, %v4752
  %v4754 = vsel %vm95, %v4746, 0.0
  %v4755 = vrot.slane %v4754, 4
  %v4756 = vadd.f32 %v4754, %v4755
  %v4757 = vrot.slane %v4756, 2
  %v4758 = vadd.f32 %v4756, %v4757
  %v4759 = vrot.slane %v4758, 1
  %v4760 = vadd.f32 %v4758, %v4759
  %v4761 = vmul.f32 %v4753, %v1157
  %v4762 = vmul.f32 %v4760, %v1157
  %v4763 = vmul.f32 %v4743, %v4743
  %v4764 = vmul.f32 %v4744, %v4744
  %v4765 = vsub.f32 %v4761, %v4763
  %v4766 = vsub.f32 %v4762, %v4764
  %v4767 = vsub.f32 %v4723, %v4743
  %v4768 = vsub.f32 %v4724, %v4744
  %v4769 = vadd.f32 %v4765, 1e-05
  %v4770 = vadd.f32 %v4766, 1e-05
  %v4771 = vrsqrt.pop %v4769
  %v4772 = vrsqrt.pop %v4770
  %v4773 = vmul.f32 %v4767, %v4771
  %v4774 = vmul.f32 %v4768, %v4772
  %v4776 = vlaneseq
  %v4777 = vshrl.u32 %v4776, 7
  %v4778 = vsub.s32 0, %v4777
  %v4779 = vrot.slane %v4726, %v4778
  %v4781 = vmul.f32 %v4773, %v4779
  %v4782 = vmul.f32 %v4774, %v4779
  %v4784 = vlaneseq
  %v4785 = vshrl.u32 %v4784, 7
  %v4786 = vsub.s32 0, %v4785
  %v4787 = vrot.slane %v4728, %v4786
  %v4789 = vadd.f32 %v4781, %v4787
  %v4790 = vadd.f32 %v4782, %v4787
  %4791 = vst.msk [vmem:[%s14] sm:$0xff] %vm95, 0.0
  %4792 = vst.msk [vmem:[%s14 + $0x8] sm:$0xff] %vm95, 0.0
  %4793 = vst.msk [vmem:[%s14 + $0x10] sm:$0xff] %vm95, 0.0
  %4794 = vst.msk [vmem:[%s14 + $0x18] sm:$0xff] %vm95, 0.0
  %4795 = vst.msk [vmem:[%s14 + $0x20] sm:$0xff] %vm95, 0.0
  %4796 = vst.msk [vmem:[%s14 + $0x28] sm:$0xff] %vm95, 0.0
  %4797 = vst.msk [vmem:[%s14 + $0x30] sm:$0xff] %vm95, 0.0
  %4798 = vst.msk [vmem:[%s14 + $0x38] sm:$0xff] %vm95, 0.0
  %4799 = vst.msk [vmem:[%s14 + $0x40] sm:$0xff] %vm95, 0.0
  %4800 = vst.msk [vmem:[%s14 + $0x48] sm:$0xff] %vm95, 0.0
  %4801 = vst.msk [vmem:[%s14 + $0x50] sm:$0xff] %vm95, 0.0
  %4802 = vst.msk [vmem:[%s14 + $0x58] sm:$0xff] %vm95, 0.0
  %4803 = vst.msk [vmem:[%s14 + $0x60] sm:$0xff] %vm95, 0.0
  %4804 = vst.msk [vmem:[%s14 + $0x68] sm:$0xff] %vm95, 0.0
  %4805 = vst.msk [vmem:[%s14 + $0x70] sm:$0xff] %vm95, 0.0
  %4806 = vst.msk [vmem:[%s14 + $0x78] sm:$0xff] %vm95, 0.0
  %4807 = vst.msk [vmem:[%s14 + $0x80] sm:$0xff] %vm95, 0.0
  %4808 = vst.msk [vmem:[%s14 + $0x88] sm:$0xff] %vm95, 0.0
  %4809 = vst.msk [vmem:[%s14 + $0x90] sm:$0xff] %vm95, 0.0
  %4810 = vst.msk [vmem:[%s14 + $0x98] sm:$0xff] %vm95, 0.0
  %4811 = vst.msk [vmem:[%s14 + $0xa0] sm:$0xff] %vm95, 0.0
  %4812 = vst.msk [vmem:[%s14 + $0xa8] sm:$0xff] %vm95, 0.0
  %4813 = vst.msk [vmem:[%s14 + $0xb0] sm:$0xff] %vm95, 0.0
  %4814 = vst.msk [vmem:[%s14 + $0xb8] sm:$0xff] %vm95, 0.0
  %4815 = vst.msk [vmem:[%s14 + $0xc0] sm:$0xff] %vm95, 0.0
  %4816 = vst.msk [vmem:[%s14 + $0xc8] sm:$0xff] %vm95, 0.0
  %4817 = vst.msk [vmem:[%s14 + $0xd0] sm:$0xff] %vm95, 0.0
  %4818 = vst.msk [vmem:[%s14 + $0xd8] sm:$0xff] %vm95, 0.0
  %4819 = vst.msk [vmem:[%s14 + $0xe0] sm:$0xff] %vm95, 0.0
  %4820 = vst.msk [vmem:[%s14 + $0xe8] sm:$0xff] %vm95, 0.0
  %4821 = vst.msk [vmem:[%s14 + $0xf0] sm:$0xff] %vm95, 0.0
  %4822 = vst.msk [vmem:[%s14 + $0xf8] sm:$0xff] %vm95, 0.0
  %4823 = vst.msk [vmem:[%s14] sm:$0xff] %vm95, %v4789
  %4824 = vst.msk [vmem:[%s14 + $0x80] sm:$0xff] %vm95, %v4790
  // Predicated region
  $region58: #{tpu_custom_call.1} parent=0 // pred_check
    _
  $region59: #{tpu_custom_call.1} parent=0 // pred_check_branch
    %4826 = sbr.rel (0) target = $region61
  $region60: #{tpu_custom_call.1} parent=0 // pred_region
    _
  $region61: #{tpu_custom_call.1} parent=0 // pred_fallthru
    _
  // Predicated region
  $region62: #{tpu_custom_call.1} parent=0 // pred_check
    _
  $region63: #{tpu_custom_call.1} parent=0 // pred_check_branch
    %4828 = sbr.rel (0) target = $region65
  $region64: #{tpu_custom_call.1} parent=0 // pred_region
    _
  $region65: #{tpu_custom_call.1} parent=0 // pred_fallthru
    _

</llo_original>
